<compile_context>
chip_gen: v7x
topology: tpu7x:2x2x1
jax: 0.10.0
libtpu: 0.0.40
codegen_flags: <defaults>
</compile_context>

<pallas_src>
import math

import jax
import jax.numpy as jnp
from jax.experimental import pallas as pl
from jax.experimental.pallas import tpu as pltpu

# ----------------------------- constants (from the reference module) -----------
MAX_ANG_VEL = 2
MAX_LIN_VEL = 2
MAX_POS = 3
SCHEDULER_BETA_START = 0.00085
SCHEDULER_BETA_END = 0.012
NUM_TRAIN_TIMESTEPS = 1000

# ----------------------------- small synthetic config --------------------------
ACTION_N_CHANNELS = 6
PATH_N_CHANNELS = 10
LATENT_STATE_DIM = 32
DSED = 32                # diffusion_step_embed_dim
DOWN_DIMS = (32, 64)     # ConditionalUnet1D down_dims (kept small)
N_GROUPS = 8
GN_EPS = 1e-5
LANES = 128              # lane width of every slab / of the output


# ----------------------------- in-kernel math helpers ---------------------------
def _mish(x):
    # mish(x) = x * tanh(softplus(x)) = x * t / (t + 2), t = e^x (e^x + 2).
    # exp is clamped so large pre-activations do not produce inf/inf -> NaN
    # (for x >= 20 the ratio is already 1 to f32 precision).
    e = jnp.exp(jnp.minimum(x, 20.0))
    t = e * (e + 2.0)
    return x * t * pl.reciprocal(t + 2.0, approx=True)


# ----------------------------- parameter init (logical) --------------------------
def _init_linear(key, fan_in, fan_out):
    w = jax.random.normal(key, (fan_in, fan_out), jnp.float32) * 0.02
    b = jnp.zeros((fan_out,), jnp.float32)
    return w, b


def _init_crb(key, cin, cout, cond_dim):
    ks = jax.random.split(key, 4)
    w1, b1 = _init_linear(ks[0], cin, cout)           # centre tap of Conv1d(cin,cout,k)
    wc, bc = _init_linear(ks[1], cond_dim, 2 * cout)  # FiLM cond encoder
    w2, b2 = _init_linear(ks[2], cout, cout)          # centre tap of Conv1d(cout,cout,k)
    if cin != cout:
        wr, br = _init_linear(ks[3], cin, cout)       # residual 1x1 conv
    else:
        wr, br = None, None                           # nn.Identity residual
    return dict(cin=cin, cout=cout, w1=w1, b1=b1, wc=wc, bc=bc, w2=w2, b2=b2,
                wr=wr, br=br,
                g1w=jnp.ones((cout,), jnp.float32), g1b=jnp.zeros((cout,), jnp.float32),
                g2w=jnp.ones((cout,), jnp.float32), g2b=jnp.zeros((cout,), jnp.float32))


def init_unet_params(key, input_dim, global_cond_dim):
    cond_dim = DSED + global_cond_dim
    all_dims = (input_dim,) + DOWN_DIMS
    in_out = list(zip(all_dims[:-1], all_dims[1:]))
    keys = iter(jax.random.split(key, 128))
    p = {}
    p["step_w1"], p["step_b1"] = _init_linear(next(keys), DSED, DSED * 4)
    p["step_w2"], p["step_b2"] = _init_linear(next(keys), DSED * 4, DSED)
    p["down"] = [(_init_crb(next(keys), ci, co, cond_dim),
                  _init_crb(next(keys), co, co, cond_dim)) for ci, co in in_out]
    # Downsample1d (Conv1d k3 s2 p1) after every non-last down level; at horizon 1
    # only the centre tap contributes, so it is a (co, co) matmul + bias.
    p["downsample"] = []
    for lvl, (ci, co) in enumerate(in_out):
        if lvl < len(in_out) - 1:
            w, b = _init_linear(next(keys), co, co)
            p["downsample"].append(dict(w=w, b=b))
        else:
            p["downsample"].append(None)
    mid = all_dims[-1]
    p["mid"] = [_init_crb(next(keys), mid, mid, cond_dim),
                _init_crb(next(keys), mid, mid, cond_dim)]
    p["up"] = [(_init_crb(next(keys), co * 2, ci, cond_dim),
                _init_crb(next(keys), ci, ci, cond_dim))
               for ci, co in reversed(in_out[1:])]
    start = DOWN_DIMS[0]
    p["final_w1"], p["final_b1"] = _init_linear(next(keys), start, start)
    p["final_gw"] = jnp.ones((start,), jnp.float32)
    p["final_gb"] = jnp.zeros((start,), jnp.float32)
    p["final_w2"], p["final_b2"] = _init_linear(next(keys), start, input_dim)
    return p


# ----------------------------- host-side parameter packing ----------------------
def _gn_pool(c):
    cg = c // N_GROUPS
    gid = jnp.arange(c, dtype=jnp.int32) // cg
    return (gid[:, None] == gid[None, :]).astype(jnp.float32) / cg


class _Slab:
    """Packs 2-D matrices vertically into one lane-dense (rows, LANES) slab."""

    def __init__(self, dtype):
        self.dtype = dtype
        self.chunks = []
        self.n = 0

    def add(self, mat):
        mat = jnp.asarray(mat, jnp.float32)
        if mat.ndim == 1:
            mat = mat[None, :]
        r, c = mat.shape
        assert c <= LANES
        off = self.n
        self.chunks.append(jnp.zeros((r, LANES), jnp.float32).at[:, :c].set(mat))
        self.n += r
        return off

    def build(self):
        rem = (-self.n) % 8
        if rem:
            self.chunks.append(jnp.zeros((rem, LANES), jnp.float32))
            self.n += rem
        return jnp.concatenate(self.chunks, axis=0).astype(self.dtype)


def pack_params(params, input_dim, global_cond_dim):
    cond_dim = DSED + global_cond_dim
    wsl = _Slab(jnp.bfloat16)     # matmul weights + GN pooling matrices
    vsl = _Slab(jnp.float32)      # biases / GN affine / sinusoid tables

    # GN pooling matrices P (variance matmul) and (I - P) for the mean pre-fusion.
    # Per-block offsets are recorded explicitly (no keying by channel count).
    pool_off, eye_minus_p = {}, {}
    for c in sorted(set(DOWN_DIMS)):
        p = _gn_pool(c)
        pool_off[c] = wsl.add(p)
        eye_minus_p[c] = jnp.eye(c, dtype=jnp.float32) - p

    # sinusoidal embedding tables: emb = sin(t*[f,f] + [0, pi/2])
    half = DSED // 2
    freqs = jnp.exp(-math.log(10000.0) / (half - 1)
                    * jnp.arange(half, dtype=jnp.float32))
    step = dict(
        freq_row=vsl.add(jnp.concatenate([freqs, freqs])),
        phase_row=vsl.add(jnp.concatenate([jnp.zeros((half,), jnp.float32),
                                           jnp.full((half,), jnp.pi / 2, jnp.float32)])),
        w1_off=wsl.add(params["step_w1"]), b1_row=vsl.add(params["step_b1"]),
        w2_off=wsl.add(params["step_w2"]), b2_row=vsl.add(params["step_b2"]))

    # CRBs in execution order
    crb_params = []
    for pair in params["down"]:
        crb_params.extend(pair)
    crb_params.extend(params["mid"])
    for pair in params["up"]:
        crb_params.extend(pair)

    # all FiLM cond encoders fused into one (cond_dim, sum(2*cout)) matrix (+ bias row)
    e_width = sum(2 * p["cout"] for p in crb_params)
    e_width_pad = ((e_width + LANES - 1) // LANES) * LANES
    wc_rows_pad = ((cond_dim + 1 + 7) // 8) * 8
    wc_all = jnp.zeros((wc_rows_pad, e_width_pad), jnp.float32)

    crb_layout, e_off = [], 0
    for p in crb_params:
        cout = p["cout"]
        imp = eye_minus_p[cout]
        w1d = p["w1"] @ imp                    # GN1 mean pre-fused conv1 weight
        b1d = p["b1"] @ imp
        has_res = p["wr"] is not None
        w1r = jnp.concatenate([w1d, p["wr"]], axis=1) if has_res else w1d
        b1r = jnp.concatenate([b1d, p["br"]]) if has_res else b1d
        crb_layout.append(dict(
            cout=cout, res_conv=has_res, p_off=pool_off[cout],
            w1r_off=wsl.add(w1r), b1r_row=vsl.add(b1r),
            g1_row=vsl.add(jnp.concatenate([p["g1w"], p["g1b"]])),
            w2_off=wsl.add(p["w2"] @ imp), b2_row=vsl.add(p["b2"] @ imp),
            g2_row=vsl.add(jnp.concatenate([p["g2w"], p["g2b"]])),
            e_off=e_off))
        wc_all = wc_all.at[:cond_dim, e_off:e_off + 2 * cout].set(p["wc"])
        wc_all = wc_all.at[cond_dim, e_off:e_off + 2 * cout].set(p["bc"])
        e_off += 2 * cout
    wc_slab = wc_all.astype(jnp.bfloat16)

    # Downsample1d centre taps (horizon == 1) for non-last down levels
    ds_layout = []
    for d in params["downsample"]:
        if d is None:
            ds_layout.append(None)
        else:
            ds_layout.append(dict(rows=d["w"].shape[0],
                                  w_off=wsl.add(d["w"]), b_row=vsl.add(d["b"])))

    # final_conv: Conv1dBlock(start,start) (mean pre-fused) + Conv1d(start,input_dim,1)
    start = DOWN_DIMS[0]
    imp = eye_minus_p[start]
    final = dict(
        cs=start, p_off=pool_off[start],
        w1_off=wsl.add(params["final_w1"] @ imp),
        misc_row=vsl.add(jnp.concatenate([params["final_b1"] @ imp,
                                          params["final_gw"], params["final_gb"]])),
        w2_off=wsl.add(params["final_w2"]),      # padded to 128 lanes (lane-dense out)
        b2_row=vsl.add(params["final_b2"]))

    layout = dict(
        c_in=input_dim, gc_dim=global_cond_dim, cond_dim=cond_dim, dsed=DSED,
        pv_col=0, nz_col=input_dim, gc_col=2 * input_dim,
        sig_col=2 * input_dim + global_cond_dim,
        t_col=2 * input_dim + global_cond_dim + 1,
        step=step, crbs=crb_layout, downsample=ds_layout, final=final,
        n_down=len(params["down"]), n_mid=len(params["mid"]), n_up=len(params["up"]))
    assert layout["t_col"] < LANES

    return (wsl.build(), wc_slab, vsl.build()), layout


# ----------------------------- fused kernel --------------------------------------
def make_kernel(layout):
    L = layout
    step, fin = L["step"], L["final"]

    def kernel(act_ref, w_ref, wc_ref, vb_ref, out_ref):
        def wmat(off, rows):                    # (rows, 128) bf16 weight tile
            return w_ref[pl.ds(off, rows), :]

        def vrow(r):                            # (1, 128) f32 bias / affine row
            return vb_ref[pl.ds(r, 1), :]

        def bdot(x, off, rows):                 # bf16 MXU push, f32 accumulate
            return jnp.dot(x.astype(jnp.bfloat16), wmat(off, rows),
                           preferred_element_type=jnp.float32)

        def gn_mish(d, p_off, cout, gamma, beta):
            # d is already mean-free (mean folded into the producing matmul),
            # so a GroupNorm costs exactly one MXU push (the variance).
            var = bdot(d * d, p_off, cout)[:, :cout]
            return _mish(d * jax.lax.rsqrt(var + GN_EPS) * gamma + beta)

        a = act_ref[...]                                              # (Nb, 128) f32
        ci = L["c_in"]
        # LMSDiscreteScheduler.add_noise: noisy = sample + noise * sigma[t]
        x = (a[:, L["pv_col"]:L["pv_col"] + ci]
             + a[:, L["nz_col"]:L["nz_col"] + ci]
             * a[:, L["sig_col"]:L["sig_col"] + 1])
        gc = a[:, L["gc_col"]:L["gc_col"] + L["gc_dim"]]
        t = a[:, L["t_col"]:L["t_col"] + 1]

        # --- SinusoidalPosEmb + diffusion_step_encoder MLP ----------------------
        dsed = L["dsed"]
        emb = jnp.sin(t * vrow(step["freq_row"])[:, :dsed]
                      + vrow(step["phase_row"])[:, :dsed])
        h = _mish(bdot(emb, step["w1_off"], dsed) + vrow(step["b1_row"]))
        step_feat = (bdot(h, step["w2_off"], 4 * dsed)[:, :dsed]
                     + vrow(step["b2_row"])[:, :dsed])

        # --- all 8 FiLM cond encodings in ONE batched matmul (off critical path) --
        # cond = concat([step_feat, global_cond]); mish hoisted, concat expressed
        # by splitting the fused Wc rows.
        e_all = (jnp.dot(_mish(step_feat).astype(jnp.bfloat16),
                         wc_ref[pl.ds(0, dsed), :],
                         preferred_element_type=jnp.float32)
                 + jnp.dot(_mish(gc).astype(jnp.bfloat16),
                           wc_ref[pl.ds(dsed, L["gc_dim"]), :],
                           preferred_element_type=jnp.float32)
                 + wc_ref[pl.ds(L["cond_dim"], 1), :].astype(jnp.float32))

        def crb(rec, x_parts):
            cout = rec["cout"]
            # conv1 (mean pre-fused) + residual 1x1 conv in one matmul y = x @ [W1D|Wr]
            y = vrow(rec["b1r_row"])
            roff = rec["w1r_off"]
            for xp in x_parts:
                k = xp.shape[-1]
                y = y + bdot(xp, roff, k)
                roff += k
            d1 = y[:, :cout]
            res = y[:, cout:2 * cout] if rec["res_conv"] else x_parts[0]
            g1 = vrow(rec["g1_row"])
            h = gn_mish(d1, rec["p_off"], cout, g1[:, :cout], g1[:, cout:2 * cout])
            e = e_all[:, rec["e_off"]:rec["e_off"] + 2 * cout]        # FiLM
            h = e[:, :cout] * h + e[:, cout:2 * cout]
            d2 = bdot(h, rec["w2_off"], cout)[:, :cout] + vrow(rec["b2_row"])[:, :cout]
            g2 = vrow(rec["g2_row"])
            h = gn_mish(d2, rec["p_off"], cout, g2[:, :cout], g2[:, cout:2 * cout])
            return h + res

        crbs = iter(L["crbs"])
        skips = []
        xp = [x]
        for lvl in range(L["n_down"]):
            xp = [crb(next(crbs), xp)]
            xp = [crb(next(crbs), xp)]
            skips.append(xp[0])          # level-0 skip is never consumed (as in ref)
            ds = L["downsample"][lvl]
            if ds is not None:
                # Downsample1d centre-tap matmul (only contributing tap at L == 1)
                xp = [bdot(xp[0], ds["w_off"], ds["rows"])[:, :ds["rows"]]
                      + vrow(ds["b_row"])[:, :ds["rows"]]]
        for _ in range(L["n_mid"]):
            xp = [crb(next(crbs), xp)]
        for _ in range(L["n_up"]):
            xp = [xp[0], skips.pop()]    # channel concat via W1R row split
            xp = [crb(next(crbs), xp)]
            xp = [crb(next(crbs), xp)]
            # TODO(synk): Upsample1d is Identity for this config (single up level);
            # a real ConvTranspose1d at horizon 1 would change the length and is
            # not modeled.
        xo = xp[0]

        # --- final_conv ----------------------------------------------------------
        cs = fin["cs"]
        frow = vrow(fin["misc_row"])                 # [b_f1D | gamma_f | beta_f]
        d = bdot(xo, fin["w1_off"], cs)[:, :cs] + frow[:, :cs]
        h = gn_mish(d, fin["p_off"], cs, frow[:, cs:2 * cs], frow[:, 2 * cs:3 * cs])
        # lane-dense (Nb, 128) store; real output lives in the first input_dim cols
        out_ref[...] = bdot(h, fin["w2_off"], cs) + vrow(fin["b2_row"])

    return kernel


# ----------------------------- model wrapper --------------------------------------
def _lms_sigmas():
    # LMSDiscreteScheduler, beta_schedule='scaled_linear'
    betas = jnp.linspace(SCHEDULER_BETA_START ** 0.5, SCHEDULER_BETA_END ** 0.5,
                         NUM_TRAIN_TIMESTEPS, dtype=jnp.float32) ** 2
    alphas_cumprod = jnp.cumprod(1.0 - betas)
    return jnp.sqrt((1.0 - alphas_cumprod) / alphas_cumprod)


def encode_policy(batch):
    b, s, ca = batch["action"].shape
    actions = batch["action"].reshape(b * s, ca)[:, None, :]       # (N, 1, Ca)
    # Faithful to the reference: actions[:, :3] / actions[:, -3:] slice the size-1
    # horizon dim, so the WHOLE action tensor is divided by MAX_LIN_VEL and then
    # by MAX_ANG_VEL (net /4). Kept as-is to preserve the module's semantics.
    actions = actions / MAX_LIN_VEL
    actions = actions / MAX_ANG_VEL
    paths = batch["path"].reshape(b * s, -1)[:, None, :] / MAX_POS
    return jnp.concatenate([actions, paths], axis=-1)              # (N, 1, Ca+Cp)


def _batch_blocks(n):
    # v7x has 2 TensorCores per chip: shard the batch over them. On single-TC
    # chips (v5e/v6e) a grid of 2 is just a serial loop, so keep grid=(1,).
    try:
        kind = jax.devices()[0].device_kind.lower()
    except Exception:
        return 1
    return 2 if ("v7" in kind and n % 16 == 0) else 1


def build_forward(params, input_dim, global_cond_dim):
    (w_slab, wc_slab, vb_slab), layout = pack_params(params, input_dim,
                                                     global_cond_dim)
    kernel = make_kernel(layout)
    nz_col, gc_col = layout["nz_col"], layout["gc_col"]
    sig_col, t_col = layout["sig_col"], layout["t_col"]

    def forward(batch, latent_state, rng):
        policy_vec = encode_policy(batch)                          # (N, 1, C)
        n, _, c = policy_vec.shape
        k_noise, k_t = jax.random.split(rng)
        # torch.randn / torch.randint replaced by deterministic jax.random draws
        noise = jax.random.normal(k_noise, policy_vec.shape, jnp.float32)
        timesteps = jax.random.randint(k_t, (n,), 0, NUM_TRAIN_TIMESTEPS)
        sigma = _lms_sigmas()[timesteps]

        # single lane-dense activation slab: [policy | noise | cond | sigma | t]
        act = jnp.zeros((n, LANES), jnp.float32)
        act = act.at[:, 0:c].set(policy_vec[:, 0, :])
        act = act.at[:, nz_col:nz_col + c].set(noise[:, 0, :])
        act = act.at[:, gc_col:gc_col + global_cond_dim].set(latent_state)
        act = act.at[:, sig_col].set(sigma)
        act = act.at[:, t_col].set(timesteps.astype(jnp.float32))

        g = _batch_blocks(n)
        nb = n // g
        out = pl.pallas_call(
            kernel,
            out_shape=jax.ShapeDtypeStruct((n, LANES), jnp.float32),
            grid=(g,),
            in_specs=[
                pl.BlockSpec((nb, LANES), lambda i: (i, 0)),       # activations
                pl.BlockSpec(w_slab.shape, lambda i: (0, 0)),      # weights (bf16)
                pl.BlockSpec(wc_slab.shape, lambda i: (0, 0)),     # fused FiLM (bf16)
                pl.BlockSpec(vb_slab.shape, lambda i: (0, 0)),     # biases (f32)
            ],
            out_specs=pl.BlockSpec((nb, LANES), lambda i: (i, 0)),
            compiler_params=pltpu.CompilerParams(
                dimension_semantics=("parallel",)),
        )(act, w_slab, wc_slab, vb_slab)

        noise_pred = out[:, :c][:, None, :]                        # (N, 1, input_dim)
        return {
            "action_noise": noise[:, :, :ACTION_N_CHANNELS],
            "action_noise_pred": noise_pred[:, :, :ACTION_N_CHANNELS],
            "path_noise": noise[:, :, -PATH_N_CHANNELS:],
            "path_noise_pred": noise_pred[:, :, -PATH_N_CHANNELS:],
        }

    return jax.jit(forward)


# ----------------------------- demo ----------------------------------------------
if __name__ == "__main__":
    key = jax.random.PRNGKey(0)
    kp, ka, kpath, kl, kr = jax.random.split(key, 5)

    input_dim = ACTION_N_CHANNELS + PATH_N_CHANNELS      # 16
    params = init_unet_params(kp, input_dim, LATENT_STATE_DIM)

    B, S = 2, 8                                          # N = 16 packed tokens
    batch = {
        "action": jax.random.normal(ka, (B, S, ACTION_N_CHANNELS), jnp.float32),
        "path": jax.random.normal(kpath, (B, S, PATH_N_CHANNELS), jnp.float32),
    }
    latent_state = jax.random.normal(kl, (B * S, LATENT_STATE_DIM), jnp.float32)

    fwd = build_forward(params, input_dim, LATENT_STATE_DIM)
    out = fwd(batch, latent_state, kr)
    jax.tree_util.tree_map(jax.block_until_ready, out)

    assert out["action_noise_pred"].shape == (B * S, 1, ACTION_N_CHANNELS)
    assert out["path_noise_pred"].shape == (B * S, 1, PATH_N_CHANNELS)
    assert out["action_noise"].shape == (B * S, 1, ACTION_N_CHANNELS)
    assert out["path_noise"].shape == (B * S, 1, PATH_N_CHANNELS)
    assert bool(jnp.all(jnp.isfinite(out["action_noise_pred"])))
    assert bool(jnp.all(jnp.isfinite(out["path_noise_pred"])))
    print("KERNEL_OK")
</pallas_src>

<mosaic_0001>
module attributes {stable_mosaic.version = 11 : i64} {
  func.func @kernel(%arg0: i32, %arg1: memref<16x128xf32, #tpu.memory_space<vmem>>, %arg2: memref<1168x128xbf16, #tpu.memory_space<vmem>>, %arg3: memref<72x768xbf16, #tpu.memory_space<vmem>>, %arg4: memref<40x128xf32, #tpu.memory_space<vmem>>, %arg5: memref<16x128xf32, #tpu.memory_space<vmem>>) attributes {dimension_semantics = [#tpu.dimension_semantics<parallel>], iteration_bounds = array<i64: 1>, scalar_prefetch = 0 : i64, scratch_operands = 0 : i64, tpu.core_type = #tpu.core_type<tc>, window_params = [{transform_indices = @transform_0, window_bounds = array<i64: 16, 128>}, {pipeline_mode = #tpu.pipeline_mode<synchronous>, transform_indices = @transform_1, window_bounds = array<i64: 1168, 128>}, {pipeline_mode = #tpu.pipeline_mode<synchronous>, transform_indices = @transform_2, window_bounds = array<i64: 72, 768>}, {pipeline_mode = #tpu.pipeline_mode<synchronous>, transform_indices = @transform_3, window_bounds = array<i64: 40, 128>}, {transform_indices = @transform_4, window_bounds = array<i64: 16, 128>}]} {
    %c0 = arith.constant 0 : index
    %c0_0 = arith.constant 0 : index
    %0 = vector.load %arg1[%c0, %c0_0] : memref<16x128xf32, #tpu.memory_space<vmem>>, vector<16x128xf32>
    %1 = vector.extract_strided_slice %0 {offsets = [0, 0], sizes = [16, 16], strides = [1, 1]} : vector<16x128xf32> to vector<16x16xf32>
    %2 = vector.extract_strided_slice %0 {offsets = [0, 16], sizes = [16, 16], strides = [1, 1]} : vector<16x128xf32> to vector<16x16xf32>
    %3 = vector.extract_strided_slice %0 {offsets = [0, 64], sizes = [16, 1], strides = [1, 1]} : vector<16x128xf32> to vector<16x1xf32>
    %4 = vector.broadcast %3 : vector<16x1xf32> to vector<16x16xf32>
    %5 = arith.mulf %2, %4 : vector<16x16xf32>
    %6 = arith.addf %1, %5 : vector<16x16xf32>
    %7 = vector.extract_strided_slice %0 {offsets = [0, 32], sizes = [16, 32], strides = [1, 1]} : vector<16x128xf32> to vector<16x32xf32>
    %8 = vector.extract_strided_slice %0 {offsets = [0, 65], sizes = [16, 1], strides = [1, 1]} : vector<16x128xf32> to vector<16x1xf32>
    %c0_1 = arith.constant 0 : index
    %c0_2 = arith.constant 0 : index
    %9 = vector.load %arg4[%c0_1, %c0_2] : memref<40x128xf32, #tpu.memory_space<vmem>>, vector<1x128xf32>
    %10 = vector.extract_strided_slice %9 {offsets = [0, 0], sizes = [1, 32], strides = [1, 1]} : vector<1x128xf32> to vector<1x32xf32>
    %11 = vector.broadcast %8 : vector<16x1xf32> to vector<16x32xf32>
    %12 = vector.broadcast %10 : vector<1x32xf32> to vector<16x32xf32>
    %13 = arith.mulf %11, %12 : vector<16x32xf32>
    %c1 = arith.constant 1 : index
    %c0_3 = arith.constant 0 : index
    %14 = vector.load %arg4[%c1, %c0_3] : memref<40x128xf32, #tpu.memory_space<vmem>>, vector<1x128xf32>
    %15 = vector.extract_strided_slice %14 {offsets = [0, 0], sizes = [1, 32], strides = [1, 1]} : vector<1x128xf32> to vector<1x32xf32>
    %16 = vector.broadcast %15 : vector<1x32xf32> to vector<16x32xf32>
    %17 = arith.addf %13, %16 : vector<16x32xf32>
    %18 = math.sin %17 : vector<16x32xf32>
    %19 = arith.truncf %18 : vector<16x32xf32> to vector<16x32xbf16>
    %c96 = arith.constant 96 : index
    %c0_4 = arith.constant 0 : index
    %20 = vector.load %arg2[%c96, %c0_4] : memref<1168x128xbf16, #tpu.memory_space<vmem>>, vector<32x128xbf16>
    %cst = arith.constant dense<0.000000e+00> : vector<16x128xf32>
    %21 = tpu.matmul %19, %20, %cst {dimension_numbers = #tpu.dot_dimension_numbers<[1], [0], [0], [1], [0, 0, 1, 1], [], []>} : vector<16x32xbf16>, vector<32x128xbf16>, vector<16x128xf32> -> vector<16x128xf32>
    %c2 = arith.constant 2 : index
    %c0_5 = arith.constant 0 : index
    %22 = vector.load %arg4[%c2, %c0_5] : memref<40x128xf32, #tpu.memory_space<vmem>>, vector<1x128xf32>
    %23 = vector.broadcast %22 : vector<1x128xf32> to vector<16x128xf32>
    %24 = arith.addf %21, %23 : vector<16x128xf32>
    %cst_6 = arith.constant 2.000000e+01 : f32
    %25 = vector.broadcast %cst_6 : f32 to vector<16x128xf32>
    %26 = arith.minimumf %24, %25 : vector<16x128xf32>
    %27 = math.exp %26 : vector<16x128xf32>
    %cst_7 = arith.constant 2.000000e+00 : f32
    %28 = vector.broadcast %cst_7 : f32 to vector<16x128xf32>
    %29 = arith.addf %27, %28 : vector<16x128xf32>
    %30 = arith.mulf %27, %29 : vector<16x128xf32>
    %31 = arith.mulf %24, %30 : vector<16x128xf32>
    %cst_8 = arith.constant 2.000000e+00 : f32
    %32 = vector.broadcast %cst_8 : f32 to vector<16x128xf32>
    %33 = arith.addf %30, %32 : vector<16x128xf32>
    %34 = tpu.reciprocal %33 {approx = true} : vector<16x128xf32> -> vector<16x128xf32>
    %35 = arith.mulf %31, %34 : vector<16x128xf32>
    %36 = arith.truncf %35 : vector<16x128xf32> to vector<16x128xbf16>
    %c128 = arith.constant 128 : index
    %c0_9 = arith.constant 0 : index
    %37 = vector.load %arg2[%c128, %c0_9] : memref<1168x128xbf16, #tpu.memory_space<vmem>>, vector<128x128xbf16>
    %cst_10 = arith.constant dense<0.000000e+00> : vector<16x128xf32>
    %38 = tpu.matmul %36, %37, %cst_10 {dimension_numbers = #tpu.dot_dimension_numbers<[1], [0], [0], [1], [0, 0, 1, 1], [], []>} : vector<16x128xbf16>, vector<128x128xbf16>, vector<16x128xf32> -> vector<16x128xf32>
    %39 = vector.extract_strided_slice %38 {offsets = [0, 0], sizes = [16, 32], strides = [1, 1]} : vector<16x128xf32> to vector<16x32xf32>
    %c3 = arith.constant 3 : index
    %c0_11 = arith.constant 0 : index
    %40 = vector.load %arg4[%c3, %c0_11] : memref<40x128xf32, #tpu.memory_space<vmem>>, vector<1x128xf32>
    %41 = vector.extract_strided_slice %40 {offsets = [0, 0], sizes = [1, 32], strides = [1, 1]} : vector<1x128xf32> to vector<1x32xf32>
    %42 = vector.broadcast %41 : vector<1x32xf32> to vector<16x32xf32>
    %43 = arith.addf %39, %42 : vector<16x32xf32>
    %cst_12 = arith.constant 2.000000e+01 : f32
    %44 = vector.broadcast %cst_12 : f32 to vector<16x32xf32>
    %45 = arith.minimumf %43, %44 : vector<16x32xf32>
    %46 = math.exp %45 : vector<16x32xf32>
    %cst_13 = arith.constant 2.000000e+00 : f32
    %47 = vector.broadcast %cst_13 : f32 to vector<16x32xf32>
    %48 = arith.addf %46, %47 : vector<16x32xf32>
    %49 = arith.mulf %46, %48 : vector<16x32xf32>
    %50 = arith.mulf %43, %49 : vector<16x32xf32>
    %cst_14 = arith.constant 2.000000e+00 : f32
    %51 = vector.broadcast %cst_14 : f32 to vector<16x32xf32>
    %52 = arith.addf %49, %51 : vector<16x32xf32>
    %53 = tpu.reciprocal %52 {approx = true} : vector<16x32xf32> -> vector<16x32xf32>
    %54 = arith.mulf %50, %53 : vector<16x32xf32>
    %55 = arith.truncf %54 : vector<16x32xf32> to vector<16x32xbf16>
    %c0_15 = arith.constant 0 : index
    %c0_16 = arith.constant 0 : index
    %56 = vector.load %arg3[%c0_15, %c0_16] : memref<72x768xbf16, #tpu.memory_space<vmem>>, vector<32x768xbf16>
    %cst_17 = arith.constant dense<0.000000e+00> : vector<16x768xf32>
    %57 = tpu.matmul %55, %56, %cst_17 {dimension_numbers = #tpu.dot_dimension_numbers<[1], [0], [0], [1], [0, 0, 1, 1], [], []>} : vector<16x32xbf16>, vector<32x768xbf16>, vector<16x768xf32> -> vector<16x768xf32>
    %cst_18 = arith.constant 2.000000e+01 : f32
    %58 = vector.broadcast %cst_18 : f32 to vector<16x32xf32>
    %59 = arith.minimumf %7, %58 : vector<16x32xf32>
    %60 = math.exp %59 : vector<16x32xf32>
    %cst_19 = arith.constant 2.000000e+00 : f32
    %61 = vector.broadcast %cst_19 : f32 to vector<16x32xf32>
    %62 = arith.addf %60, %61 : vector<16x32xf32>
    %63 = arith.mulf %60, %62 : vector<16x32xf32>
    %64 = arith.mulf %7, %63 : vector<16x32xf32>
    %cst_20 = arith.constant 2.000000e+00 : f32
    %65 = vector.broadcast %cst_20 : f32 to vector<16x32xf32>
    %66 = arith.addf %63, %65 : vector<16x32xf32>
    %67 = tpu.reciprocal %66 {approx = true} : vector<16x32xf32> -> vector<16x32xf32>
    %68 = arith.mulf %64, %67 : vector<16x32xf32>
    %69 = arith.truncf %68 : vector<16x32xf32> to vector<16x32xbf16>
    %c32 = arith.constant 32 : index
    %c0_21 = arith.constant 0 : index
    %70 = vector.load %arg3[%c32, %c0_21] : memref<72x768xbf16, #tpu.memory_space<vmem>>, vector<32x768xbf16>
    %cst_22 = arith.constant dense<0.000000e+00> : vector<16x768xf32>
    %71 = tpu.matmul %69, %70, %cst_22 {dimension_numbers = #tpu.dot_dimension_numbers<[1], [0], [0], [1], [0, 0, 1, 1], [], []>} : vector<16x32xbf16>, vector<32x768xbf16>, vector<16x768xf32> -> vector<16x768xf32>
    %72 = arith.addf %57, %71 : vector<16x768xf32>
    %c64 = arith.constant 64 : index
    %c0_23 = arith.constant 0 : index
    %73 = vector.load %arg3[%c64, %c0_23] : memref<72x768xbf16, #tpu.memory_space<vmem>>, vector<1x768xbf16>
    %74 = arith.extf %73 : vector<1x768xbf16> to vector<1x768xf32>
    %75 = vector.broadcast %74 : vector<1x768xf32> to vector<16x768xf32>
    %76 = arith.addf %72, %75 : vector<16x768xf32>
    %c4 = arith.constant 4 : index
    %c0_24 = arith.constant 0 : index
    %77 = vector.load %arg4[%c4, %c0_24] : memref<40x128xf32, #tpu.memory_space<vmem>>, vector<1x128xf32>
    %78 = arith.truncf %6 : vector<16x16xf32> to vector<16x16xbf16>
    %c256 = arith.constant 256 : index
    %c0_25 = arith.constant 0 : index
    %79 = vector.load %arg2[%c256, %c0_25] : memref<1168x128xbf16, #tpu.memory_space<vmem>>, vector<16x128xbf16>
    %cst_26 = arith.constant dense<0.000000e+00> : vector<16x128xf32>
    %80 = tpu.matmul %78, %79, %cst_26 {dimension_numbers = #tpu.dot_dimension_numbers<[1], [0], [0], [1], [0, 0, 1, 1], [], []>} : vector<16x16xbf16>, vector<16x128xbf16>, vector<16x128xf32> -> vector<16x128xf32>
    %81 = vector.broadcast %77 : vector<1x128xf32> to vector<16x128xf32>
    %82 = arith.addf %81, %80 : vector<16x128xf32>
    %83 = vector.extract_strided_slice %82 {offsets = [0, 0], sizes = [16, 32], strides = [1, 1]} : vector<16x128xf32> to vector<16x32xf32>
    %84 = vector.extract_strided_slice %82 {offsets = [0, 32], sizes = [16, 32], strides = [1, 1]} : vector<16x128xf32> to vector<16x32xf32>
    %c5 = arith.constant 5 : index
    %c0_27 = arith.constant 0 : index
    %85 = vector.load %arg4[%c5, %c0_27] : memref<40x128xf32, #tpu.memory_space<vmem>>, vector<1x128xf32>
    %86 = vector.extract_strided_slice %85 {offsets = [0, 0], sizes = [1, 32], strides = [1, 1]} : vector<1x128xf32> to vector<1x32xf32>
    %87 = vector.extract_strided_slice %85 {offsets = [0, 32], sizes = [1, 32], strides = [1, 1]} : vector<1x128xf32> to vector<1x32xf32>
    %88 = arith.mulf %83, %83 : vector<16x32xf32>
    %89 = arith.truncf %88 : vector<16x32xf32> to vector<16x32xbf16>
    %c0_28 = arith.constant 0 : index
    %c0_29 = arith.constant 0 : index
    %90 = vector.load %arg2[%c0_28, %c0_29] : memref<1168x128xbf16, #tpu.memory_space<vmem>>, vector<32x128xbf16>
    %cst_30 = arith.constant dense<0.000000e+00> : vector<16x128xf32>
    %91 = tpu.matmul %89, %90, %cst_30 {dimension_numbers = #tpu.dot_dimension_numbers<[1], [0], [0], [1], [0, 0, 1, 1], [], []>} : vector<16x32xbf16>, vector<32x128xbf16>, vector<16x128xf32> -> vector<16x128xf32>
    %92 = vector.extract_strided_slice %91 {offsets = [0, 0], sizes = [16, 32], strides = [1, 1]} : vector<16x128xf32> to vector<16x32xf32>
    %cst_31 = arith.constant 9.99999974E-6 : f32
    %93 = vector.broadcast %cst_31 : f32 to vector<16x32xf32>
    %94 = arith.addf %92, %93 : vector<16x32xf32>
    %95 = math.rsqrt %94 : vector<16x32xf32>
    %96 = arith.mulf %83, %95 : vector<16x32xf32>
    %97 = vector.broadcast %86 : vector<1x32xf32> to vector<16x32xf32>
    %98 = arith.mulf %96, %97 : vector<16x32xf32>
    %99 = vector.broadcast %87 : vector<1x32xf32> to vector<16x32xf32>
    %100 = arith.addf %98, %99 : vector<16x32xf32>
    %cst_32 = arith.constant 2.000000e+01 : f32
    %101 = vector.broadcast %cst_32 : f32 to vector<16x32xf32>
    %102 = arith.minimumf %100, %101 : vector<16x32xf32>
    %103 = math.exp %102 : vector<16x32xf32>
    %cst_33 = arith.constant 2.000000e+00 : f32
    %104 = vector.broadcast %cst_33 : f32 to vector<16x32xf32>
    %105 = arith.addf %103, %104 : vector<16x32xf32>
    %106 = arith.mulf %103, %105 : vector<16x32xf32>
    %107 = arith.mulf %100, %106 : vector<16x32xf32>
    %cst_34 = arith.constant 2.000000e+00 : f32
    %108 = vector.broadcast %cst_34 : f32 to vector<16x32xf32>
    %109 = arith.addf %106, %108 : vector<16x32xf32>
    %110 = tpu.reciprocal %109 {approx = true} : vector<16x32xf32> -> vector<16x32xf32>
    %111 = arith.mulf %107, %110 : vector<16x32xf32>
    %112 = vector.extract_strided_slice %76 {offsets = [0, 0], sizes = [16, 64], strides = [1, 1]} : vector<16x768xf32> to vector<16x64xf32>
    %113 = vector.extract_strided_slice %112 {offsets = [0, 0], sizes = [16, 32], strides = [1, 1]} : vector<16x64xf32> to vector<16x32xf32>
    %114 = arith.mulf %113, %111 : vector<16x32xf32>
    %115 = vector.extract_strided_slice %112 {offsets = [0, 32], sizes = [16, 32], strides = [1, 1]} : vector<16x64xf32> to vector<16x32xf32>
    %116 = arith.addf %114, %115 : vector<16x32xf32>
    %117 = arith.truncf %116 : vector<16x32xf32> to vector<16x32xbf16>
    %c272 = arith.constant 272 : index
    %c0_35 = arith.constant 0 : index
    %118 = vector.load %arg2[%c272, %c0_35] : memref<1168x128xbf16, #tpu.memory_space<vmem>>, vector<32x128xbf16>
    %cst_36 = arith.constant dense<0.000000e+00> : vector<16x128xf32>
    %119 = tpu.matmul %117, %118, %cst_36 {dimension_numbers = #tpu.dot_dimension_numbers<[1], [0], [0], [1], [0, 0, 1, 1], [], []>} : vector<16x32xbf16>, vector<32x128xbf16>, vector<16x128xf32> -> vector<16x128xf32>
    %120 = vector.extract_strided_slice %119 {offsets = [0, 0], sizes = [16, 32], strides = [1, 1]} : vector<16x128xf32> to vector<16x32xf32>
    %c6 = arith.constant 6 : index
    %c0_37 = arith.constant 0 : index
    %121 = vector.load %arg4[%c6, %c0_37] : memref<40x128xf32, #tpu.memory_space<vmem>>, vector<1x128xf32>
    %122 = vector.extract_strided_slice %121 {offsets = [0, 0], sizes = [1, 32], strides = [1, 1]} : vector<1x128xf32> to vector<1x32xf32>
    %123 = vector.broadcast %122 : vector<1x32xf32> to vector<16x32xf32>
    %124 = arith.addf %120, %123 : vector<16x32xf32>
    %c7 = arith.constant 7 : index
    %c0_38 = arith.constant 0 : index
    %125 = vector.load %arg4[%c7, %c0_38] : memref<40x128xf32, #tpu.memory_space<vmem>>, vector<1x128xf32>
    %126 = vector.extract_strided_slice %125 {offsets = [0, 0], sizes = [1, 32], strides = [1, 1]} : vector<1x128xf32> to vector<1x32xf32>
    %127 = vector.extract_strided_slice %125 {offsets = [0, 32], sizes = [1, 32], strides = [1, 1]} : vector<1x128xf32> to vector<1x32xf32>
    %128 = arith.mulf %124, %124 : vector<16x32xf32>
    %129 = arith.truncf %128 : vector<16x32xf32> to vector<16x32xbf16>
    %c0_39 = arith.constant 0 : index
    %c0_40 = arith.constant 0 : index
    %130 = vector.load %arg2[%c0_39, %c0_40] : memref<1168x128xbf16, #tpu.memory_space<vmem>>, vector<32x128xbf16>
    %cst_41 = arith.constant dense<0.000000e+00> : vector<16x128xf32>
    %131 = tpu.matmul %129, %130, %cst_41 {dimension_numbers = #tpu.dot_dimension_numbers<[1], [0], [0], [1], [0, 0, 1, 1], [], []>} : vector<16x32xbf16>, vector<32x128xbf16>, vector<16x128xf32> -> vector<16x128xf32>
    %132 = vector.extract_strided_slice %131 {offsets = [0, 0], sizes = [16, 32], strides = [1, 1]} : vector<16x128xf32> to vector<16x32xf32>
    %cst_42 = arith.constant 9.99999974E-6 : f32
    %133 = vector.broadcast %cst_42 : f32 to vector<16x32xf32>
    %134 = arith.addf %132, %133 : vector<16x32xf32>
    %135 = math.rsqrt %134 : vector<16x32xf32>
    %136 = arith.mulf %124, %135 : vector<16x32xf32>
    %137 = vector.broadcast %126 : vector<1x32xf32> to vector<16x32xf32>
    %138 = arith.mulf %136, %137 : vector<16x32xf32>
    %139 = vector.broadcast %127 : vector<1x32xf32> to vector<16x32xf32>
    %140 = arith.addf %138, %139 : vector<16x32xf32>
    %cst_43 = arith.constant 2.000000e+01 : f32
    %141 = vector.broadcast %cst_43 : f32 to vector<16x32xf32>
    %142 = arith.minimumf %140, %141 : vector<16x32xf32>
    %143 = math.exp %142 : vector<16x32xf32>
    %cst_44 = arith.constant 2.000000e+00 : f32
    %144 = vector.broadcast %cst_44 : f32 to vector<16x32xf32>
    %145 = arith.addf %143, %144 : vector<16x32xf32>
    %146 = arith.mulf %143, %145 : vector<16x32xf32>
    %147 = arith.mulf %140, %146 : vector<16x32xf32>
    %cst_45 = arith.constant 2.000000e+00 : f32
    %148 = vector.broadcast %cst_45 : f32 to vector<16x32xf32>
    %149 = arith.addf %146, %148 : vector<16x32xf32>
    %150 = tpu.reciprocal %149 {approx = true} : vector<16x32xf32> -> vector<16x32xf32>
    %151 = arith.mulf %147, %150 : vector<16x32xf32>
    %152 = arith.addf %151, %84 : vector<16x32xf32>
    %c8 = arith.constant 8 : index
    %c0_46 = arith.constant 0 : index
    %153 = vector.load %arg4[%c8, %c0_46] : memref<40x128xf32, #tpu.memory_space<vmem>>, vector<1x128xf32>
    %154 = arith.truncf %152 : vector<16x32xf32> to vector<16x32xbf16>
    %c304 = arith.constant 304 : index
    %c0_47 = arith.constant 0 : index
    %155 = vector.load %arg2[%c304, %c0_47] : memref<1168x128xbf16, #tpu.memory_space<vmem>>, vector<32x128xbf16>
    %cst_48 = arith.constant dense<0.000000e+00> : vector<16x128xf32>
    %156 = tpu.matmul %154, %155, %cst_48 {dimension_numbers = #tpu.dot_dimension_numbers<[1], [0], [0], [1], [0, 0, 1, 1], [], []>} : vector<16x32xbf16>, vector<32x128xbf16>, vector<16x128xf32> -> vector<16x128xf32>
    %157 = vector.broadcast %153 : vector<1x128xf32> to vector<16x128xf32>
    %158 = arith.addf %157, %156 : vector<16x128xf32>
    %159 = vector.extract_strided_slice %158 {offsets = [0, 0], sizes = [16, 32], strides = [1, 1]} : vector<16x128xf32> to vector<16x32xf32>
    %c9 = arith.constant 9 : index
    %c0_49 = arith.constant 0 : index
    %160 = vector.load %arg4[%c9, %c0_49] : memref<40x128xf32, #tpu.memory_space<vmem>>, vector<1x128xf32>
    %161 = vector.extract_strided_slice %160 {offsets = [0, 0], sizes = [1, 32], strides = [1, 1]} : vector<1x128xf32> to vector<1x32xf32>
    %162 = vector.extract_strided_slice %160 {offsets = [0, 32], sizes = [1, 32], strides = [1, 1]} : vector<1x128xf32> to vector<1x32xf32>
    %163 = arith.mulf %159, %159 : vector<16x32xf32>
    %164 = arith.truncf %163 : vector<16x32xf32> to vector<16x32xbf16>
    %c0_50 = arith.constant 0 : index
    %c0_51 = arith.constant 0 : index
    %165 = vector.load %arg2[%c0_50, %c0_51] : memref<1168x128xbf16, #tpu.memory_space<vmem>>, vector<32x128xbf16>
    %cst_52 = arith.constant dense<0.000000e+00> : vector<16x128xf32>
    %166 = tpu.matmul %164, %165, %cst_52 {dimension_numbers = #tpu.dot_dimension_numbers<[1], [0], [0], [1], [0, 0, 1, 1], [], []>} : vector<16x32xbf16>, vector<32x128xbf16>, vector<16x128xf32> -> vector<16x128xf32>
    %167 = vector.extract_strided_slice %166 {offsets = [0, 0], sizes = [16, 32], strides = [1, 1]} : vector<16x128xf32> to vector<16x32xf32>
    %cst_53 = arith.constant 9.99999974E-6 : f32
    %168 = vector.broadcast %cst_53 : f32 to vector<16x32xf32>
    %169 = arith.addf %167, %168 : vector<16x32xf32>
    %170 = math.rsqrt %169 : vector<16x32xf32>
    %171 = arith.mulf %159, %170 : vector<16x32xf32>
    %172 = vector.broadcast %161 : vector<1x32xf32> to vector<16x32xf32>
    %173 = arith.mulf %171, %172 : vector<16x32xf32>
    %174 = vector.broadcast %162 : vector<1x32xf32> to vector<16x32xf32>
    %175 = arith.addf %173, %174 : vector<16x32xf32>
    %cst_54 = arith.constant 2.000000e+01 : f32
    %176 = vector.broadcast %cst_54 : f32 to vector<16x32xf32>
    %177 = arith.minimumf %175, %176 : vector<16x32xf32>
    %178 = math.exp %177 : vector<16x32xf32>
    %cst_55 = arith.constant 2.000000e+00 : f32
    %179 = vector.broadcast %cst_55 : f32 to vector<16x32xf32>
    %180 = arith.addf %178, %179 : vector<16x32xf32>
    %181 = arith.mulf %178, %180 : vector<16x32xf32>
    %182 = arith.mulf %175, %181 : vector<16x32xf32>
    %cst_56 = arith.constant 2.000000e+00 : f32
    %183 = vector.broadcast %cst_56 : f32 to vector<16x32xf32>
    %184 = arith.addf %181, %183 : vector<16x32xf32>
    %185 = tpu.reciprocal %184 {approx = true} : vector<16x32xf32> -> vector<16x32xf32>
    %186 = arith.mulf %182, %185 : vector<16x32xf32>
    %187 = vector.extract_strided_slice %76 {offsets = [0, 64], sizes = [16, 64], strides = [1, 1]} : vector<16x768xf32> to vector<16x64xf32>
    %188 = vector.extract_strided_slice %187 {offsets = [0, 0], sizes = [16, 32], strides = [1, 1]} : vector<16x64xf32> to vector<16x32xf32>
    %189 = arith.mulf %188, %186 : vector<16x32xf32>
    %190 = vector.extract_strided_slice %187 {offsets = [0, 32], sizes = [16, 32], strides = [1, 1]} : vector<16x64xf32> to vector<16x32xf32>
    %191 = arith.addf %189, %190 : vector<16x32xf32>
    %192 = arith.truncf %191 : vector<16x32xf32> to vector<16x32xbf16>
    %c336 = arith.constant 336 : index
    %c0_57 = arith.constant 0 : index
    %193 = vector.load %arg2[%c336, %c0_57] : memref<1168x128xbf16, #tpu.memory_space<vmem>>, vector<32x128xbf16>
    %cst_58 = arith.constant dense<0.000000e+00> : vector<16x128xf32>
    %194 = tpu.matmul %192, %193, %cst_58 {dimension_numbers = #tpu.dot_dimension_numbers<[1], [0], [0], [1], [0, 0, 1, 1], [], []>} : vector<16x32xbf16>, vector<32x128xbf16>, vector<16x128xf32> -> vector<16x128xf32>
    %195 = vector.extract_strided_slice %194 {offsets = [0, 0], sizes = [16, 32], strides = [1, 1]} : vector<16x128xf32> to vector<16x32xf32>
    %c10 = arith.constant 10 : index
    %c0_59 = arith.constant 0 : index
    %196 = vector.load %arg4[%c10, %c0_59] : memref<40x128xf32, #tpu.memory_space<vmem>>, vector<1x128xf32>
    %197 = vector.extract_strided_slice %196 {offsets = [0, 0], sizes = [1, 32], strides = [1, 1]} : vector<1x128xf32> to vector<1x32xf32>
    %198 = vector.broadcast %197 : vector<1x32xf32> to vector<16x32xf32>
    %199 = arith.addf %195, %198 : vector<16x32xf32>
    %c11 = arith.constant 11 : index
    %c0_60 = arith.constant 0 : index
    %200 = vector.load %arg4[%c11, %c0_60] : memref<40x128xf32, #tpu.memory_space<vmem>>, vector<1x128xf32>
    %201 = vector.extract_strided_slice %200 {offsets = [0, 0], sizes = [1, 32], strides = [1, 1]} : vector<1x128xf32> to vector<1x32xf32>
    %202 = vector.extract_strided_slice %200 {offsets = [0, 32], sizes = [1, 32], strides = [1, 1]} : vector<1x128xf32> to vector<1x32xf32>
    %203 = arith.mulf %199, %199 : vector<16x32xf32>
    %204 = arith.truncf %203 : vector<16x32xf32> to vector<16x32xbf16>
    %c0_61 = arith.constant 0 : index
    %c0_62 = arith.constant 0 : index
    %205 = vector.load %arg2[%c0_61, %c0_62] : memref<1168x128xbf16, #tpu.memory_space<vmem>>, vector<32x128xbf16>
    %cst_63 = arith.constant dense<0.000000e+00> : vector<16x128xf32>
    %206 = tpu.matmul %204, %205, %cst_63 {dimension_numbers = #tpu.dot_dimension_numbers<[1], [0], [0], [1], [0, 0, 1, 1], [], []>} : vector<16x32xbf16>, vector<32x128xbf16>, vector<16x128xf32> -> vector<16x128xf32>
    %207 = vector.extract_strided_slice %206 {offsets = [0, 0], sizes = [16, 32], strides = [1, 1]} : vector<16x128xf32> to vector<16x32xf32>
    %cst_64 = arith.constant 9.99999974E-6 : f32
    %208 = vector.broadcast %cst_64 : f32 to vector<16x32xf32>
    %209 = arith.addf %207, %208 : vector<16x32xf32>
    %210 = math.rsqrt %209 : vector<16x32xf32>
    %211 = arith.mulf %199, %210 : vector<16x32xf32>
    %212 = vector.broadcast %201 : vector<1x32xf32> to vector<16x32xf32>
    %213 = arith.mulf %211, %212 : vector<16x32xf32>
    %214 = vector.broadcast %202 : vector<1x32xf32> to vector<16x32xf32>
    %215 = arith.addf %213, %214 : vector<16x32xf32>
    %cst_65 = arith.constant 2.000000e+01 : f32
    %216 = vector.broadcast %cst_65 : f32 to vector<16x32xf32>
    %217 = arith.minimumf %215, %216 : vector<16x32xf32>
    %218 = math.exp %217 : vector<16x32xf32>
    %cst_66 = arith.constant 2.000000e+00 : f32
    %219 = vector.broadcast %cst_66 : f32 to vector<16x32xf32>
    %220 = arith.addf %218, %219 : vector<16x32xf32>
    %221 = arith.mulf %218, %220 : vector<16x32xf32>
    %222 = arith.mulf %215, %221 : vector<16x32xf32>
    %cst_67 = arith.constant 2.000000e+00 : f32
    %223 = vector.broadcast %cst_67 : f32 to vector<16x32xf32>
    %224 = arith.addf %221, %223 : vector<16x32xf32>
    %225 = tpu.reciprocal %224 {approx = true} : vector<16x32xf32> -> vector<16x32xf32>
    %226 = arith.mulf %222, %225 : vector<16x32xf32>
    %227 = arith.addf %226, %152 : vector<16x32xf32>
    %228 = arith.truncf %227 : vector<16x32xf32> to vector<16x32xbf16>
    %c1072 = arith.constant 1072 : index
    %c0_68 = arith.constant 0 : index
    %229 = vector.load %arg2[%c1072, %c0_68] : memref<1168x128xbf16, #tpu.memory_space<vmem>>, vector<32x128xbf16>
    %cst_69 = arith.constant dense<0.000000e+00> : vector<16x128xf32>
    %230 = tpu.matmul %228, %229, %cst_69 {dimension_numbers = #tpu.dot_dimension_numbers<[1], [0], [0], [1], [0, 0, 1, 1], [], []>} : vector<16x32xbf16>, vector<32x128xbf16>, vector<16x128xf32> -> vector<16x128xf32>
    %231 = vector.extract_strided_slice %230 {offsets = [0, 0], sizes = [16, 32], strides = [1, 1]} : vector<16x128xf32> to vector<16x32xf32>
    %c36 = arith.constant 36 : index
    %c0_70 = arith.constant 0 : index
    %232 = vector.load %arg4[%c36, %c0_70] : memref<40x128xf32, #tpu.memory_space<vmem>>, vector<1x128xf32>
    %233 = vector.extract_strided_slice %232 {offsets = [0, 0], sizes = [1, 32], strides = [1, 1]} : vector<1x128xf32> to vector<1x32xf32>
    %234 = vector.broadcast %233 : vector<1x32xf32> to vector<16x32xf32>
    %235 = arith.addf %231, %234 : vector<16x32xf32>
    %c12 = arith.constant 12 : index
    %c0_71 = arith.constant 0 : index
    %236 = vector.load %arg4[%c12, %c0_71] : memref<40x128xf32, #tpu.memory_space<vmem>>, vector<1x128xf32>
    %237 = arith.truncf %235 : vector<16x32xf32> to vector<16x32xbf16>
    %c368 = arith.constant 368 : index
    %c0_72 = arith.constant 0 : index
    %238 = vector.load %arg2[%c368, %c0_72] : memref<1168x128xbf16, #tpu.memory_space<vmem>>, vector<32x128xbf16>
    %cst_73 = arith.constant dense<0.000000e+00> : vector<16x128xf32>
    %239 = tpu.matmul %237, %238, %cst_73 {dimension_numbers = #tpu.dot_dimension_numbers<[1], [0], [0], [1], [0, 0, 1, 1], [], []>} : vector<16x32xbf16>, vector<32x128xbf16>, vector<16x128xf32> -> vector<16x128xf32>
    %240 = vector.broadcast %236 : vector<1x128xf32> to vector<16x128xf32>
    %241 = arith.addf %240, %239 : vector<16x128xf32>
    %242 = vector.extract_strided_slice %241 {offsets = [0, 0], sizes = [16, 64], strides = [1, 1]} : vector<16x128xf32> to vector<16x64xf32>
    %243 = vector.extract_strided_slice %241 {offsets = [0, 64], sizes = [16, 64], strides = [1, 1]} : vector<16x128xf32> to vector<16x64xf32>
    %c13 = arith.constant 13 : index
    %c0_74 = arith.constant 0 : index
    %244 = vector.load %arg4[%c13, %c0_74] : memref<40x128xf32, #tpu.memory_space<vmem>>, vector<1x128xf32>
    %245 = vector.extract_strided_slice %244 {offsets = [0, 0], sizes = [1, 64], strides = [1, 1]} : vector<1x128xf32> to vector<1x64xf32>
    %246 = vector.extract_strided_slice %244 {offsets = [0, 64], sizes = [1, 64], strides = [1, 1]} : vector<1x128xf32> to vector<1x64xf32>
    %247 = arith.mulf %242, %242 : vector<16x64xf32>
    %248 = arith.truncf %247 : vector<16x64xf32> to vector<16x64xbf16>
    %c32_75 = arith.constant 32 : index
    %c0_76 = arith.constant 0 : index
    %249 = vector.load %arg2[%c32_75, %c0_76] : memref<1168x128xbf16, #tpu.memory_space<vmem>>, vector<64x128xbf16>
    %cst_77 = arith.constant dense<0.000000e+00> : vector<16x128xf32>
    %250 = tpu.matmul %248, %249, %cst_77 {dimension_numbers = #tpu.dot_dimension_numbers<[1], [0], [0], [1], [0, 0, 1, 1], [], []>} : vector<16x64xbf16>, vector<64x128xbf16>, vector<16x128xf32> -> vector<16x128xf32>
    %251 = vector.extract_strided_slice %250 {offsets = [0, 0], sizes = [16, 64], strides = [1, 1]} : vector<16x128xf32> to vector<16x64xf32>
    %cst_78 = arith.constant 9.99999974E-6 : f32
    %252 = vector.broadcast %cst_78 : f32 to vector<16x64xf32>
    %253 = arith.addf %251, %252 : vector<16x64xf32>
    %254 = math.rsqrt %253 : vector<16x64xf32>
    %255 = arith.mulf %242, %254 : vector<16x64xf32>
    %256 = vector.broadcast %245 : vector<1x64xf32> to vector<16x64xf32>
    %257 = arith.mulf %255, %256 : vector<16x64xf32>
    %258 = vector.broadcast %246 : vector<1x64xf32> to vector<16x64xf32>
    %259 = arith.addf %257, %258 : vector<16x64xf32>
    %cst_79 = arith.constant 2.000000e+01 : f32
    %260 = vector.broadcast %cst_79 : f32 to vector<16x64xf32>
    %261 = arith.minimumf %259, %260 : vector<16x64xf32>
    %262 = math.exp %261 : vector<16x64xf32>
    %cst_80 = arith.constant 2.000000e+00 : f32
    %263 = vector.broadcast %cst_80 : f32 to vector<16x64xf32>
    %264 = arith.addf %262, %263 : vector<16x64xf32>
    %265 = arith.mulf %262, %264 : vector<16x64xf32>
    %266 = arith.mulf %259, %265 : vector<16x64xf32>
    %cst_81 = arith.constant 2.000000e+00 : f32
    %267 = vector.broadcast %cst_81 : f32 to vector<16x64xf32>
    %268 = arith.addf %265, %267 : vector<16x64xf32>
    %269 = tpu.reciprocal %268 {approx = true} : vector<16x64xf32> -> vector<16x64xf32>
    %270 = arith.mulf %266, %269 : vector<16x64xf32>
    %271 = vector.extract_strided_slice %76 {offsets = [0, 128], sizes = [16, 128], strides = [1, 1]} : vector<16x768xf32> to vector<16x128xf32>
    %272 = vector.extract_strided_slice %271 {offsets = [0, 0], sizes = [16, 64], strides = [1, 1]} : vector<16x128xf32> to vector<16x64xf32>
    %273 = arith.mulf %272, %270 : vector<16x64xf32>
    %274 = vector.extract_strided_slice %271 {offsets = [0, 64], sizes = [16, 64], strides = [1, 1]} : vector<16x128xf32> to vector<16x64xf32>
    %275 = arith.addf %273, %274 : vector<16x64xf32>
    %276 = arith.truncf %275 : vector<16x64xf32> to vector<16x64xbf16>
    %c400 = arith.constant 400 : index
    %c0_82 = arith.constant 0 : index
    %277 = vector.load %arg2[%c400, %c0_82] : memref<1168x128xbf16, #tpu.memory_space<vmem>>, vector<64x128xbf16>
    %cst_83 = arith.constant dense<0.000000e+00> : vector<16x128xf32>
    %278 = tpu.matmul %276, %277, %cst_83 {dimension_numbers = #tpu.dot_dimension_numbers<[1], [0], [0], [1], [0, 0, 1, 1], [], []>} : vector<16x64xbf16>, vector<64x128xbf16>, vector<16x128xf32> -> vector<16x128xf32>
    %279 = vector.extract_strided_slice %278 {offsets = [0, 0], sizes = [16, 64], strides = [1, 1]} : vector<16x128xf32> to vector<16x64xf32>
    %c14 = arith.constant 14 : index
    %c0_84 = arith.constant 0 : index
    %280 = vector.load %arg4[%c14, %c0_84] : memref<40x128xf32, #tpu.memory_space<vmem>>, vector<1x128xf32>
    %281 = vector.extract_strided_slice %280 {offsets = [0, 0], sizes = [1, 64], strides = [1, 1]} : vector<1x128xf32> to vector<1x64xf32>
    %282 = vector.broadcast %281 : vector<1x64xf32> to vector<16x64xf32>
    %283 = arith.addf %279, %282 : vector<16x64xf32>
    %c15 = arith.constant 15 : index
    %c0_85 = arith.constant 0 : index
    %284 = vector.load %arg4[%c15, %c0_85] : memref<40x128xf32, #tpu.memory_space<vmem>>, vector<1x128xf32>
    %285 = vector.extract_strided_slice %284 {offsets = [0, 0], sizes = [1, 64], strides = [1, 1]} : vector<1x128xf32> to vector<1x64xf32>
    %286 = vector.extract_strided_slice %284 {offsets = [0, 64], sizes = [1, 64], strides = [1, 1]} : vector<1x128xf32> to vector<1x64xf32>
    %287 = arith.mulf %283, %283 : vector<16x64xf32>
    %288 = arith.truncf %287 : vector<16x64xf32> to vector<16x64xbf16>
    %c32_86 = arith.constant 32 : index
    %c0_87 = arith.constant 0 : index
    %289 = vector.load %arg2[%c32_86, %c0_87] : memref<1168x128xbf16, #tpu.memory_space<vmem>>, vector<64x128xbf16>
    %cst_88 = arith.constant dense<0.000000e+00> : vector<16x128xf32>
    %290 = tpu.matmul %288, %289, %cst_88 {dimension_numbers = #tpu.dot_dimension_numbers<[1], [0], [0], [1], [0, 0, 1, 1], [], []>} : vector<16x64xbf16>, vector<64x128xbf16>, vector<16x128xf32> -> vector<16x128xf32>
    %291 = vector.extract_strided_slice %290 {offsets = [0, 0], sizes = [16, 64], strides = [1, 1]} : vector<16x128xf32> to vector<16x64xf32>
    %cst_89 = arith.constant 9.99999974E-6 : f32
    %292 = vector.broadcast %cst_89 : f32 to vector<16x64xf32>
    %293 = arith.addf %291, %292 : vector<16x64xf32>
    %294 = math.rsqrt %293 : vector<16x64xf32>
    %295 = arith.mulf %283, %294 : vector<16x64xf32>
    %296 = vector.broadcast %285 : vector<1x64xf32> to vector<16x64xf32>
    %297 = arith.mulf %295, %296 : vector<16x64xf32>
    %298 = vector.broadcast %286 : vector<1x64xf32> to vector<16x64xf32>
    %299 = arith.addf %297, %298 : vector<16x64xf32>
    %cst_90 = arith.constant 2.000000e+01 : f32
    %300 = vector.broadcast %cst_90 : f32 to vector<16x64xf32>
    %301 = arith.minimumf %299, %300 : vector<16x64xf32>
    %302 = math.exp %301 : vector<16x64xf32>
    %cst_91 = arith.constant 2.000000e+00 : f32
    %303 = vector.broadcast %cst_91 : f32 to vector<16x64xf32>
    %304 = arith.addf %302, %303 : vector<16x64xf32>
    %305 = arith.mulf %302, %304 : vector<16x64xf32>
    %306 = arith.mulf %299, %305 : vector<16x64xf32>
    %cst_92 = arith.constant 2.000000e+00 : f32
    %307 = vector.broadcast %cst_92 : f32 to vector<16x64xf32>
    %308 = arith.addf %305, %307 : vector<16x64xf32>
    %309 = tpu.reciprocal %308 {approx = true} : vector<16x64xf32> -> vector<16x64xf32>
    %310 = arith.mulf %306, %309 : vector<16x64xf32>
    %311 = arith.addf %310, %243 : vector<16x64xf32>
    %c16 = arith.constant 16 : index
    %c0_93 = arith.constant 0 : index
    %312 = vector.load %arg4[%c16, %c0_93] : memref<40x128xf32, #tpu.memory_space<vmem>>, vector<1x128xf32>
    %313 = arith.truncf %311 : vector<16x64xf32> to vector<16x64xbf16>
    %c464 = arith.constant 464 : index
    %c0_94 = arith.constant 0 : index
    %314 = vector.load %arg2[%c464, %c0_94] : memref<1168x128xbf16, #tpu.memory_space<vmem>>, vector<64x128xbf16>
    %cst_95 = arith.constant dense<0.000000e+00> : vector<16x128xf32>
    %315 = tpu.matmul %313, %314, %cst_95 {dimension_numbers = #tpu.dot_dimension_numbers<[1], [0], [0], [1], [0, 0, 1, 1], [], []>} : vector<16x64xbf16>, vector<64x128xbf16>, vector<16x128xf32> -> vector<16x128xf32>
    %316 = vector.broadcast %312 : vector<1x128xf32> to vector<16x128xf32>
    %317 = arith.addf %316, %315 : vector<16x128xf32>
    %318 = vector.extract_strided_slice %317 {offsets = [0, 0], sizes = [16, 64], strides = [1, 1]} : vector<16x128xf32> to vector<16x64xf32>
    %c17 = arith.constant 17 : index
    %c0_96 = arith.constant 0 : index
    %319 = vector.load %arg4[%c17, %c0_96] : memref<40x128xf32, #tpu.memory_space<vmem>>, vector<1x128xf32>
    %320 = vector.extract_strided_slice %319 {offsets = [0, 0], sizes = [1, 64], strides = [1, 1]} : vector<1x128xf32> to vector<1x64xf32>
    %321 = vector.extract_strided_slice %319 {offsets = [0, 64], sizes = [1, 64], strides = [1, 1]} : vector<1x128xf32> to vector<1x64xf32>
    %322 = arith.mulf %318, %318 : vector<16x64xf32>
    %323 = arith.truncf %322 : vector<16x64xf32> to vector<16x64xbf16>
    %c32_97 = arith.constant 32 : index
    %c0_98 = arith.constant 0 : index
    %324 = vector.load %arg2[%c32_97, %c0_98] : memref<1168x128xbf16, #tpu.memory_space<vmem>>, vector<64x128xbf16>
    %cst_99 = arith.constant dense<0.000000e+00> : vector<16x128xf32>
    %325 = tpu.matmul %323, %324, %cst_99 {dimension_numbers = #tpu.dot_dimension_numbers<[1], [0], [0], [1], [0, 0, 1, 1], [], []>} : vector<16x64xbf16>, vector<64x128xbf16>, vector<16x128xf32> -> vector<16x128xf32>
    %326 = vector.extract_strided_slice %325 {offsets = [0, 0], sizes = [16, 64], strides = [1, 1]} : vector<16x128xf32> to vector<16x64xf32>
    %cst_100 = arith.constant 9.99999974E-6 : f32
    %327 = vector.broadcast %cst_100 : f32 to vector<16x64xf32>
    %328 = arith.addf %326, %327 : vector<16x64xf32>
    %329 = math.rsqrt %328 : vector<16x64xf32>
    %330 = arith.mulf %318, %329 : vector<16x64xf32>
    %331 = vector.broadcast %320 : vector<1x64xf32> to vector<16x64xf32>
    %332 = arith.mulf %330, %331 : vector<16x64xf32>
    %333 = vector.broadcast %321 : vector<1x64xf32> to vector<16x64xf32>
    %334 = arith.addf %332, %333 : vector<16x64xf32>
    %cst_101 = arith.constant 2.000000e+01 : f32
    %335 = vector.broadcast %cst_101 : f32 to vector<16x64xf32>
    %336 = arith.minimumf %334, %335 : vector<16x64xf32>
    %337 = math.exp %336 : vector<16x64xf32>
    %cst_102 = arith.constant 2.000000e+00 : f32
    %338 = vector.broadcast %cst_102 : f32 to vector<16x64xf32>
    %339 = arith.addf %337, %338 : vector<16x64xf32>
    %340 = arith.mulf %337, %339 : vector<16x64xf32>
    %341 = arith.mulf %334, %340 : vector<16x64xf32>
    %cst_103 = arith.constant 2.000000e+00 : f32
    %342 = vector.broadcast %cst_103 : f32 to vector<16x64xf32>
    %343 = arith.addf %340, %342 : vector<16x64xf32>
    %344 = tpu.reciprocal %343 {approx = true} : vector<16x64xf32> -> vector<16x64xf32>
    %345 = arith.mulf %341, %344 : vector<16x64xf32>
    %346 = vector.extract_strided_slice %76 {offsets = [0, 256], sizes = [16, 128], strides = [1, 1]} : vector<16x768xf32> to vector<16x128xf32>
    %347 = vector.extract_strided_slice %346 {offsets = [0, 0], sizes = [16, 64], strides = [1, 1]} : vector<16x128xf32> to vector<16x64xf32>
    %348 = arith.mulf %347, %345 : vector<16x64xf32>
    %349 = vector.extract_strided_slice %346 {offsets = [0, 64], sizes = [16, 64], strides = [1, 1]} : vector<16x128xf32> to vector<16x64xf32>
    %350 = arith.addf %348, %349 : vector<16x64xf32>
    %351 = arith.truncf %350 : vector<16x64xf32> to vector<16x64xbf16>
    %c528 = arith.constant 528 : index
    %c0_104 = arith.constant 0 : index
    %352 = vector.load %arg2[%c528, %c0_104] : memref<1168x128xbf16, #tpu.memory_space<vmem>>, vector<64x128xbf16>
    %cst_105 = arith.constant dense<0.000000e+00> : vector<16x128xf32>
    %353 = tpu.matmul %351, %352, %cst_105 {dimension_numbers = #tpu.dot_dimension_numbers<[1], [0], [0], [1], [0, 0, 1, 1], [], []>} : vector<16x64xbf16>, vector<64x128xbf16>, vector<16x128xf32> -> vector<16x128xf32>
    %354 = vector.extract_strided_slice %353 {offsets = [0, 0], sizes = [16, 64], strides = [1, 1]} : vector<16x128xf32> to vector<16x64xf32>
    %c18 = arith.constant 18 : index
    %c0_106 = arith.constant 0 : index
    %355 = vector.load %arg4[%c18, %c0_106] : memref<40x128xf32, #tpu.memory_space<vmem>>, vector<1x128xf32>
    %356 = vector.extract_strided_slice %355 {offsets = [0, 0], sizes = [1, 64], strides = [1, 1]} : vector<1x128xf32> to vector<1x64xf32>
    %357 = vector.broadcast %356 : vector<1x64xf32> to vector<16x64xf32>
    %358 = arith.addf %354, %357 : vector<16x64xf32>
    %c19 = arith.constant 19 : index
    %c0_107 = arith.constant 0 : index
    %359 = vector.load %arg4[%c19, %c0_107] : memref<40x128xf32, #tpu.memory_space<vmem>>, vector<1x128xf32>
    %360 = vector.extract_strided_slice %359 {offsets = [0, 0], sizes = [1, 64], strides = [1, 1]} : vector<1x128xf32> to vector<1x64xf32>
    %361 = vector.extract_strided_slice %359 {offsets = [0, 64], sizes = [1, 64], strides = [1, 1]} : vector<1x128xf32> to vector<1x64xf32>
    %362 = arith.mulf %358, %358 : vector<16x64xf32>
    %363 = arith.truncf %362 : vector<16x64xf32> to vector<16x64xbf16>
    %c32_108 = arith.constant 32 : index
    %c0_109 = arith.constant 0 : index
    %364 = vector.load %arg2[%c32_108, %c0_109] : memref<1168x128xbf16, #tpu.memory_space<vmem>>, vector<64x128xbf16>
    %cst_110 = arith.constant dense<0.000000e+00> : vector<16x128xf32>
    %365 = tpu.matmul %363, %364, %cst_110 {dimension_numbers = #tpu.dot_dimension_numbers<[1], [0], [0], [1], [0, 0, 1, 1], [], []>} : vector<16x64xbf16>, vector<64x128xbf16>, vector<16x128xf32> -> vector<16x128xf32>
    %366 = vector.extract_strided_slice %365 {offsets = [0, 0], sizes = [16, 64], strides = [1, 1]} : vector<16x128xf32> to vector<16x64xf32>
    %cst_111 = arith.constant 9.99999974E-6 : f32
    %367 = vector.broadcast %cst_111 : f32 to vector<16x64xf32>
    %368 = arith.addf %366, %367 : vector<16x64xf32>
    %369 = math.rsqrt %368 : vector<16x64xf32>
    %370 = arith.mulf %358, %369 : vector<16x64xf32>
    %371 = vector.broadcast %360 : vector<1x64xf32> to vector<16x64xf32>
    %372 = arith.mulf %370, %371 : vector<16x64xf32>
    %373 = vector.broadcast %361 : vector<1x64xf32> to vector<16x64xf32>
    %374 = arith.addf %372, %373 : vector<16x64xf32>
    %cst_112 = arith.constant 2.000000e+01 : f32
    %375 = vector.broadcast %cst_112 : f32 to vector<16x64xf32>
    %376 = arith.minimumf %374, %375 : vector<16x64xf32>
    %377 = math.exp %376 : vector<16x64xf32>
    %cst_113 = arith.constant 2.000000e+00 : f32
    %378 = vector.broadcast %cst_113 : f32 to vector<16x64xf32>
    %379 = arith.addf %377, %378 : vector<16x64xf32>
    %380 = arith.mulf %377, %379 : vector<16x64xf32>
    %381 = arith.mulf %374, %380 : vector<16x64xf32>
    %cst_114 = arith.constant 2.000000e+00 : f32
    %382 = vector.broadcast %cst_114 : f32 to vector<16x64xf32>
    %383 = arith.addf %380, %382 : vector<16x64xf32>
    %384 = tpu.reciprocal %383 {approx = true} : vector<16x64xf32> -> vector<16x64xf32>
    %385 = arith.mulf %381, %384 : vector<16x64xf32>
    %386 = arith.addf %385, %311 : vector<16x64xf32>
    %c20 = arith.constant 20 : index
    %c0_115 = arith.constant 0 : index
    %387 = vector.load %arg4[%c20, %c0_115] : memref<40x128xf32, #tpu.memory_space<vmem>>, vector<1x128xf32>
    %388 = arith.truncf %386 : vector<16x64xf32> to vector<16x64xbf16>
    %c592 = arith.constant 592 : index
    %c0_116 = arith.constant 0 : index
    %389 = vector.load %arg2[%c592, %c0_116] : memref<1168x128xbf16, #tpu.memory_space<vmem>>, vector<64x128xbf16>
    %cst_117 = arith.constant dense<0.000000e+00> : vector<16x128xf32>
    %390 = tpu.matmul %388, %389, %cst_117 {dimension_numbers = #tpu.dot_dimension_numbers<[1], [0], [0], [1], [0, 0, 1, 1], [], []>} : vector<16x64xbf16>, vector<64x128xbf16>, vector<16x128xf32> -> vector<16x128xf32>
    %391 = vector.broadcast %387 : vector<1x128xf32> to vector<16x128xf32>
    %392 = arith.addf %391, %390 : vector<16x128xf32>
    %393 = vector.extract_strided_slice %392 {offsets = [0, 0], sizes = [16, 64], strides = [1, 1]} : vector<16x128xf32> to vector<16x64xf32>
    %c21 = arith.constant 21 : index
    %c0_118 = arith.constant 0 : index
    %394 = vector.load %arg4[%c21, %c0_118] : memref<40x128xf32, #tpu.memory_space<vmem>>, vector<1x128xf32>
    %395 = vector.extract_strided_slice %394 {offsets = [0, 0], sizes = [1, 64], strides = [1, 1]} : vector<1x128xf32> to vector<1x64xf32>
    %396 = vector.extract_strided_slice %394 {offsets = [0, 64], sizes = [1, 64], strides = [1, 1]} : vector<1x128xf32> to vector<1x64xf32>
    %397 = arith.mulf %393, %393 : vector<16x64xf32>
    %398 = arith.truncf %397 : vector<16x64xf32> to vector<16x64xbf16>
    %c32_119 = arith.constant 32 : index
    %c0_120 = arith.constant 0 : index
    %399 = vector.load %arg2[%c32_119, %c0_120] : memref<1168x128xbf16, #tpu.memory_space<vmem>>, vector<64x128xbf16>
    %cst_121 = arith.constant dense<0.000000e+00> : vector<16x128xf32>
    %400 = tpu.matmul %398, %399, %cst_121 {dimension_numbers = #tpu.dot_dimension_numbers<[1], [0], [0], [1], [0, 0, 1, 1], [], []>} : vector<16x64xbf16>, vector<64x128xbf16>, vector<16x128xf32> -> vector<16x128xf32>
    %401 = vector.extract_strided_slice %400 {offsets = [0, 0], sizes = [16, 64], strides = [1, 1]} : vector<16x128xf32> to vector<16x64xf32>
    %cst_122 = arith.constant 9.99999974E-6 : f32
    %402 = vector.broadcast %cst_122 : f32 to vector<16x64xf32>
    %403 = arith.addf %401, %402 : vector<16x64xf32>
    %404 = math.rsqrt %403 : vector<16x64xf32>
    %405 = arith.mulf %393, %404 : vector<16x64xf32>
    %406 = vector.broadcast %395 : vector<1x64xf32> to vector<16x64xf32>
    %407 = arith.mulf %405, %406 : vector<16x64xf32>
    %408 = vector.broadcast %396 : vector<1x64xf32> to vector<16x64xf32>
    %409 = arith.addf %407, %408 : vector<16x64xf32>
    %cst_123 = arith.constant 2.000000e+01 : f32
    %410 = vector.broadcast %cst_123 : f32 to vector<16x64xf32>
    %411 = arith.minimumf %409, %410 : vector<16x64xf32>
    %412 = math.exp %411 : vector<16x64xf32>
    %cst_124 = arith.constant 2.000000e+00 : f32
    %413 = vector.broadcast %cst_124 : f32 to vector<16x64xf32>
    %414 = arith.addf %412, %413 : vector<16x64xf32>
    %415 = arith.mulf %412, %414 : vector<16x64xf32>
    %416 = arith.mulf %409, %415 : vector<16x64xf32>
    %cst_125 = arith.constant 2.000000e+00 : f32
    %417 = vector.broadcast %cst_125 : f32 to vector<16x64xf32>
    %418 = arith.addf %415, %417 : vector<16x64xf32>
    %419 = tpu.reciprocal %418 {approx = true} : vector<16x64xf32> -> vector<16x64xf32>
    %420 = arith.mulf %416, %419 : vector<16x64xf32>
    %421 = vector.extract_strided_slice %76 {offsets = [0, 384], sizes = [16, 128], strides = [1, 1]} : vector<16x768xf32> to vector<16x128xf32>
    %422 = vector.extract_strided_slice %421 {offsets = [0, 0], sizes = [16, 64], strides = [1, 1]} : vector<16x128xf32> to vector<16x64xf32>
    %423 = arith.mulf %422, %420 : vector<16x64xf32>
    %424 = vector.extract_strided_slice %421 {offsets = [0, 64], sizes = [16, 64], strides = [1, 1]} : vector<16x128xf32> to vector<16x64xf32>
    %425 = arith.addf %423, %424 : vector<16x64xf32>
    %426 = arith.truncf %425 : vector<16x64xf32> to vector<16x64xbf16>
    %c656 = arith.constant 656 : index
    %c0_126 = arith.constant 0 : index
    %427 = vector.load %arg2[%c656, %c0_126] : memref<1168x128xbf16, #tpu.memory_space<vmem>>, vector<64x128xbf16>
    %cst_127 = arith.constant dense<0.000000e+00> : vector<16x128xf32>
    %428 = tpu.matmul %426, %427, %cst_127 {dimension_numbers = #tpu.dot_dimension_numbers<[1], [0], [0], [1], [0, 0, 1, 1], [], []>} : vector<16x64xbf16>, vector<64x128xbf16>, vector<16x128xf32> -> vector<16x128xf32>
    %429 = vector.extract_strided_slice %428 {offsets = [0, 0], sizes = [16, 64], strides = [1, 1]} : vector<16x128xf32> to vector<16x64xf32>
    %c22 = arith.constant 22 : index
    %c0_128 = arith.constant 0 : index
    %430 = vector.load %arg4[%c22, %c0_128] : memref<40x128xf32, #tpu.memory_space<vmem>>, vector<1x128xf32>
    %431 = vector.extract_strided_slice %430 {offsets = [0, 0], sizes = [1, 64], strides = [1, 1]} : vector<1x128xf32> to vector<1x64xf32>
    %432 = vector.broadcast %431 : vector<1x64xf32> to vector<16x64xf32>
    %433 = arith.addf %429, %432 : vector<16x64xf32>
    %c23 = arith.constant 23 : index
    %c0_129 = arith.constant 0 : index
    %434 = vector.load %arg4[%c23, %c0_129] : memref<40x128xf32, #tpu.memory_space<vmem>>, vector<1x128xf32>
    %435 = vector.extract_strided_slice %434 {offsets = [0, 0], sizes = [1, 64], strides = [1, 1]} : vector<1x128xf32> to vector<1x64xf32>
    %436 = vector.extract_strided_slice %434 {offsets = [0, 64], sizes = [1, 64], strides = [1, 1]} : vector<1x128xf32> to vector<1x64xf32>
    %437 = arith.mulf %433, %433 : vector<16x64xf32>
    %438 = arith.truncf %437 : vector<16x64xf32> to vector<16x64xbf16>
    %c32_130 = arith.constant 32 : index
    %c0_131 = arith.constant 0 : index
    %439 = vector.load %arg2[%c32_130, %c0_131] : memref<1168x128xbf16, #tpu.memory_space<vmem>>, vector<64x128xbf16>
    %cst_132 = arith.constant dense<0.000000e+00> : vector<16x128xf32>
    %440 = tpu.matmul %438, %439, %cst_132 {dimension_numbers = #tpu.dot_dimension_numbers<[1], [0], [0], [1], [0, 0, 1, 1], [], []>} : vector<16x64xbf16>, vector<64x128xbf16>, vector<16x128xf32> -> vector<16x128xf32>
    %441 = vector.extract_strided_slice %440 {offsets = [0, 0], sizes = [16, 64], strides = [1, 1]} : vector<16x128xf32> to vector<16x64xf32>
    %cst_133 = arith.constant 9.99999974E-6 : f32
    %442 = vector.broadcast %cst_133 : f32 to vector<16x64xf32>
    %443 = arith.addf %441, %442 : vector<16x64xf32>
    %444 = math.rsqrt %443 : vector<16x64xf32>
    %445 = arith.mulf %433, %444 : vector<16x64xf32>
    %446 = vector.broadcast %435 : vector<1x64xf32> to vector<16x64xf32>
    %447 = arith.mulf %445, %446 : vector<16x64xf32>
    %448 = vector.broadcast %436 : vector<1x64xf32> to vector<16x64xf32>
    %449 = arith.addf %447, %448 : vector<16x64xf32>
    %cst_134 = arith.constant 2.000000e+01 : f32
    %450 = vector.broadcast %cst_134 : f32 to vector<16x64xf32>
    %451 = arith.minimumf %449, %450 : vector<16x64xf32>
    %452 = math.exp %451 : vector<16x64xf32>
    %cst_135 = arith.constant 2.000000e+00 : f32
    %453 = vector.broadcast %cst_135 : f32 to vector<16x64xf32>
    %454 = arith.addf %452, %453 : vector<16x64xf32>
    %455 = arith.mulf %452, %454 : vector<16x64xf32>
    %456 = arith.mulf %449, %455 : vector<16x64xf32>
    %cst_136 = arith.constant 2.000000e+00 : f32
    %457 = vector.broadcast %cst_136 : f32 to vector<16x64xf32>
    %458 = arith.addf %455, %457 : vector<16x64xf32>
    %459 = tpu.reciprocal %458 {approx = true} : vector<16x64xf32> -> vector<16x64xf32>
    %460 = arith.mulf %456, %459 : vector<16x64xf32>
    %461 = arith.addf %460, %386 : vector<16x64xf32>
    %c24 = arith.constant 24 : index
    %c0_137 = arith.constant 0 : index
    %462 = vector.load %arg4[%c24, %c0_137] : memref<40x128xf32, #tpu.memory_space<vmem>>, vector<1x128xf32>
    %463 = arith.truncf %461 : vector<16x64xf32> to vector<16x64xbf16>
    %c720 = arith.constant 720 : index
    %c0_138 = arith.constant 0 : index
    %464 = vector.load %arg2[%c720, %c0_138] : memref<1168x128xbf16, #tpu.memory_space<vmem>>, vector<64x128xbf16>
    %cst_139 = arith.constant dense<0.000000e+00> : vector<16x128xf32>
    %465 = tpu.matmul %463, %464, %cst_139 {dimension_numbers = #tpu.dot_dimension_numbers<[1], [0], [0], [1], [0, 0, 1, 1], [], []>} : vector<16x64xbf16>, vector<64x128xbf16>, vector<16x128xf32> -> vector<16x128xf32>
    %466 = vector.broadcast %462 : vector<1x128xf32> to vector<16x128xf32>
    %467 = arith.addf %466, %465 : vector<16x128xf32>
    %468 = vector.extract_strided_slice %467 {offsets = [0, 0], sizes = [16, 64], strides = [1, 1]} : vector<16x128xf32> to vector<16x64xf32>
    %c25 = arith.constant 25 : index
    %c0_140 = arith.constant 0 : index
    %469 = vector.load %arg4[%c25, %c0_140] : memref<40x128xf32, #tpu.memory_space<vmem>>, vector<1x128xf32>
    %470 = vector.extract_strided_slice %469 {offsets = [0, 0], sizes = [1, 64], strides = [1, 1]} : vector<1x128xf32> to vector<1x64xf32>
    %471 = vector.extract_strided_slice %469 {offsets = [0, 64], sizes = [1, 64], strides = [1, 1]} : vector<1x128xf32> to vector<1x64xf32>
    %472 = arith.mulf %468, %468 : vector<16x64xf32>
    %473 = arith.truncf %472 : vector<16x64xf32> to vector<16x64xbf16>
    %c32_141 = arith.constant 32 : index
    %c0_142 = arith.constant 0 : index
    %474 = vector.load %arg2[%c32_141, %c0_142] : memref<1168x128xbf16, #tpu.memory_space<vmem>>, vector<64x128xbf16>
    %cst_143 = arith.constant dense<0.000000e+00> : vector<16x128xf32>
    %475 = tpu.matmul %473, %474, %cst_143 {dimension_numbers = #tpu.dot_dimension_numbers<[1], [0], [0], [1], [0, 0, 1, 1], [], []>} : vector<16x64xbf16>, vector<64x128xbf16>, vector<16x128xf32> -> vector<16x128xf32>
    %476 = vector.extract_strided_slice %475 {offsets = [0, 0], sizes = [16, 64], strides = [1, 1]} : vector<16x128xf32> to vector<16x64xf32>
    %cst_144 = arith.constant 9.99999974E-6 : f32
    %477 = vector.broadcast %cst_144 : f32 to vector<16x64xf32>
    %478 = arith.addf %476, %477 : vector<16x64xf32>
    %479 = math.rsqrt %478 : vector<16x64xf32>
    %480 = arith.mulf %468, %479 : vector<16x64xf32>
    %481 = vector.broadcast %470 : vector<1x64xf32> to vector<16x64xf32>
    %482 = arith.mulf %480, %481 : vector<16x64xf32>
    %483 = vector.broadcast %471 : vector<1x64xf32> to vector<16x64xf32>
    %484 = arith.addf %482, %483 : vector<16x64xf32>
    %cst_145 = arith.constant 2.000000e+01 : f32
    %485 = vector.broadcast %cst_145 : f32 to vector<16x64xf32>
    %486 = arith.minimumf %484, %485 : vector<16x64xf32>
    %487 = math.exp %486 : vector<16x64xf32>
    %cst_146 = arith.constant 2.000000e+00 : f32
    %488 = vector.broadcast %cst_146 : f32 to vector<16x64xf32>
    %489 = arith.addf %487, %488 : vector<16x64xf32>
    %490 = arith.mulf %487, %489 : vector<16x64xf32>
    %491 = arith.mulf %484, %490 : vector<16x64xf32>
    %cst_147 = arith.constant 2.000000e+00 : f32
    %492 = vector.broadcast %cst_147 : f32 to vector<16x64xf32>
    %493 = arith.addf %490, %492 : vector<16x64xf32>
    %494 = tpu.reciprocal %493 {approx = true} : vector<16x64xf32> -> vector<16x64xf32>
    %495 = arith.mulf %491, %494 : vector<16x64xf32>
    %496 = vector.extract_strided_slice %76 {offsets = [0, 512], sizes = [16, 128], strides = [1, 1]} : vector<16x768xf32> to vector<16x128xf32>
    %497 = vector.extract_strided_slice %496 {offsets = [0, 0], sizes = [16, 64], strides = [1, 1]} : vector<16x128xf32> to vector<16x64xf32>
    %498 = arith.mulf %497, %495 : vector<16x64xf32>
    %499 = vector.extract_strided_slice %496 {offsets = [0, 64], sizes = [16, 64], strides = [1, 1]} : vector<16x128xf32> to vector<16x64xf32>
    %500 = arith.addf %498, %499 : vector<16x64xf32>
    %501 = arith.truncf %500 : vector<16x64xf32> to vector<16x64xbf16>
    %c784 = arith.constant 784 : index
    %c0_148 = arith.constant 0 : index
    %502 = vector.load %arg2[%c784, %c0_148] : memref<1168x128xbf16, #tpu.memory_space<vmem>>, vector<64x128xbf16>
    %cst_149 = arith.constant dense<0.000000e+00> : vector<16x128xf32>
    %503 = tpu.matmul %501, %502, %cst_149 {dimension_numbers = #tpu.dot_dimension_numbers<[1], [0], [0], [1], [0, 0, 1, 1], [], []>} : vector<16x64xbf16>, vector<64x128xbf16>, vector<16x128xf32> -> vector<16x128xf32>
    %504 = vector.extract_strided_slice %503 {offsets = [0, 0], sizes = [16, 64], strides = [1, 1]} : vector<16x128xf32> to vector<16x64xf32>
    %c26 = arith.constant 26 : index
    %c0_150 = arith.constant 0 : index
    %505 = vector.load %arg4[%c26, %c0_150] : memref<40x128xf32, #tpu.memory_space<vmem>>, vector<1x128xf32>
    %506 = vector.extract_strided_slice %505 {offsets = [0, 0], sizes = [1, 64], strides = [1, 1]} : vector<1x128xf32> to vector<1x64xf32>
    %507 = vector.broadcast %506 : vector<1x64xf32> to vector<16x64xf32>
    %508 = arith.addf %504, %507 : vector<16x64xf32>
    %c27 = arith.constant 27 : index
    %c0_151 = arith.constant 0 : index
    %509 = vector.load %arg4[%c27, %c0_151] : memref<40x128xf32, #tpu.memory_space<vmem>>, vector<1x128xf32>
    %510 = vector.extract_strided_slice %509 {offsets = [0, 0], sizes = [1, 64], strides = [1, 1]} : vector<1x128xf32> to vector<1x64xf32>
    %511 = vector.extract_strided_slice %509 {offsets = [0, 64], sizes = [1, 64], strides = [1, 1]} : vector<1x128xf32> to vector<1x64xf32>
    %512 = arith.mulf %508, %508 : vector<16x64xf32>
    %513 = arith.truncf %512 : vector<16x64xf32> to vector<16x64xbf16>
    %c32_152 = arith.constant 32 : index
    %c0_153 = arith.constant 0 : index
    %514 = vector.load %arg2[%c32_152, %c0_153] : memref<1168x128xbf16, #tpu.memory_space<vmem>>, vector<64x128xbf16>
    %cst_154 = arith.constant dense<0.000000e+00> : vector<16x128xf32>
    %515 = tpu.matmul %513, %514, %cst_154 {dimension_numbers = #tpu.dot_dimension_numbers<[1], [0], [0], [1], [0, 0, 1, 1], [], []>} : vector<16x64xbf16>, vector<64x128xbf16>, vector<16x128xf32> -> vector<16x128xf32>
    %516 = vector.extract_strided_slice %515 {offsets = [0, 0], sizes = [16, 64], strides = [1, 1]} : vector<16x128xf32> to vector<16x64xf32>
    %cst_155 = arith.constant 9.99999974E-6 : f32
    %517 = vector.broadcast %cst_155 : f32 to vector<16x64xf32>
    %518 = arith.addf %516, %517 : vector<16x64xf32>
    %519 = math.rsqrt %518 : vector<16x64xf32>
    %520 = arith.mulf %508, %519 : vector<16x64xf32>
    %521 = vector.broadcast %510 : vector<1x64xf32> to vector<16x64xf32>
    %522 = arith.mulf %520, %521 : vector<16x64xf32>
    %523 = vector.broadcast %511 : vector<1x64xf32> to vector<16x64xf32>
    %524 = arith.addf %522, %523 : vector<16x64xf32>
    %cst_156 = arith.constant 2.000000e+01 : f32
    %525 = vector.broadcast %cst_156 : f32 to vector<16x64xf32>
    %526 = arith.minimumf %524, %525 : vector<16x64xf32>
    %527 = math.exp %526 : vector<16x64xf32>
    %cst_157 = arith.constant 2.000000e+00 : f32
    %528 = vector.broadcast %cst_157 : f32 to vector<16x64xf32>
    %529 = arith.addf %527, %528 : vector<16x64xf32>
    %530 = arith.mulf %527, %529 : vector<16x64xf32>
    %531 = arith.mulf %524, %530 : vector<16x64xf32>
    %cst_158 = arith.constant 2.000000e+00 : f32
    %532 = vector.broadcast %cst_158 : f32 to vector<16x64xf32>
    %533 = arith.addf %530, %532 : vector<16x64xf32>
    %534 = tpu.reciprocal %533 {approx = true} : vector<16x64xf32> -> vector<16x64xf32>
    %535 = arith.mulf %531, %534 : vector<16x64xf32>
    %536 = arith.addf %535, %461 : vector<16x64xf32>
    %c28 = arith.constant 28 : index
    %c0_159 = arith.constant 0 : index
    %537 = vector.load %arg4[%c28, %c0_159] : memref<40x128xf32, #tpu.memory_space<vmem>>, vector<1x128xf32>
    %538 = arith.truncf %536 : vector<16x64xf32> to vector<16x64xbf16>
    %c848 = arith.constant 848 : index
    %c0_160 = arith.constant 0 : index
    %539 = vector.load %arg2[%c848, %c0_160] : memref<1168x128xbf16, #tpu.memory_space<vmem>>, vector<64x128xbf16>
    %cst_161 = arith.constant dense<0.000000e+00> : vector<16x128xf32>
    %540 = tpu.matmul %538, %539, %cst_161 {dimension_numbers = #tpu.dot_dimension_numbers<[1], [0], [0], [1], [0, 0, 1, 1], [], []>} : vector<16x64xbf16>, vector<64x128xbf16>, vector<16x128xf32> -> vector<16x128xf32>
    %541 = vector.broadcast %537 : vector<1x128xf32> to vector<16x128xf32>
    %542 = arith.addf %541, %540 : vector<16x128xf32>
    %543 = arith.truncf %386 : vector<16x64xf32> to vector<16x64xbf16>
    %c912 = arith.constant 912 : index
    %c0_162 = arith.constant 0 : index
    %544 = vector.load %arg2[%c912, %c0_162] : memref<1168x128xbf16, #tpu.memory_space<vmem>>, vector<64x128xbf16>
    %cst_163 = arith.constant dense<0.000000e+00> : vector<16x128xf32>
    %545 = tpu.matmul %543, %544, %cst_163 {dimension_numbers = #tpu.dot_dimension_numbers<[1], [0], [0], [1], [0, 0, 1, 1], [], []>} : vector<16x64xbf16>, vector<64x128xbf16>, vector<16x128xf32> -> vector<16x128xf32>
    %546 = arith.addf %542, %545 : vector<16x128xf32>
    %547 = vector.extract_strided_slice %546 {offsets = [0, 0], sizes = [16, 32], strides = [1, 1]} : vector<16x128xf32> to vector<16x32xf32>
    %548 = vector.extract_strided_slice %546 {offsets = [0, 32], sizes = [16, 32], strides = [1, 1]} : vector<16x128xf32> to vector<16x32xf32>
    %c29 = arith.constant 29 : index
    %c0_164 = arith.constant 0 : index
    %549 = vector.load %arg4[%c29, %c0_164] : memref<40x128xf32, #tpu.memory_space<vmem>>, vector<1x128xf32>
    %550 = vector.extract_strided_slice %549 {offsets = [0, 0], sizes = [1, 32], strides = [1, 1]} : vector<1x128xf32> to vector<1x32xf32>
    %551 = vector.extract_strided_slice %549 {offsets = [0, 32], sizes = [1, 32], strides = [1, 1]} : vector<1x128xf32> to vector<1x32xf32>
    %552 = arith.mulf %547, %547 : vector<16x32xf32>
    %553 = arith.truncf %552 : vector<16x32xf32> to vector<16x32xbf16>
    %c0_165 = arith.constant 0 : index
    %c0_166 = arith.constant 0 : index
    %554 = vector.load %arg2[%c0_165, %c0_166] : memref<1168x128xbf16, #tpu.memory_space<vmem>>, vector<32x128xbf16>
    %cst_167 = arith.constant dense<0.000000e+00> : vector<16x128xf32>
    %555 = tpu.matmul %553, %554, %cst_167 {dimension_numbers = #tpu.dot_dimension_numbers<[1], [0], [0], [1], [0, 0, 1, 1], [], []>} : vector<16x32xbf16>, vector<32x128xbf16>, vector<16x128xf32> -> vector<16x128xf32>
    %556 = vector.extract_strided_slice %555 {offsets = [0, 0], sizes = [16, 32], strides = [1, 1]} : vector<16x128xf32> to vector<16x32xf32>
    %cst_168 = arith.constant 9.99999974E-6 : f32
    %557 = vector.broadcast %cst_168 : f32 to vector<16x32xf32>
    %558 = arith.addf %556, %557 : vector<16x32xf32>
    %559 = math.rsqrt %558 : vector<16x32xf32>
    %560 = arith.mulf %547, %559 : vector<16x32xf32>
    %561 = vector.broadcast %550 : vector<1x32xf32> to vector<16x32xf32>
    %562 = arith.mulf %560, %561 : vector<16x32xf32>
    %563 = vector.broadcast %551 : vector<1x32xf32> to vector<16x32xf32>
    %564 = arith.addf %562, %563 : vector<16x32xf32>
    %cst_169 = arith.constant 2.000000e+01 : f32
    %565 = vector.broadcast %cst_169 : f32 to vector<16x32xf32>
    %566 = arith.minimumf %564, %565 : vector<16x32xf32>
    %567 = math.exp %566 : vector<16x32xf32>
    %cst_170 = arith.constant 2.000000e+00 : f32
    %568 = vector.broadcast %cst_170 : f32 to vector<16x32xf32>
    %569 = arith.addf %567, %568 : vector<16x32xf32>
    %570 = arith.mulf %567, %569 : vector<16x32xf32>
    %571 = arith.mulf %564, %570 : vector<16x32xf32>
    %cst_171 = arith.constant 2.000000e+00 : f32
    %572 = vector.broadcast %cst_171 : f32 to vector<16x32xf32>
    %573 = arith.addf %570, %572 : vector<16x32xf32>
    %574 = tpu.reciprocal %573 {approx = true} : vector<16x32xf32> -> vector<16x32xf32>
    %575 = arith.mulf %571, %574 : vector<16x32xf32>
    %576 = vector.extract_strided_slice %76 {offsets = [0, 640], sizes = [16, 64], strides = [1, 1]} : vector<16x768xf32> to vector<16x64xf32>
    %577 = vector.extract_strided_slice %576 {offsets = [0, 0], sizes = [16, 32], strides = [1, 1]} : vector<16x64xf32> to vector<16x32xf32>
    %578 = arith.mulf %577, %575 : vector<16x32xf32>
    %579 = vector.extract_strided_slice %576 {offsets = [0, 32], sizes = [16, 32], strides = [1, 1]} : vector<16x64xf32> to vector<16x32xf32>
    %580 = arith.addf %578, %579 : vector<16x32xf32>
    %581 = arith.truncf %580 : vector<16x32xf32> to vector<16x32xbf16>
    %c976 = arith.constant 976 : index
    %c0_172 = arith.constant 0 : index
    %582 = vector.load %arg2[%c976, %c0_172] : memref<1168x128xbf16, #tpu.memory_space<vmem>>, vector<32x128xbf16>
    %cst_173 = arith.constant dense<0.000000e+00> : vector<16x128xf32>
    %583 = tpu.matmul %581, %582, %cst_173 {dimension_numbers = #tpu.dot_dimension_numbers<[1], [0], [0], [1], [0, 0, 1, 1], [], []>} : vector<16x32xbf16>, vector<32x128xbf16>, vector<16x128xf32> -> vector<16x128xf32>
    %584 = vector.extract_strided_slice %583 {offsets = [0, 0], sizes = [16, 32], strides = [1, 1]} : vector<16x128xf32> to vector<16x32xf32>
    %c30 = arith.constant 30 : index
    %c0_174 = arith.constant 0 : index
    %585 = vector.load %arg4[%c30, %c0_174] : memref<40x128xf32, #tpu.memory_space<vmem>>, vector<1x128xf32>
    %586 = vector.extract_strided_slice %585 {offsets = [0, 0], sizes = [1, 32], strides = [1, 1]} : vector<1x128xf32> to vector<1x32xf32>
    %587 = vector.broadcast %586 : vector<1x32xf32> to vector<16x32xf32>
    %588 = arith.addf %584, %587 : vector<16x32xf32>
    %c31 = arith.constant 31 : index
    %c0_175 = arith.constant 0 : index
    %589 = vector.load %arg4[%c31, %c0_175] : memref<40x128xf32, #tpu.memory_space<vmem>>, vector<1x128xf32>
    %590 = vector.extract_strided_slice %589 {offsets = [0, 0], sizes = [1, 32], strides = [1, 1]} : vector<1x128xf32> to vector<1x32xf32>
    %591 = vector.extract_strided_slice %589 {offsets = [0, 32], sizes = [1, 32], strides = [1, 1]} : vector<1x128xf32> to vector<1x32xf32>
    %592 = arith.mulf %588, %588 : vector<16x32xf32>
    %593 = arith.truncf %592 : vector<16x32xf32> to vector<16x32xbf16>
    %c0_176 = arith.constant 0 : index
    %c0_177 = arith.constant 0 : index
    %594 = vector.load %arg2[%c0_176, %c0_177] : memref<1168x128xbf16, #tpu.memory_space<vmem>>, vector<32x128xbf16>
    %cst_178 = arith.constant dense<0.000000e+00> : vector<16x128xf32>
    %595 = tpu.matmul %593, %594, %cst_178 {dimension_numbers = #tpu.dot_dimension_numbers<[1], [0], [0], [1], [0, 0, 1, 1], [], []>} : vector<16x32xbf16>, vector<32x128xbf16>, vector<16x128xf32> -> vector<16x128xf32>
    %596 = vector.extract_strided_slice %595 {offsets = [0, 0], sizes = [16, 32], strides = [1, 1]} : vector<16x128xf32> to vector<16x32xf32>
    %cst_179 = arith.constant 9.99999974E-6 : f32
    %597 = vector.broadcast %cst_179 : f32 to vector<16x32xf32>
    %598 = arith.addf %596, %597 : vector<16x32xf32>
    %599 = math.rsqrt %598 : vector<16x32xf32>
    %600 = arith.mulf %588, %599 : vector<16x32xf32>
    %601 = vector.broadcast %590 : vector<1x32xf32> to vector<16x32xf32>
    %602 = arith.mulf %600, %601 : vector<16x32xf32>
    %603 = vector.broadcast %591 : vector<1x32xf32> to vector<16x32xf32>
    %604 = arith.addf %602, %603 : vector<16x32xf32>
    %cst_180 = arith.constant 2.000000e+01 : f32
    %605 = vector.broadcast %cst_180 : f32 to vector<16x32xf32>
    %606 = arith.minimumf %604, %605 : vector<16x32xf32>
    %607 = math.exp %606 : vector<16x32xf32>
    %cst_181 = arith.constant 2.000000e+00 : f32
    %608 = vector.broadcast %cst_181 : f32 to vector<16x32xf32>
    %609 = arith.addf %607, %608 : vector<16x32xf32>
    %610 = arith.mulf %607, %609 : vector<16x32xf32>
    %611 = arith.mulf %604, %610 : vector<16x32xf32>
    %cst_182 = arith.constant 2.000000e+00 : f32
    %612 = vector.broadcast %cst_182 : f32 to vector<16x32xf32>
    %613 = arith.addf %610, %612 : vector<16x32xf32>
    %614 = tpu.reciprocal %613 {approx = true} : vector<16x32xf32> -> vector<16x32xf32>
    %615 = arith.mulf %611, %614 : vector<16x32xf32>
    %616 = arith.addf %615, %548 : vector<16x32xf32>
    %c32_183 = arith.constant 32 : index
    %c0_184 = arith.constant 0 : index
    %617 = vector.load %arg4[%c32_183, %c0_184] : memref<40x128xf32, #tpu.memory_space<vmem>>, vector<1x128xf32>
    %618 = arith.truncf %616 : vector<16x32xf32> to vector<16x32xbf16>
    %c1008 = arith.constant 1008 : index
    %c0_185 = arith.constant 0 : index
    %619 = vector.load %arg2[%c1008, %c0_185] : memref<1168x128xbf16, #tpu.memory_space<vmem>>, vector<32x128xbf16>
    %cst_186 = arith.constant dense<0.000000e+00> : vector<16x128xf32>
    %620 = tpu.matmul %618, %619, %cst_186 {dimension_numbers = #tpu.dot_dimension_numbers<[1], [0], [0], [1], [0, 0, 1, 1], [], []>} : vector<16x32xbf16>, vector<32x128xbf16>, vector<16x128xf32> -> vector<16x128xf32>
    %621 = vector.broadcast %617 : vector<1x128xf32> to vector<16x128xf32>
    %622 = arith.addf %621, %620 : vector<16x128xf32>
    %623 = vector.extract_strided_slice %622 {offsets = [0, 0], sizes = [16, 32], strides = [1, 1]} : vector<16x128xf32> to vector<16x32xf32>
    %c33 = arith.constant 33 : index
    %c0_187 = arith.constant 0 : index
    %624 = vector.load %arg4[%c33, %c0_187] : memref<40x128xf32, #tpu.memory_space<vmem>>, vector<1x128xf32>
    %625 = vector.extract_strided_slice %624 {offsets = [0, 0], sizes = [1, 32], strides = [1, 1]} : vector<1x128xf32> to vector<1x32xf32>
    %626 = vector.extract_strided_slice %624 {offsets = [0, 32], sizes = [1, 32], strides = [1, 1]} : vector<1x128xf32> to vector<1x32xf32>
    %627 = arith.mulf %623, %623 : vector<16x32xf32>
    %628 = arith.truncf %627 : vector<16x32xf32> to vector<16x32xbf16>
    %c0_188 = arith.constant 0 : index
    %c0_189 = arith.constant 0 : index
    %629 = vector.load %arg2[%c0_188, %c0_189] : memref<1168x128xbf16, #tpu.memory_space<vmem>>, vector<32x128xbf16>
    %cst_190 = arith.constant dense<0.000000e+00> : vector<16x128xf32>
    %630 = tpu.matmul %628, %629, %cst_190 {dimension_numbers = #tpu.dot_dimension_numbers<[1], [0], [0], [1], [0, 0, 1, 1], [], []>} : vector<16x32xbf16>, vector<32x128xbf16>, vector<16x128xf32> -> vector<16x128xf32>
    %631 = vector.extract_strided_slice %630 {offsets = [0, 0], sizes = [16, 32], strides = [1, 1]} : vector<16x128xf32> to vector<16x32xf32>
    %cst_191 = arith.constant 9.99999974E-6 : f32
    %632 = vector.broadcast %cst_191 : f32 to vector<16x32xf32>
    %633 = arith.addf %631, %632 : vector<16x32xf32>
    %634 = math.rsqrt %633 : vector<16x32xf32>
    %635 = arith.mulf %623, %634 : vector<16x32xf32>
    %636 = vector.broadcast %625 : vector<1x32xf32> to vector<16x32xf32>
    %637 = arith.mulf %635, %636 : vector<16x32xf32>
    %638 = vector.broadcast %626 : vector<1x32xf32> to vector<16x32xf32>
    %639 = arith.addf %637, %638 : vector<16x32xf32>
    %cst_192 = arith.constant 2.000000e+01 : f32
    %640 = vector.broadcast %cst_192 : f32 to vector<16x32xf32>
    %641 = arith.minimumf %639, %640 : vector<16x32xf32>
    %642 = math.exp %641 : vector<16x32xf32>
    %cst_193 = arith.constant 2.000000e+00 : f32
    %643 = vector.broadcast %cst_193 : f32 to vector<16x32xf32>
    %644 = arith.addf %642, %643 : vector<16x32xf32>
    %645 = arith.mulf %642, %644 : vector<16x32xf32>
    %646 = arith.mulf %639, %645 : vector<16x32xf32>
    %cst_194 = arith.constant 2.000000e+00 : f32
    %647 = vector.broadcast %cst_194 : f32 to vector<16x32xf32>
    %648 = arith.addf %645, %647 : vector<16x32xf32>
    %649 = tpu.reciprocal %648 {approx = true} : vector<16x32xf32> -> vector<16x32xf32>
    %650 = arith.mulf %646, %649 : vector<16x32xf32>
    %651 = vector.extract_strided_slice %76 {offsets = [0, 704], sizes = [16, 64], strides = [1, 1]} : vector<16x768xf32> to vector<16x64xf32>
    %652 = vector.extract_strided_slice %651 {offsets = [0, 0], sizes = [16, 32], strides = [1, 1]} : vector<16x64xf32> to vector<16x32xf32>
    %653 = arith.mulf %652, %650 : vector<16x32xf32>
    %654 = vector.extract_strided_slice %651 {offsets = [0, 32], sizes = [16, 32], strides = [1, 1]} : vector<16x64xf32> to vector<16x32xf32>
    %655 = arith.addf %653, %654 : vector<16x32xf32>
    %656 = arith.truncf %655 : vector<16x32xf32> to vector<16x32xbf16>
    %c1040 = arith.constant 1040 : index
    %c0_195 = arith.constant 0 : index
    %657 = vector.load %arg2[%c1040, %c0_195] : memref<1168x128xbf16, #tpu.memory_space<vmem>>, vector<32x128xbf16>
    %cst_196 = arith.constant dense<0.000000e+00> : vector<16x128xf32>
    %658 = tpu.matmul %656, %657, %cst_196 {dimension_numbers = #tpu.dot_dimension_numbers<[1], [0], [0], [1], [0, 0, 1, 1], [], []>} : vector<16x32xbf16>, vector<32x128xbf16>, vector<16x128xf32> -> vector<16x128xf32>
    %659 = vector.extract_strided_slice %658 {offsets = [0, 0], sizes = [16, 32], strides = [1, 1]} : vector<16x128xf32> to vector<16x32xf32>
    %c34 = arith.constant 34 : index
    %c0_197 = arith.constant 0 : index
    %660 = vector.load %arg4[%c34, %c0_197] : memref<40x128xf32, #tpu.memory_space<vmem>>, vector<1x128xf32>
    %661 = vector.extract_strided_slice %660 {offsets = [0, 0], sizes = [1, 32], strides = [1, 1]} : vector<1x128xf32> to vector<1x32xf32>
    %662 = vector.broadcast %661 : vector<1x32xf32> to vector<16x32xf32>
    %663 = arith.addf %659, %662 : vector<16x32xf32>
    %c35 = arith.constant 35 : index
    %c0_198 = arith.constant 0 : index
    %664 = vector.load %arg4[%c35, %c0_198] : memref<40x128xf32, #tpu.memory_space<vmem>>, vector<1x128xf32>
    %665 = vector.extract_strided_slice %664 {offsets = [0, 0], sizes = [1, 32], strides = [1, 1]} : vector<1x128xf32> to vector<1x32xf32>
    %666 = vector.extract_strided_slice %664 {offsets = [0, 32], sizes = [1, 32], strides = [1, 1]} : vector<1x128xf32> to vector<1x32xf32>
    %667 = arith.mulf %663, %663 : vector<16x32xf32>
    %668 = arith.truncf %667 : vector<16x32xf32> to vector<16x32xbf16>
    %c0_199 = arith.constant 0 : index
    %c0_200 = arith.constant 0 : index
    %669 = vector.load %arg2[%c0_199, %c0_200] : memref<1168x128xbf16, #tpu.memory_space<vmem>>, vector<32x128xbf16>
    %cst_201 = arith.constant dense<0.000000e+00> : vector<16x128xf32>
    %670 = tpu.matmul %668, %669, %cst_201 {dimension_numbers = #tpu.dot_dimension_numbers<[1], [0], [0], [1], [0, 0, 1, 1], [], []>} : vector<16x32xbf16>, vector<32x128xbf16>, vector<16x128xf32> -> vector<16x128xf32>
    %671 = vector.extract_strided_slice %670 {offsets = [0, 0], sizes = [16, 32], strides = [1, 1]} : vector<16x128xf32> to vector<16x32xf32>
    %cst_202 = arith.constant 9.99999974E-6 : f32
    %672 = vector.broadcast %cst_202 : f32 to vector<16x32xf32>
    %673 = arith.addf %671, %672 : vector<16x32xf32>
    %674 = math.rsqrt %673 : vector<16x32xf32>
    %675 = arith.mulf %663, %674 : vector<16x32xf32>
    %676 = vector.broadcast %665 : vector<1x32xf32> to vector<16x32xf32>
    %677 = arith.mulf %675, %676 : vector<16x32xf32>
    %678 = vector.broadcast %666 : vector<1x32xf32> to vector<16x32xf32>
    %679 = arith.addf %677, %678 : vector<16x32xf32>
    %cst_203 = arith.constant 2.000000e+01 : f32
    %680 = vector.broadcast %cst_203 : f32 to vector<16x32xf32>
    %681 = arith.minimumf %679, %680 : vector<16x32xf32>
    %682 = math.exp %681 : vector<16x32xf32>
    %cst_204 = arith.constant 2.000000e+00 : f32
    %683 = vector.broadcast %cst_204 : f32 to vector<16x32xf32>
    %684 = arith.addf %682, %683 : vector<16x32xf32>
    %685 = arith.mulf %682, %684 : vector<16x32xf32>
    %686 = arith.mulf %679, %685 : vector<16x32xf32>
    %cst_205 = arith.constant 2.000000e+00 : f32
    %687 = vector.broadcast %cst_205 : f32 to vector<16x32xf32>
    %688 = arith.addf %685, %687 : vector<16x32xf32>
    %689 = tpu.reciprocal %688 {approx = true} : vector<16x32xf32> -> vector<16x32xf32>
    %690 = arith.mulf %686, %689 : vector<16x32xf32>
    %691 = arith.addf %690, %616 : vector<16x32xf32>
    %c37 = arith.constant 37 : index
    %c0_206 = arith.constant 0 : index
    %692 = vector.load %arg4[%c37, %c0_206] : memref<40x128xf32, #tpu.memory_space<vmem>>, vector<1x128xf32>
    %693 = arith.truncf %691 : vector<16x32xf32> to vector<16x32xbf16>
    %c1104 = arith.constant 1104 : index
    %c0_207 = arith.constant 0 : index
    %694 = vector.load %arg2[%c1104, %c0_207] : memref<1168x128xbf16, #tpu.memory_space<vmem>>, vector<32x128xbf16>
    %cst_208 = arith.constant dense<0.000000e+00> : vector<16x128xf32>
    %695 = tpu.matmul %693, %694, %cst_208 {dimension_numbers = #tpu.dot_dimension_numbers<[1], [0], [0], [1], [0, 0, 1, 1], [], []>} : vector<16x32xbf16>, vector<32x128xbf16>, vector<16x128xf32> -> vector<16x128xf32>
    %696 = vector.extract_strided_slice %695 {offsets = [0, 0], sizes = [16, 32], strides = [1, 1]} : vector<16x128xf32> to vector<16x32xf32>
    %697 = vector.extract_strided_slice %692 {offsets = [0, 0], sizes = [1, 32], strides = [1, 1]} : vector<1x128xf32> to vector<1x32xf32>
    %698 = vector.broadcast %697 : vector<1x32xf32> to vector<16x32xf32>
    %699 = arith.addf %696, %698 : vector<16x32xf32>
    %700 = vector.extract_strided_slice %692 {offsets = [0, 32], sizes = [1, 32], strides = [1, 1]} : vector<1x128xf32> to vector<1x32xf32>
    %701 = vector.extract_strided_slice %692 {offsets = [0, 64], sizes = [1, 32], strides = [1, 1]} : vector<1x128xf32> to vector<1x32xf32>
    %702 = arith.mulf %699, %699 : vector<16x32xf32>
    %703 = arith.truncf %702 : vector<16x32xf32> to vector<16x32xbf16>
    %c0_209 = arith.constant 0 : index
    %c0_210 = arith.constant 0 : index
    %704 = vector.load %arg2[%c0_209, %c0_210] : memref<1168x128xbf16, #tpu.memory_space<vmem>>, vector<32x128xbf16>
    %cst_211 = arith.constant dense<0.000000e+00> : vector<16x128xf32>
    %705 = tpu.matmul %703, %704, %cst_211 {dimension_numbers = #tpu.dot_dimension_numbers<[1], [0], [0], [1], [0, 0, 1, 1], [], []>} : vector<16x32xbf16>, vector<32x128xbf16>, vector<16x128xf32> -> vector<16x128xf32>
    %706 = vector.extract_strided_slice %705 {offsets = [0, 0], sizes = [16, 32], strides = [1, 1]} : vector<16x128xf32> to vector<16x32xf32>
    %cst_212 = arith.constant 9.99999974E-6 : f32
    %707 = vector.broadcast %cst_212 : f32 to vector<16x32xf32>
    %708 = arith.addf %706, %707 : vector<16x32xf32>
    %709 = math.rsqrt %708 : vector<16x32xf32>
    %710 = arith.mulf %699, %709 : vector<16x32xf32>
    %711 = vector.broadcast %700 : vector<1x32xf32> to vector<16x32xf32>
    %712 = arith.mulf %710, %711 : vector<16x32xf32>
    %713 = vector.broadcast %701 : vector<1x32xf32> to vector<16x32xf32>
    %714 = arith.addf %712, %713 : vector<16x32xf32>
    %cst_213 = arith.constant 2.000000e+01 : f32
    %715 = vector.broadcast %cst_213 : f32 to vector<16x32xf32>
    %716 = arith.minimumf %714, %715 : vector<16x32xf32>
    %717 = math.exp %716 : vector<16x32xf32>
    %cst_214 = arith.constant 2.000000e+00 : f32
    %718 = vector.broadcast %cst_214 : f32 to vector<16x32xf32>
    %719 = arith.addf %717, %718 : vector<16x32xf32>
    %720 = arith.mulf %717, %719 : vector<16x32xf32>
    %721 = arith.mulf %714, %720 : vector<16x32xf32>
    %cst_215 = arith.constant 2.000000e+00 : f32
    %722 = vector.broadcast %cst_215 : f32 to vector<16x32xf32>
    %723 = arith.addf %720, %722 : vector<16x32xf32>
    %724 = tpu.reciprocal %723 {approx = true} : vector<16x32xf32> -> vector<16x32xf32>
    %725 = arith.mulf %721, %724 : vector<16x32xf32>
    %726 = arith.truncf %725 : vector<16x32xf32> to vector<16x32xbf16>
    %c1136 = arith.constant 1136 : index
    %c0_216 = arith.constant 0 : index
    %727 = vector.load %arg2[%c1136, %c0_216] : memref<1168x128xbf16, #tpu.memory_space<vmem>>, vector<32x128xbf16>
    %cst_217 = arith.constant dense<0.000000e+00> : vector<16x128xf32>
    %728 = tpu.matmul %726, %727, %cst_217 {dimension_numbers = #tpu.dot_dimension_numbers<[1], [0], [0], [1], [0, 0, 1, 1], [], []>} : vector<16x32xbf16>, vector<32x128xbf16>, vector<16x128xf32> -> vector<16x128xf32>
    %c38 = arith.constant 38 : index
    %c0_218 = arith.constant 0 : index
    %729 = vector.load %arg4[%c38, %c0_218] : memref<40x128xf32, #tpu.memory_space<vmem>>, vector<1x128xf32>
    %730 = vector.broadcast %729 : vector<1x128xf32> to vector<16x128xf32>
    %731 = arith.addf %728, %730 : vector<16x128xf32>
    %c0_219 = arith.constant 0 : index
    %c0_220 = arith.constant 0 : index
    %732 = vector.load %arg5[%c0_219, %c0_220] : memref<16x128xf32, #tpu.memory_space<vmem>>, vector<16x128xf32>
    tpu.vector_store %arg5[%c0_219, %c0_220], %731 {strides = array<i32>} : memref<16x128xf32, #tpu.memory_space<vmem>>, vector<16x128xf32>,
    return
  }
  func.func @transform_0(%arg0: i32) -> (i32, i32) {
    %c0_i32 = arith.constant 0 : i32
    %c0_i32_0 = arith.constant 0 : i32
    return %arg0, %c0_i32 : i32, i32
  }
  func.func @transform_1(%arg0: i32) -> (i32, i32) {
    %c0_i32 = arith.constant 0 : i32
    %c0_i32_0 = arith.constant 0 : i32
    %c0_i32_1 = arith.constant 0 : i32
    return %c0_i32, %c0_i32_0 : i32, i32
  }
  func.func @transform_2(%arg0: i32) -> (i32, i32) {
    %c0_i32 = arith.constant 0 : i32
    %c0_i32_0 = arith.constant 0 : i32
    %c0_i32_1 = arith.constant 0 : i32
    return %c0_i32, %c0_i32_0 : i32, i32
  }
  func.func @transform_3(%arg0: i32) -> (i32, i32) {
    %c0_i32 = arith.constant 0 : i32
    %c0_i32_0 = arith.constant 0 : i32
    %c0_i32_1 = arith.constant 0 : i32
    return %c0_i32, %c0_i32_0 : i32, i32
  }
  func.func @transform_4(%arg0: i32) -> (i32, i32) {
    %c0_i32 = arith.constant 0 : i32
    %c0_i32_0 = arith.constant 0 : i32
    return %arg0, %c0_i32 : i32, i32
  }
}

</mosaic_0001>

<llo_original>
// kernel: forward.1
$region0: #{forward.1}
  #allocation0 [shape = 'u32[]', space=smem, size = 0x4, offset = 0x4, fixed_abs, tag = 'smem constant byte address 0x4 - core index']
  #allocation1 [shape = 'u32[144,128]{1,0:T(1,128)}', space=vmem, size = 0x12000, scoped, tag = 'internal scratch']
  %s0 = inlined_call_operand.vmem [shape: f32[16,128], index: 0, kind: input, shape index: {}]
  %s1 = inlined_call_operand.vmem [shape: bf16[1168,128], index: 1, kind: input, shape index: {}]
  %s2 = inlined_call_operand.vmem [shape: bf16[72,768], index: 2, kind: input, shape index: {}]
  %s3 = inlined_call_operand.vmem [shape: f32[40,128], index: 3, kind: input, shape index: {}]
  %s4 = inlined_call_operand.vmem [shape: f32[16,128], index: 4, kind: output, shape index: {}]
  %s5 = sld [smem:[#allocation0]]
  $region26: #{forward.1} parent=0
    _
  %s7 = ssub.s32 1, %s5
  %s8 = scalar_select 0, %s7, %s5
  // Predicated region
  $region2: #{forward.1} parent=0 // pred_check
    _
  $region3: #{forward.1} parent=0 // pred_check_branch
    %10 = sbr.rel (0) target = $region5
  $region4: #{forward.1} parent=0 // pred_region
    _
  $region5: #{forward.1} parent=0 // pred_fallthru
    _
  // Predicated region
  $region6: #{forward.1} parent=0 // pred_check
    _
  $region7: #{forward.1} parent=0 // pred_check_branch
    %12 = sbr.rel (0) target = $region9
  $region8: #{forward.1} parent=0 // pred_region
    _
  $region9: #{forward.1} parent=0 // pred_fallthru
    _
  // Predicated region
  $region10: #{forward.1} parent=0 // pred_check
    _
  $region11: #{forward.1} parent=0 // pred_check_branch
    %14 = sbr.rel (0) target = $region13
  $region12: #{forward.1} parent=0 // pred_region
    _
  $region13: #{forward.1} parent=0 // pred_fallthru
    _
  // Predicated region
  $region14: #{forward.1} parent=0 // pred_check
    _
  $region15: #{forward.1} parent=0 // pred_check_branch
    %16 = sbr.rel (0) target = $region17
  $region16: #{forward.1} parent=0 // pred_region
    _
  $region17: #{forward.1} parent=0 // pred_fallthru
    _
  %v18 = vld [vmem:[%s0] sm:$0xff]
  %v19 = vld [vmem:[%s0 + $0x8] sm:$0xff]
  %21 = vset.pattern.permute.xlu0 64
  %22 = vperm.xlu0 %21, %v18
  %v23 = vpop.permute.xlu0 %22
  %26 = vset.pattern.permute.xlu0 64
  %27 = vperm.xlu0 %26, %v19
  %v28 = vpop.permute.xlu0 %27
  %v30 = vmul.f32 %v18, %v23
  %v31 = vmul.f32 %v19, %v28
  %34 = vrot.lane.b32.xlu0 %v30, 112
  %v35 = vpop.permute.xlu0 %34
  %36 = vrot.lane.b32.xlu0 %v31, 112
  %v37 = vpop.permute.xlu0 %36
  %v40 = vadd.f32 %v18, %v35
  %v41 = vadd.f32 %v19, %v37
  %v42 = vld [vmem:[%s3] sm:$0x1]
  %43 = vset.pattern.permute.xlu0 65
  %44 = vperm.xlu0 %43, %v18
  %v45 = vpop.permute.xlu0 %44
  %47 = vset.pattern.permute.xlu0 65
  %48 = vperm.xlu0 %47, %v19
  %v49 = vpop.permute.xlu0 %48
  %v51 = vlaneseq
  %v52 = vshrl.u32 %v51, 7
  %v53 = vsub.s32 0, %v52
  %v54 = vrot.slane %v42, %v53
  %v55 = vmul.f32 %v45, %v54
  %v56 = vmul.f32 %v49, %v54
  %v57 = vld [vmem:[%s3 + $0x1] sm:$0x1]
  %v58 = vlaneseq
  %v59 = vshrl.u32 %v58, 7
  %v60 = vsub.s32 0, %v59
  %v61 = vrot.slane %v57, %v60
  %v62 = vadd.f32 %v55, %v61
  %v63 = vadd.f32 %v56, %v61
  %v64 = vand.u32 2147483647, %v62
  %vm65 = vcmp.le.f32.partialorder %v64, 0.7853982
  %vm66 = vcmp.lt.s32.totalorder %v62, 0
  %v67 = vand.u32 %v62, 2139095040
  %v68 = vshrl.u32 %v67, 23
  %v69 = vsub.s32 %v68, 127
  %v70 = vand.u32 2147483647, %v62
  %v71 = vand.u32 %v70, 8388607
  %v72 = vor.u32 %v71, 8388608
  %v73 = vsub.s32 0, %v72
  %v74 = vadd.s32 %v69, 1
  %vm75 = vcmp.gt.s32.totalorder %v74, 0
  %v76 = vsel %vm75, %v74, 0
  %v77 = vshrl.u32 %v76, 5
  %v78 = vand.u32 %v76, 31
  %v79 = vsub.s32 32, %v78
  %v80 = vshrl.u32 683565275, %v79
  %v81 = vshll.u32 683565275, %v78
  %v82 = vshrl.u32 2475754826, %v79
  %v83 = vor.u32 %v81, %v82
  %v84 = vshll.u32 2475754826, %v78
  %v85 = vshrl.u32 2131351028, %v79
  %v86 = vor.u32 %v84, %v85
  %v87 = vshll.u32 2131351028, %v78
  %v88 = vshrl.u32 2102212464, %v79
  %v89 = vor.u32 %v87, %v88
  %v90 = vshll.u32 2102212464, %v78
  %v91 = vshrl.u32 920167782, %v79
  %v92 = vor.u32 %v90, %v91
  %v93 = vshll.u32 920167782, %v78
  %v94 = vshrl.u32 1326507024, %v79
  %v95 = vor.u32 %v93, %v94
  %vm96 = vcmp.lt.s32.totalorder %v77, 1
  %vm97 = vcmp.lt.s32.totalorder %v77, 2
  %vm98 = vcmp.lt.s32.totalorder %v77, 3
  %vm99 = vcmp.lt.s32.totalorder %v77, 4
  %v100 = vsel %vm96, %v80, %v83
  %v101 = vsel %vm99, %v89, 2102212464
  %v102 = vsel %vm98, %v86, %v101
  %v103 = vsel %vm97, %v100, %v102
  %v104 = vsel %vm96, %v83, %v86
  %v105 = vsel %vm99, %v92, 920167782
  %v106 = vsel %vm98, %v89, %v105
  %v107 = vsel %vm97, %v104, %v106
  %v108 = vsel %vm96, %v86, %v89
  %v109 = vsel %vm99, %v95, 1326507024
  %v110 = vsel %vm98, %v92, %v109
  %v111 = vsel %vm97, %v108, %v110
  %v112 = vshll.u32 %v72, 8
  %v113 = vmul.u32.u64.compose %v112, %v111
  %v114 = vextract.low.u32 %v113
  %v115 = vextract.high.u32 %v113
  %v116 = vmul.u32.u64.compose %v112, %v107
  %v117 = vextract.low.u32 %v116
  %v118 = vextract.high.u32 %v116
  %v119 = vmul.u32 %v112, %v103
  %v120 = vadd.s32 %v115, %v117
  %vm121 = vc.u32 %v115, %v117
  %v122 = vadd.s32 %v118, 1
  %v123 = vsel %vm121, %v122, %v118
  %v124 = vadd.s32 %v119, %v123
  %v125 = vadd.s32 %v124, 536870912
  %v126 = vshrl.u32 %v125, 30
  %v127 = vshll.u32 %v126, 30
  %v128 = vsub.s32 %v124, %v127
  %vm129 = vcmp.lt.s32.totalorder %v128, 0
  %v130 = vsub.s32 0, %v128
  %v131 = vsel %vm129, %v130, %v128
  %v132 = vclz %v131
  %v133 = vsub.s32 %v132, 2
  %vm134 = vcmp.gt.s32.totalorder 0, %v133
  %v135 = vsel %vm134, 0, %v133
  %v136 = vsub.s32 32, %v135
  %v137 = vshll.u32 %v128, %v135
  %v138 = vshrl.u32 %v120, %v136
  %v139 = vor.u32 %v137, %v138
  %v140 = vsub.s32 4294967266, %v135
  %v141 = vadd.s32 %v140, 127
  %v142 = vshll.u32 %v141, 23
  %v143 = vor.u32 4788187, %v142
  %v144 = vand.u32 2147483647, %v143
  %v146 = vcvt.s32.f32 %v139
  %v147 = vmul.f32 %v146, %v144
  %v148 = vxor.u32 %v147, 2147483648
  %v149 = vsel %vm66, %v148, %v147
  %v150 = vsub.s32 4, %v126
  %v151 = vsel %vm66, %v150, %v126
  %v152 = vsel %vm65, %v62, %v149
  %v153 = vsel %vm65, 0, %v151
  %v154 = vcosq.f32.pop %v152
  %v155 = vsinq.f32.pop %v152
  %vm156 = vweird.f32 %v62
  %v157 = vadd.s32 %v153, 3
  %v158 = vand.u32 %v157, 3
  %vm159 = vcmp.lt.s32.totalorder %v158, 2
  %vm160 = vcmp.eq.s32.totalorder %v158, 0
  %v161 = vxor.u32 %v155, 2147483648
  %v162 = vsel %vm160, %v154, %v161
  %vm163 = vcmp.eq.s32.totalorder %v158, 2
  %v164 = vxor.u32 %v154, 2147483648
  %v165 = vsel %vm163, %v164, %v155
  %v166 = vsel %vm159, %v162, %v165
  %v167 = vsel %vm156, nan, %v166
  %v168 = vand.u32 2147483647, %v63
  %vm169 = vcmp.le.f32.partialorder %v168, 0.7853982
  %vm170 = vcmp.lt.s32.totalorder %v63, 0
  %v171 = vand.u32 %v63, 2139095040
  %v172 = vshrl.u32 %v171, 23
  %v173 = vsub.s32 %v172, 127
  %v174 = vand.u32 2147483647, %v63
  %v175 = vand.u32 %v174, 8388607
  %v176 = vor.u32 %v175, 8388608
  %v177 = vsub.s32 0, %v176
  %v178 = vadd.s32 %v173, 1
  %vm179 = vcmp.gt.s32.totalorder %v178, 0
  %v180 = vsel %vm179, %v178, 0
  %v181 = vshrl.u32 %v180, 5
  %v182 = vand.u32 %v180, 31
  %v183 = vsub.s32 32, %v182
  %v184 = vshrl.u32 683565275, %v183
  %v185 = vshll.u32 683565275, %v182
  %v186 = vshrl.u32 2475754826, %v183
  %v187 = vor.u32 %v185, %v186
  %v188 = vshll.u32 2475754826, %v182
  %v189 = vshrl.u32 2131351028, %v183
  %v190 = vor.u32 %v188, %v189
  %v191 = vshll.u32 2131351028, %v182
  %v192 = vshrl.u32 2102212464, %v183
  %v193 = vor.u32 %v191, %v192
  %v194 = vshll.u32 2102212464, %v182
  %v195 = vshrl.u32 920167782, %v183
  %v196 = vor.u32 %v194, %v195
  %v197 = vshll.u32 920167782, %v182
  %v198 = vshrl.u32 1326507024, %v183
  %v199 = vor.u32 %v197, %v198
  %vm200 = vcmp.lt.s32.totalorder %v181, 1
  %vm201 = vcmp.lt.s32.totalorder %v181, 2
  %vm202 = vcmp.lt.s32.totalorder %v181, 3
  %vm203 = vcmp.lt.s32.totalorder %v181, 4
  %v204 = vsel %vm200, %v184, %v187
  %v205 = vsel %vm203, %v193, 2102212464
  %v206 = vsel %vm202, %v190, %v205
  %v207 = vsel %vm201, %v204, %v206
  %v208 = vsel %vm200, %v187, %v190
  %v209 = vsel %vm203, %v196, 920167782
  %v210 = vsel %vm202, %v193, %v209
  %v211 = vsel %vm201, %v208, %v210
  %v212 = vsel %vm200, %v190, %v193
  %v213 = vsel %vm203, %v199, 1326507024
  %v214 = vsel %vm202, %v196, %v213
  %v215 = vsel %vm201, %v212, %v214
  %v216 = vshll.u32 %v176, 8
  %v217 = vmul.u32.u64.compose %v216, %v215
  %v218 = vextract.low.u32 %v217
  %v219 = vextract.high.u32 %v217
  %v220 = vmul.u32.u64.compose %v216, %v211
  %v221 = vextract.low.u32 %v220
  %v222 = vextract.high.u32 %v220
  %v223 = vmul.u32 %v216, %v207
  %v224 = vadd.s32 %v219, %v221
  %vm225 = vc.u32 %v219, %v221
  %v226 = vadd.s32 %v222, 1
  %v227 = vsel %vm225, %v226, %v222
  %v228 = vadd.s32 %v223, %v227
  %v229 = vadd.s32 %v228, 536870912
  %v230 = vshrl.u32 %v229, 30
  %v231 = vshll.u32 %v230, 30
  %v232 = vsub.s32 %v228, %v231
  %vm233 = vcmp.lt.s32.totalorder %v232, 0
  %v234 = vsub.s32 0, %v232
  %v235 = vsel %vm233, %v234, %v232
  %v236 = vclz %v235
  %v237 = vsub.s32 %v236, 2
  %vm238 = vcmp.gt.s32.totalorder 0, %v237
  %v239 = vsel %vm238, 0, %v237
  %v240 = vsub.s32 32, %v239
  %v241 = vshll.u32 %v232, %v239
  %v242 = vshrl.u32 %v224, %v240
  %v243 = vor.u32 %v241, %v242
  %v244 = vsub.s32 4294967266, %v239
  %v245 = vadd.s32 %v244, 127
  %v246 = vshll.u32 %v245, 23
  %v247 = vor.u32 4788187, %v246
  %v248 = vand.u32 2147483647, %v247
  %v250 = vcvt.s32.f32 %v243
  %v251 = vmul.f32 %v250, %v248
  %v252 = vxor.u32 %v251, 2147483648
  %v253 = vsel %vm170, %v252, %v251
  %v254 = vsub.s32 4, %v230
  %v255 = vsel %vm170, %v254, %v230
  %v256 = vsel %vm169, %v63, %v253
  %v257 = vsel %vm169, 0, %v255
  %v258 = vcosq.f32.pop %v256
  %v259 = vsinq.f32.pop %v256
  %vm260 = vweird.f32 %v63
  %v261 = vadd.s32 %v257, 3
  %v262 = vand.u32 %v261, 3
  %vm263 = vcmp.lt.s32.totalorder %v262, 2
  %vm264 = vcmp.eq.s32.totalorder %v262, 0
  %v265 = vxor.u32 %v259, 2147483648
  %v266 = vsel %vm264, %v258, %v265
  %vm267 = vcmp.eq.s32.totalorder %v262, 2
  %v268 = vxor.u32 %v258, 2147483648
  %v269 = vsel %vm267, %v268, %v259
  %v270 = vsel %vm263, %v266, %v269
  %v271 = vsel %vm260, nan, %v270
  %v272 = vpack.c.bf16 %v271, %v167
  %v273 = vld [vmem:[%s1 + $0x30] sm:$0xf]
  %v274 = vld [vmem:[%s1 + $0x34] sm:$0xf]
  %v275 = vld [vmem:[%s1 + $0x38] sm:$0xf]
  %v276 = vld [vmem:[%s1 + $0x3c] sm:$0xf]
  %v277 = vld [vmem:[%s3 + $0x2] sm:$0x1]
  %v278 = vlaneseq
  %v279 = vshrl.u32 %v278, 7
  %v280 = vsub.s32 0, %v279
  %v281 = vrot.slane %v277, %v280
  %v286 = vunpack.c.l.b16 %v273
  %v287 = vunpack.c.l.b16 %v274
  %v288 = vunpack.c.l.b16 %v275
  %v289 = vunpack.c.l.b16 %v276
  %v290 = vpack.c.b16 %v287, %v286
  %v291 = vpack.c.b16 %v289, %v288
  %vm294 = vcmask 261120
  %v296 = vsel %vm294, %v272, 0
  %298 = vmatprep.subr.bf16.mxu0 0
  %299 = vmatpush1.bf16.msra.mxu0 %v290
  %300 = vmatprep.subr.bf16.mxu0 0
  %301 = vmatpush1.bf16.msra.mxu0 %v291
  %302 = vmatprep.subr.bf16.mxu0 0
  %303 = vmatpush1.bf16.msra.mxu0 0
  %304 = vmatprep.subr.bf16.mxu0 0
  %305 = vmatpush1.bf16.msra.mxu0 0
  %306 = vmatprep.subr.bf16.mxu0 0
  %307 = vmatpush1.bf16.msra.mxu0 0
  %308 = vmatprep.subr.bf16.mxu0 0
  %309 = vmatpush1.bf16.msra.mxu0 0
  %310 = vmatprep.subr.bf16.mxu0 0
  %311 = vmatpush1.bf16.msra.mxu0 0
  %312 = vmatprep.subr.bf16.mxu0 0
  %313 = vmatpush1.bf16.msra.mxu0 0
  %314 = vmatprep.subr.bf16.mxu0 0
  %315 = vmatpush1.bf16.msra.mxu0 0
  %316 = vmatprep.subr.bf16.mxu0 0
  %317 = vmatpush1.bf16.msra.mxu0 0
  %318 = vmatprep.subr.bf16.mxu0 0
  %319 = vmatpush1.bf16.msra.mxu0 0
  %320 = vmatprep.subr.bf16.mxu0 0
  %321 = vmatpush1.bf16.msra.mxu0 0
  %322 = vmatprep.subr.bf16.mxu0 0
  %323 = vmatpush1.bf16.msra.mxu0 0
  %324 = vmatprep.subr.bf16.mxu0 0
  %325 = vmatpush1.bf16.msra.mxu0 0
  %326 = vmatprep.subr.bf16.mxu0 0
  %327 = vmatpush1.bf16.msra.mxu0 0
  %328 = vmatprep.subr.bf16.mxu0 0
  %329 = vmatpush1.bf16.msra.mxu0 0
  %330 = vmatprep.mubr.bf16.mxu0 0
  %331 = vmatmul.mubr.bf16.gmra.mrb[0].mxu0 %v296
  %v332 = vpop.f32.mrb[0].mxu0
  %v333 = vadd.f32 %v281, %v332
  %v334 = vpop.f32.mrb[0].mxu0
  %v335 = vpop.f32.mrb[0].mxu0
  %v336 = vadd.f32 %v281, %v335
  %v337 = vpop.f32.mrb[0].mxu0
  %338 = vdwg.mxu0
  %v339 = vmin.f32 %v333, 20.0
  %v340 = vmin.f32 %v336, 20.0
  %v341 = vmul.f32 %v339, 1.442695
  %v342 = vpow.pop %v341
  %v343 = vmul.f32 %v340, 1.442695
  %v344 = vpow.pop %v343
  %v345 = vadd.f32 %v342, 2.0
  %v346 = vadd.f32 %v344, 2.0
  %v347 = vmul.f32 %v342, %v345
  %v348 = vmul.f32 %v344, %v346
  %v349 = vmul.f32 %v333, %v347
  %v350 = vmul.f32 %v336, %v348
  %v351 = vadd.f32 %v347, 2.0
  %v352 = vadd.f32 %v348, 2.0
  %v353 = vrcp.pop %v351
  %v354 = vrcp.pop %v352
  %v355 = vmul.f32 %v349, %v353
  %v356 = vmul.f32 %v350, %v354
  %v357 = vpack.c.bf16 %v356, %v355
  %v358 = vld [vmem:[%s1 + $0x40] sm:$0xf]
  %v359 = vld [vmem:[%s1 + $0x44] sm:$0xf]
  %v360 = vld [vmem:[%s1 + $0x48] sm:$0xf]
  %v361 = vld [vmem:[%s1 + $0x4c] sm:$0xf]
  %v362 = vld [vmem:[%s1 + $0x50] sm:$0xf]
  %v363 = vld [vmem:[%s1 + $0x54] sm:$0xf]
  %v364 = vld [vmem:[%s1 + $0x58] sm:$0xf]
  %v365 = vld [vmem:[%s1 + $0x5c] sm:$0xf]
  %v366 = vld [vmem:[%s1 + $0x60] sm:$0xf]
  %v367 = vld [vmem:[%s1 + $0x64] sm:$0xf]
  %v368 = vld [vmem:[%s1 + $0x68] sm:$0xf]
  %v369 = vld [vmem:[%s1 + $0x6c] sm:$0xf]
  %v370 = vld [vmem:[%s1 + $0x70] sm:$0xf]
  %v371 = vld [vmem:[%s1 + $0x74] sm:$0xf]
  %v372 = vld [vmem:[%s1 + $0x78] sm:$0xf]
  %v373 = vld [vmem:[%s1 + $0x7c] sm:$0xf]
  %v390 = vunpack.c.l.b16 %v358
  %v391 = vunpack.c.l.b16 %v359
  %v392 = vunpack.c.l.b16 %v360
  %v393 = vunpack.c.l.b16 %v361
  %v394 = vunpack.c.l.b16 %v362
  %v395 = vunpack.c.l.b16 %v363
  %v396 = vunpack.c.l.b16 %v364
  %v397 = vunpack.c.l.b16 %v365
  %v398 = vunpack.c.l.b16 %v366
  %v399 = vunpack.c.l.b16 %v367
  %v400 = vunpack.c.l.b16 %v368
  %v401 = vunpack.c.l.b16 %v369
  %v402 = vunpack.c.l.b16 %v370
  %v403 = vunpack.c.l.b16 %v371
  %v404 = vunpack.c.l.b16 %v372
  %v405 = vunpack.c.l.b16 %v373
  %v406 = vpack.c.b16 %v391, %v390
  %v407 = vpack.c.b16 %v393, %v392
  %v408 = vpack.c.b16 %v395, %v394
  %v409 = vpack.c.b16 %v397, %v396
  %v410 = vpack.c.b16 %v399, %v398
  %v411 = vpack.c.b16 %v401, %v400
  %v412 = vpack.c.b16 %v403, %v402
  %v413 = vpack.c.b16 %v405, %v404
  %422 = vmatprep.subr.bf16.mxu0 0
  %423 = vmatpush1.bf16.msra.mxu0 %v406
  %424 = vmatprep.subr.bf16.mxu0 0
  %425 = vmatpush1.bf16.msra.mxu0 %v407
  %426 = vmatprep.subr.bf16.mxu0 0
  %427 = vmatpush1.bf16.msra.mxu0 %v408
  %428 = vmatprep.subr.bf16.mxu0 0
  %429 = vmatpush1.bf16.msra.mxu0 %v409
  %430 = vmatprep.subr.bf16.mxu0 0
  %431 = vmatpush1.bf16.msra.mxu0 %v410
  %432 = vmatprep.subr.bf16.mxu0 0
  %433 = vmatpush1.bf16.msra.mxu0 %v411
  %434 = vmatprep.subr.bf16.mxu0 0
  %435 = vmatpush1.bf16.msra.mxu0 %v412
  %436 = vmatprep.subr.bf16.mxu0 0
  %437 = vmatpush1.bf16.msra.mxu0 %v413
  %438 = vmatprep.subr.bf16.mxu0 0
  %439 = vmatpush1.bf16.msra.mxu0 0
  %440 = vmatprep.subr.bf16.mxu0 0
  %441 = vmatpush1.bf16.msra.mxu0 0
  %442 = vmatprep.subr.bf16.mxu0 0
  %443 = vmatpush1.bf16.msra.mxu0 0
  %444 = vmatprep.subr.bf16.mxu0 0
  %445 = vmatpush1.bf16.msra.mxu0 0
  %446 = vmatprep.subr.bf16.mxu0 0
  %447 = vmatpush1.bf16.msra.mxu0 0
  %448 = vmatprep.subr.bf16.mxu0 0
  %449 = vmatpush1.bf16.msra.mxu0 0
  %450 = vmatprep.subr.bf16.mxu0 0
  %451 = vmatpush1.bf16.msra.mxu0 0
  %452 = vmatprep.subr.bf16.mxu0 0
  %453 = vmatpush1.bf16.msra.mxu0 0
  %454 = vmatprep.mubr.bf16.mxu0 0
  %455 = vmatmul.mubr.bf16.gmra.mrb[0].mxu0 %v357
  %v456 = vpop.f32.mrb[0].mxu0
  %v457 = vadd.f32 0.0, %v456
  %v458 = vpop.f32.mrb[0].mxu0
  %v459 = vpop.f32.mrb[0].mxu0
  %v460 = vadd.f32 0.0, %v459
  %v461 = vpop.f32.mrb[0].mxu0
  %462 = vdwg.mxu0
  %v463 = vld [vmem:[%s3 + $0x3] sm:$0x1]
  %v464 = vlaneseq
  %v465 = vshrl.u32 %v464, 7
  %v466 = vsub.s32 0, %v465
  %v467 = vrot.slane %v463, %v466
  %v468 = vadd.f32 %v457, %v467
  %v469 = vadd.f32 %v460, %v467
  %v470 = vmin.f32 %v468, 20.0
  %v471 = vmin.f32 %v469, 20.0
  %v472 = vmul.f32 %v470, 1.442695
  %v473 = vpow.pop %v472
  %v474 = vmul.f32 %v471, 1.442695
  %v475 = vpow.pop %v474
  %v476 = vadd.f32 %v473, 2.0
  %v477 = vadd.f32 %v475, 2.0
  %v478 = vmul.f32 %v473, %v476
  %v479 = vmul.f32 %v475, %v477
  %v480 = vmul.f32 %v468, %v478
  %v481 = vmul.f32 %v469, %v479
  %v482 = vadd.f32 %v478, 2.0
  %v483 = vadd.f32 %v479, 2.0
  %v484 = vrcp.pop %v482
  %v485 = vrcp.pop %v483
  %v486 = vmul.f32 %v480, %v484
  %v487 = vmul.f32 %v481, %v485
  %v488 = vpack.c.bf16 %v487, %v486
  %v489 = vld [vmem:[%s2] sm:$0xff]
  %v490 = vld [vmem:[%s2 + $0x8] sm:$0xff]
  %v491 = vld [vmem:[%s2 + $0x10] sm:$0xff]
  %v492 = vld [vmem:[%s2 + $0x18] sm:$0xff]
  %v493 = vld [vmem:[%s2 + $0x20] sm:$0xff]
  %v494 = vld [vmem:[%s2 + $0x28] sm:$0xff]
  %v495 = vld [vmem:[%s2 + $0x30] sm:$0xff]
  %v496 = vld [vmem:[%s2 + $0x38] sm:$0xff]
  %v497 = vld [vmem:[%s2 + $0x40] sm:$0xff]
  %v498 = vld [vmem:[%s2 + $0x48] sm:$0xff]
  %v499 = vld [vmem:[%s2 + $0x50] sm:$0xff]
  %v500 = vld [vmem:[%s2 + $0x58] sm:$0xff]
  %v501 = vmin.f32 %v18, 20.0
  %v502 = vmin.f32 %v19, 20.0
  %v503 = vmul.f32 %v501, 1.442695
  %v504 = vpow.pop %v503
  %v505 = vmul.f32 %v502, 1.442695
  %v506 = vpow.pop %v505
  %v507 = vadd.f32 %v504, 2.0
  %v508 = vadd.f32 %v506, 2.0
  %v509 = vmul.f32 %v504, %v507
  %v510 = vmul.f32 %v506, %v508
  %v511 = vmul.f32 %v18, %v509
  %v512 = vmul.f32 %v19, %v510
  %v513 = vadd.f32 %v509, 2.0
  %v514 = vadd.f32 %v510, 2.0
  %v515 = vrcp.pop %v513
  %v516 = vrcp.pop %v514
  %v517 = vmul.f32 %v511, %v515
  %v518 = vmul.f32 %v512, %v516
  %v519 = vpack.c.bf16 %v518, %v517
  %v520 = vld [vmem:[%s2 + $0x60] sm:$0xff]
  %v521 = vld [vmem:[%s2 + $0x68] sm:$0xff]
  %v522 = vld [vmem:[%s2 + $0x70] sm:$0xff]
  %v523 = vld [vmem:[%s2 + $0x78] sm:$0xff]
  %v524 = vld [vmem:[%s2 + $0x80] sm:$0xff]
  %v525 = vld [vmem:[%s2 + $0x88] sm:$0xff]
  %v526 = vld [vmem:[%s2 + $0x90] sm:$0xff]
  %v527 = vld [vmem:[%s2 + $0x98] sm:$0xff]
  %v528 = vld [vmem:[%s2 + $0xa0] sm:$0xff]
  %v529 = vld [vmem:[%s2 + $0xa8] sm:$0xff]
  %v530 = vld [vmem:[%s2 + $0xb0] sm:$0xff]
  %v531 = vld [vmem:[%s2 + $0xb8] sm:$0xff]
  %533 = vrot.lane.b32.xlu0 %v519, 96
  %v534 = vpop.permute.xlu0 %533
  %v547 = vunpack.c.l.b16 %v520
  %v548 = vunpack.c.h.b16 %v520
  %v549 = vunpack.c.l.b16 %v521
  %v550 = vunpack.c.h.b16 %v521
  %v551 = vunpack.c.l.b16 %v522
  %v552 = vunpack.c.h.b16 %v522
  %v553 = vunpack.c.l.b16 %v523
  %v554 = vunpack.c.h.b16 %v523
  %v555 = vunpack.c.l.b16 %v524
  %v556 = vunpack.c.h.b16 %v524
  %v557 = vunpack.c.l.b16 %v525
  %v558 = vunpack.c.h.b16 %v525
  %v559 = vunpack.c.l.b16 %v526
  %v560 = vunpack.c.h.b16 %v526
  %v561 = vunpack.c.l.b16 %v527
  %v562 = vunpack.c.h.b16 %v527
  %v563 = vunpack.c.l.b16 %v528
  %v564 = vunpack.c.h.b16 %v528
  %v565 = vunpack.c.l.b16 %v529
  %v566 = vunpack.c.h.b16 %v529
  %v567 = vunpack.c.l.b16 %v530
  %v568 = vunpack.c.h.b16 %v530
  %v569 = vunpack.c.l.b16 %v531
  %v570 = vunpack.c.h.b16 %v531
  %v571 = vpack.c.b16 %v553, %v547
  %v572 = vpack.c.b16 %v554, %v548
  %v573 = vpack.c.b16 %v555, %v549
  %v574 = vpack.c.b16 %v556, %v550
  %v575 = vpack.c.b16 %v557, %v551
  %v576 = vpack.c.b16 %v558, %v552
  %v577 = vpack.c.b16 %v565, %v559
  %v578 = vpack.c.b16 %v566, %v560
  %v579 = vpack.c.b16 %v567, %v561
  %v580 = vpack.c.b16 %v568, %v562
  %v581 = vpack.c.b16 %v569, %v563
  %v582 = vpack.c.b16 %v570, %v564
  %v596 = vsel %vm294, %v534, 0
  %598 = vmatprep.subr.bf16.mxu0 %v572
  %599 = vmatpush1.bf16.msra.mxu0 %v571
  %600 = vmatprep.subr.bf16.mxu0 %v578
  %601 = vmatpush1.bf16.msra.mxu0 %v577
  %602 = vmatprep.subr.bf16.mxu0 0
  %603 = vmatpush1.bf16.msra.mxu0 0
  %604 = vmatprep.subr.bf16.mxu0 0
  %605 = vmatpush1.bf16.msra.mxu0 0
  %606 = vmatprep.subr.bf16.mxu0 0
  %607 = vmatpush1.bf16.msra.mxu0 0
  %608 = vmatprep.subr.bf16.mxu0 0
  %609 = vmatpush1.bf16.msra.mxu0 0
  %610 = vmatprep.subr.bf16.mxu0 0
  %611 = vmatpush1.bf16.msra.mxu0 0
  %612 = vmatprep.subr.bf16.mxu0 0
  %613 = vmatpush1.bf16.msra.mxu0 0
  %614 = vmatprep.subr.bf16.mxu0 0
  %615 = vmatpush1.bf16.msra.mxu0 0
  %616 = vmatprep.subr.bf16.mxu0 0
  %617 = vmatpush1.bf16.msra.mxu0 0
  %618 = vmatprep.subr.bf16.mxu0 0
  %619 = vmatpush1.bf16.msra.mxu0 0
  %620 = vmatprep.subr.bf16.mxu0 0
  %621 = vmatpush1.bf16.msra.mxu0 0
  %622 = vmatprep.subr.bf16.mxu0 0
  %623 = vmatpush1.bf16.msra.mxu0 0
  %624 = vmatprep.subr.bf16.mxu0 0
  %625 = vmatpush1.bf16.msra.mxu0 0
  %626 = vmatprep.subr.bf16.mxu0 0
  %627 = vmatpush1.bf16.msra.mxu0 0
  %628 = vmatprep.subr.bf16.mxu0 0
  %629 = vmatpush1.bf16.msra.mxu0 0
  %630 = vmatprep.mubr.bf16.mxu0 0
  %631 = vmatmul.mubr.bf16.gmra.mrb[0].mxu0 %v596
  %v632 = vpop.f32.mrb[0].mxu0
  %v633 = vadd.f32 0.0, %v632
  %v634 = vpop.f32.mrb[0].mxu0
  %v635 = vadd.f32 0.0, %v634
  %v636 = vpop.f32.mrb[0].mxu0
  %v637 = vadd.f32 0.0, %v636
  %v638 = vpop.f32.mrb[0].mxu0
  %v639 = vadd.f32 0.0, %v638
  %640 = vdwg.mxu0
  %641 = vmatprep.subr.bf16.mxu0 %v574
  %642 = vmatpush1.bf16.msra.mxu0 %v573
  %643 = vmatprep.subr.bf16.mxu0 %v580
  %644 = vmatpush1.bf16.msra.mxu0 %v579
  %645 = vmatprep.subr.bf16.mxu0 0
  %646 = vmatpush1.bf16.msra.mxu0 0
  %647 = vmatprep.subr.bf16.mxu0 0
  %648 = vmatpush1.bf16.msra.mxu0 0
  %649 = vmatprep.subr.bf16.mxu0 0
  %650 = vmatpush1.bf16.msra.mxu0 0
  %651 = vmatprep.subr.bf16.mxu0 0
  %652 = vmatpush1.bf16.msra.mxu0 0
  %653 = vmatprep.subr.bf16.mxu0 0
  %654 = vmatpush1.bf16.msra.mxu0 0
  %655 = vmatprep.subr.bf16.mxu0 0
  %656 = vmatpush1.bf16.msra.mxu0 0
  %657 = vmatprep.subr.bf16.mxu0 0
  %658 = vmatpush1.bf16.msra.mxu0 0
  %659 = vmatprep.subr.bf16.mxu0 0
  %660 = vmatpush1.bf16.msra.mxu0 0
  %661 = vmatprep.subr.bf16.mxu0 0
  %662 = vmatpush1.bf16.msra.mxu0 0
  %663 = vmatprep.subr.bf16.mxu0 0
  %664 = vmatpush1.bf16.msra.mxu0 0
  %665 = vmatprep.subr.bf16.mxu0 0
  %666 = vmatpush1.bf16.msra.mxu0 0
  %667 = vmatprep.subr.bf16.mxu0 0
  %668 = vmatpush1.bf16.msra.mxu0 0
  %669 = vmatprep.subr.bf16.mxu0 0
  %670 = vmatpush1.bf16.msra.mxu0 0
  %671 = vmatprep.subr.bf16.mxu0 0
  %672 = vmatpush1.bf16.msra.mxu0 0
  %673 = vmatprep.mubr.bf16.mxu0 0
  %674 = vmatmul.mubr.bf16.gmra.mrb[0].mxu0 %v596
  %v675 = vpop.f32.mrb[0].mxu0
  %v676 = vadd.f32 0.0, %v675
  %v677 = vpop.f32.mrb[0].mxu0
  %v678 = vadd.f32 0.0, %v677
  %v679 = vpop.f32.mrb[0].mxu0
  %v680 = vadd.f32 0.0, %v679
  %v681 = vpop.f32.mrb[0].mxu0
  %v682 = vadd.f32 0.0, %v681
  %683 = vdwg.mxu0
  %684 = vmatprep.subr.bf16.mxu0 %v576
  %685 = vmatpush1.bf16.msra.mxu0 %v575
  %686 = vmatprep.subr.bf16.mxu0 %v582
  %687 = vmatpush1.bf16.msra.mxu0 %v581
  %688 = vmatprep.subr.bf16.mxu0 0
  %689 = vmatpush1.bf16.msra.mxu0 0
  %690 = vmatprep.subr.bf16.mxu0 0
  %691 = vmatpush1.bf16.msra.mxu0 0
  %692 = vmatprep.subr.bf16.mxu0 0
  %693 = vmatpush1.bf16.msra.mxu0 0
  %694 = vmatprep.subr.bf16.mxu0 0
  %695 = vmatpush1.bf16.msra.mxu0 0
  %696 = vmatprep.subr.bf16.mxu0 0
  %697 = vmatpush1.bf16.msra.mxu0 0
  %698 = vmatprep.subr.bf16.mxu0 0
  %699 = vmatpush1.bf16.msra.mxu0 0
  %700 = vmatprep.subr.bf16.mxu0 0
  %701 = vmatpush1.bf16.msra.mxu0 0
  %702 = vmatprep.subr.bf16.mxu0 0
  %703 = vmatpush1.bf16.msra.mxu0 0
  %704 = vmatprep.subr.bf16.mxu0 0
  %705 = vmatpush1.bf16.msra.mxu0 0
  %706 = vmatprep.subr.bf16.mxu0 0
  %707 = vmatpush1.bf16.msra.mxu0 0
  %708 = vmatprep.subr.bf16.mxu0 0
  %709 = vmatpush1.bf16.msra.mxu0 0
  %710 = vmatprep.subr.bf16.mxu0 0
  %711 = vmatpush1.bf16.msra.mxu0 0
  %712 = vmatprep.subr.bf16.mxu0 0
  %713 = vmatpush1.bf16.msra.mxu0 0
  %714 = vmatprep.subr.bf16.mxu0 0
  %715 = vmatpush1.bf16.msra.mxu0 0
  %716 = vmatprep.mubr.bf16.mxu0 0
  %717 = vmatmul.mubr.bf16.gmra.mrb[0].mxu0 %v596
  %v718 = vpop.f32.mrb[0].mxu0
  %v719 = vadd.f32 0.0, %v718
  %v720 = vpop.f32.mrb[0].mxu0
  %v721 = vadd.f32 0.0, %v720
  %v722 = vpop.f32.mrb[0].mxu0
  %v723 = vadd.f32 0.0, %v722
  %v724 = vpop.f32.mrb[0].mxu0
  %v725 = vadd.f32 0.0, %v724
  %726 = vdwg.mxu0
  %v739 = vunpack.c.l.b16 %v489
  %v740 = vunpack.c.h.b16 %v489
  %v741 = vunpack.c.l.b16 %v490
  %v742 = vunpack.c.h.b16 %v490
  %v743 = vunpack.c.l.b16 %v491
  %v744 = vunpack.c.h.b16 %v491
  %v745 = vunpack.c.l.b16 %v492
  %v746 = vunpack.c.h.b16 %v492
  %v747 = vunpack.c.l.b16 %v493
  %v748 = vunpack.c.h.b16 %v493
  %v749 = vunpack.c.l.b16 %v494
  %v750 = vunpack.c.h.b16 %v494
  %v751 = vunpack.c.l.b16 %v495
  %v752 = vunpack.c.h.b16 %v495
  %v753 = vunpack.c.l.b16 %v496
  %v754 = vunpack.c.h.b16 %v496
  %v755 = vunpack.c.l.b16 %v497
  %v756 = vunpack.c.h.b16 %v497
  %v757 = vunpack.c.l.b16 %v498
  %v758 = vunpack.c.h.b16 %v498
  %v759 = vunpack.c.l.b16 %v499
  %v760 = vunpack.c.h.b16 %v499
  %v761 = vunpack.c.l.b16 %v500
  %v762 = vunpack.c.h.b16 %v500
  %v763 = vpack.c.b16 %v745, %v739
  %v764 = vpack.c.b16 %v746, %v740
  %v765 = vpack.c.b16 %v747, %v741
  %v766 = vpack.c.b16 %v748, %v742
  %v767 = vpack.c.b16 %v749, %v743
  %v768 = vpack.c.b16 %v750, %v744
  %v769 = vpack.c.b16 %v757, %v751
  %v770 = vpack.c.b16 %v758, %v752
  %v771 = vpack.c.b16 %v759, %v753
  %v772 = vpack.c.b16 %v760, %v754
  %v773 = vpack.c.b16 %v761, %v755
  %v774 = vpack.c.b16 %v762, %v756
  %v788 = vsel %vm294, %v488, 0
  %790 = vmatprep.subr.bf16.mxu0 %v764
  %791 = vmatpush1.bf16.msra.mxu0 %v763
  %792 = vmatprep.subr.bf16.mxu0 %v770
  %793 = vmatpush1.bf16.msra.mxu0 %v769
  %794 = vmatprep.subr.bf16.mxu0 0
  %795 = vmatpush1.bf16.msra.mxu0 0
  %796 = vmatprep.subr.bf16.mxu0 0
  %797 = vmatpush1.bf16.msra.mxu0 0
  %798 = vmatprep.subr.bf16.mxu0 0
  %799 = vmatpush1.bf16.msra.mxu0 0
  %800 = vmatprep.subr.bf16.mxu0 0
  %801 = vmatpush1.bf16.msra.mxu0 0
  %802 = vmatprep.subr.bf16.mxu0 0
  %803 = vmatpush1.bf16.msra.mxu0 0
  %804 = vmatprep.subr.bf16.mxu0 0
  %805 = vmatpush1.bf16.msra.mxu0 0
  %806 = vmatprep.subr.bf16.mxu0 0
  %807 = vmatpush1.bf16.msra.mxu0 0
  %808 = vmatprep.subr.bf16.mxu0 0
  %809 = vmatpush1.bf16.msra.mxu0 0
  %810 = vmatprep.subr.bf16.mxu0 0
  %811 = vmatpush1.bf16.msra.mxu0 0
  %812 = vmatprep.subr.bf16.mxu0 0
  %813 = vmatpush1.bf16.msra.mxu0 0
  %814 = vmatprep.subr.bf16.mxu0 0
  %815 = vmatpush1.bf16.msra.mxu0 0
  %816 = vmatprep.subr.bf16.mxu0 0
  %817 = vmatpush1.bf16.msra.mxu0 0
  %818 = vmatprep.subr.bf16.mxu0 0
  %819 = vmatpush1.bf16.msra.mxu0 0
  %820 = vmatprep.subr.bf16.mxu0 0
  %821 = vmatpush1.bf16.msra.mxu0 0
  %822 = vmatprep.mubr.bf16.mxu0 0
  %823 = vmatmul.mubr.bf16.gmra.mrb[0].mxu0 %v788
  %v824 = vpop.f32.mrb[0].mxu0
  %v825 = vadd.f32 %v633, %v824
  %v826 = vpop.f32.mrb[0].mxu0
  %v827 = vadd.f32 %v635, %v826
  %v828 = vpop.f32.mrb[0].mxu0
  %v829 = vadd.f32 %v637, %v828
  %v830 = vpop.f32.mrb[0].mxu0
  %v831 = vadd.f32 %v639, %v830
  %832 = vdwg.mxu0
  %833 = vmatprep.subr.bf16.mxu0 %v766
  %834 = vmatpush1.bf16.msra.mxu0 %v765
  %835 = vmatprep.subr.bf16.mxu0 %v772
  %836 = vmatpush1.bf16.msra.mxu0 %v771
  %837 = vmatprep.subr.bf16.mxu0 0
  %838 = vmatpush1.bf16.msra.mxu0 0
  %839 = vmatprep.subr.bf16.mxu0 0
  %840 = vmatpush1.bf16.msra.mxu0 0
  %841 = vmatprep.subr.bf16.mxu0 0
  %842 = vmatpush1.bf16.msra.mxu0 0
  %843 = vmatprep.subr.bf16.mxu0 0
  %844 = vmatpush1.bf16.msra.mxu0 0
  %845 = vmatprep.subr.bf16.mxu0 0
  %846 = vmatpush1.bf16.msra.mxu0 0
  %847 = vmatprep.subr.bf16.mxu0 0
  %848 = vmatpush1.bf16.msra.mxu0 0
  %849 = vmatprep.subr.bf16.mxu0 0
  %850 = vmatpush1.bf16.msra.mxu0 0
  %851 = vmatprep.subr.bf16.mxu0 0
  %852 = vmatpush1.bf16.msra.mxu0 0
  %853 = vmatprep.subr.bf16.mxu0 0
  %854 = vmatpush1.bf16.msra.mxu0 0
  %855 = vmatprep.subr.bf16.mxu0 0
  %856 = vmatpush1.bf16.msra.mxu0 0
  %857 = vmatprep.subr.bf16.mxu0 0
  %858 = vmatpush1.bf16.msra.mxu0 0
  %859 = vmatprep.subr.bf16.mxu0 0
  %860 = vmatpush1.bf16.msra.mxu0 0
  %861 = vmatprep.subr.bf16.mxu0 0
  %862 = vmatpush1.bf16.msra.mxu0 0
  %863 = vmatprep.subr.bf16.mxu0 0
  %864 = vmatpush1.bf16.msra.mxu0 0
  %865 = vmatprep.mubr.bf16.mxu0 0
  %866 = vmatmul.mubr.bf16.gmra.mrb[0].mxu0 %v788
  %v867 = vpop.f32.mrb[0].mxu0
  %v868 = vadd.f32 %v676, %v867
  %v869 = vpop.f32.mrb[0].mxu0
  %v870 = vadd.f32 %v678, %v869
  %v871 = vpop.f32.mrb[0].mxu0
  %v872 = vadd.f32 %v680, %v871
  %v873 = vpop.f32.mrb[0].mxu0
  %v874 = vadd.f32 %v682, %v873
  %875 = vdwg.mxu0
  %876 = vmatprep.subr.bf16.mxu0 %v768
  %877 = vmatpush1.bf16.msra.mxu0 %v767
  %878 = vmatprep.subr.bf16.mxu0 %v774
  %879 = vmatpush1.bf16.msra.mxu0 %v773
  %880 = vmatprep.subr.bf16.mxu0 0
  %881 = vmatpush1.bf16.msra.mxu0 0
  %882 = vmatprep.subr.bf16.mxu0 0
  %883 = vmatpush1.bf16.msra.mxu0 0
  %884 = vmatprep.subr.bf16.mxu0 0
  %885 = vmatpush1.bf16.msra.mxu0 0
  %886 = vmatprep.subr.bf16.mxu0 0
  %887 = vmatpush1.bf16.msra.mxu0 0
  %888 = vmatprep.subr.bf16.mxu0 0
  %889 = vmatpush1.bf16.msra.mxu0 0
  %890 = vmatprep.subr.bf16.mxu0 0
  %891 = vmatpush1.bf16.msra.mxu0 0
  %892 = vmatprep.subr.bf16.mxu0 0
  %893 = vmatpush1.bf16.msra.mxu0 0
  %894 = vmatprep.subr.bf16.mxu0 0
  %895 = vmatpush1.bf16.msra.mxu0 0
  %896 = vmatprep.subr.bf16.mxu0 0
  %897 = vmatpush1.bf16.msra.mxu0 0
  %898 = vmatprep.subr.bf16.mxu0 0
  %899 = vmatpush1.bf16.msra.mxu0 0
  %900 = vmatprep.subr.bf16.mxu0 0
  %901 = vmatpush1.bf16.msra.mxu0 0
  %902 = vmatprep.subr.bf16.mxu0 0
  %903 = vmatpush1.bf16.msra.mxu0 0
  %904 = vmatprep.subr.bf16.mxu0 0
  %905 = vmatpush1.bf16.msra.mxu0 0
  %906 = vmatprep.subr.bf16.mxu0 0
  %907 = vmatpush1.bf16.msra.mxu0 0
  %908 = vmatprep.mubr.bf16.mxu0 0
  %909 = vmatmul.mubr.bf16.gmra.mrb[0].mxu0 %v788
  %v910 = vpop.f32.mrb[0].mxu0
  %v911 = vadd.f32 %v719, %v910
  %v912 = vpop.f32.mrb[0].mxu0
  %v913 = vadd.f32 %v721, %v912
  %v914 = vpop.f32.mrb[0].mxu0
  %v915 = vadd.f32 %v723, %v914
  %v916 = vpop.f32.mrb[0].mxu0
  %v917 = vadd.f32 %v725, %v916
  %918 = vdwg.mxu0
  %v919 = vld [vmem:[%s2 + $0xc0] sm:$0x11]
  %v920 = vld [vmem:[%s2 + $0xc8] sm:$0x11]
  %v921 = vld [vmem:[%s2 + $0xd0] sm:$0x11]
  %v922 = vunpack.c.l.bf16 %v919
  %v923 = vunpack.c.h.bf16 %v919
  %v924 = vunpack.c.l.bf16 %v920
  %v925 = vunpack.c.h.bf16 %v920
  %v926 = vunpack.c.l.bf16 %v921
  %v927 = vunpack.c.h.bf16 %v921
  %v928 = vlaneseq
  %v929 = vshrl.u32 %v928, 7
  %v930 = vsub.s32 0, %v929
  %v931 = vrot.slane %v922, %v930
  %v932 = vlaneseq
  %v933 = vshrl.u32 %v932, 7
  %v934 = vsub.s32 0, %v933
  %v935 = vrot.slane %v923, %v934
  %v936 = vlaneseq
  %v937 = vshrl.u32 %v936, 7
  %v938 = vsub.s32 0, %v937
  %v939 = vrot.slane %v924, %v938
  %v940 = vlaneseq
  %v941 = vshrl.u32 %v940, 7
  %v942 = vsub.s32 0, %v941
  %v943 = vrot.slane %v925, %v942
  %v944 = vlaneseq
  %v945 = vshrl.u32 %v944, 7
  %v946 = vsub.s32 0, %v945
  %v947 = vrot.slane %v926, %v946
  %v948 = vlaneseq
  %v949 = vshrl.u32 %v948, 7
  %v950 = vsub.s32 0, %v949
  %v951 = vrot.slane %v927, %v950
  %v952 = vadd.f32 %v825, %v931
  %v953 = vadd.f32 %v827, %v935
  %v954 = vadd.f32 %v868, %v939
  %v955 = vadd.f32 %v870, %v943
  %v956 = vadd.f32 %v911, %v947
  %v957 = vadd.f32 %v913, %v951
  %v958 = vadd.f32 %v829, %v931
  %v959 = vadd.f32 %v831, %v935
  %v960 = vadd.f32 %v872, %v939
  %v961 = vadd.f32 %v874, %v943
  %v962 = vadd.f32 %v915, %v947
  %v963 = vadd.f32 %v917, %v951
  %v964 = vld [vmem:[%s3 + $0x4] sm:$0x1]
  %v965 = vpack.c.bf16 %v41, %v40
  %v966 = vld [vmem:[%s1 + $0x80] sm:$0xf]
  %v967 = vld [vmem:[%s1 + $0x84] sm:$0xf]
  %v970 = vunpack.c.l.b16 %v966
  %v971 = vunpack.c.l.b16 %v967
  %v972 = vpack.c.b16 %v971, %v970
  %vm974 = vcmask 130048
  %v976 = vsel %vm974, %v965, 0
  %978 = vmatprep.subr.bf16.mxu0 0
  %979 = vmatpush1.bf16.msra.mxu0 %v972
  %980 = vmatprep.subr.bf16.mxu0 0
  %981 = vmatpush1.bf16.msra.mxu0 0
  %982 = vmatprep.subr.bf16.mxu0 0
  %983 = vmatpush1.bf16.msra.mxu0 0
  %984 = vmatprep.subr.bf16.mxu0 0
  %985 = vmatpush1.bf16.msra.mxu0 0
  %986 = vmatprep.subr.bf16.mxu0 0
  %987 = vmatpush1.bf16.msra.mxu0 0
  %988 = vmatprep.subr.bf16.mxu0 0
  %989 = vmatpush1.bf16.msra.mxu0 0
  %990 = vmatprep.subr.bf16.mxu0 0
  %991 = vmatpush1.bf16.msra.mxu0 0
  %992 = vmatprep.subr.bf16.mxu0 0
  %993 = vmatpush1.bf16.msra.mxu0 0
  %994 = vmatprep.subr.bf16.mxu0 0
  %995 = vmatpush1.bf16.msra.mxu0 0
  %996 = vmatprep.subr.bf16.mxu0 0
  %997 = vmatpush1.bf16.msra.mxu0 0
  %998 = vmatprep.subr.bf16.mxu0 0
  %999 = vmatpush1.bf16.msra.mxu0 0
  %1000 = vmatprep.subr.bf16.mxu0 0
  %1001 = vmatpush1.bf16.msra.mxu0 0
  %1002 = vmatprep.subr.bf16.mxu0 0
  %1003 = vmatpush1.bf16.msra.mxu0 0
  %1004 = vmatprep.subr.bf16.mxu0 0
  %1005 = vmatpush1.bf16.msra.mxu0 0
  %1006 = vmatprep.subr.bf16.mxu0 0
  %1007 = vmatpush1.bf16.msra.mxu0 0
  %1008 = vmatprep.subr.bf16.mxu0 0
  %1009 = vmatpush1.bf16.msra.mxu0 0
  %1010 = vmatprep.mubr.bf16.mxu0 0
  %1011 = vmatmul.mubr.bf16.gmra.mrb[0].mxu0 %v976
  %v1012 = vpop.f32.mrb[0].mxu0
  %v1013 = vadd.f32 0.0, %v1012
  %v1014 = vpop.f32.mrb[0].mxu0
  %v1015 = vpop.f32.mrb[0].mxu0
  %v1016 = vadd.f32 0.0, %v1015
  %v1017 = vpop.f32.mrb[0].mxu0
  %1018 = vdwg.mxu0
  %v1019 = vlaneseq
  %v1020 = vshrl.u32 %v1019, 7
  %v1021 = vsub.s32 0, %v1020
  %v1022 = vrot.slane %v964, %v1021
  %v1023 = vadd.f32 %v1022, %v1013
  %v1024 = vadd.f32 %v1022, %v1016
  %v1025 = vld [vmem:[%s3 + $0x5] sm:$0x1]
  %v1026 = vmul.f32 %v1023, %v1023
  %v1027 = vmul.f32 %v1024, %v1024
  %v1028 = vpack.c.bf16 %v1027, %v1026
  %v1029 = vld [vmem:[%s1] sm:$0xf]
  %v1030 = vld [vmem:[%s1 + $0x4] sm:$0xf]
  %v1031 = vld [vmem:[%s1 + $0x8] sm:$0xf]
  %v1032 = vld [vmem:[%s1 + $0xc] sm:$0xf]
  %v1037 = vunpack.c.l.b16 %v1029
  %v1038 = vunpack.c.l.b16 %v1030
  %v1039 = vunpack.c.l.b16 %v1031
  %v1040 = vunpack.c.l.b16 %v1032
  %v1041 = vpack.c.b16 %v1038, %v1037
  %v1042 = vpack.c.b16 %v1040, %v1039
  %v1046 = vsel %vm294, %v1028, 0
  %1048 = vmatprep.subr.bf16.mxu0 0
  %1049 = vmatpush1.bf16.msra.mxu0 %v1041
  %1050 = vmatprep.subr.bf16.mxu0 0
  %1051 = vmatpush1.bf16.msra.mxu0 %v1042
  %1052 = vmatprep.subr.bf16.mxu0 0
  %1053 = vmatpush1.bf16.msra.mxu0 0
  %1054 = vmatprep.subr.bf16.mxu0 0
  %1055 = vmatpush1.bf16.msra.mxu0 0
  %1056 = vmatprep.subr.bf16.mxu0 0
  %1057 = vmatpush1.bf16.msra.mxu0 0
  %1058 = vmatprep.subr.bf16.mxu0 0
  %1059 = vmatpush1.bf16.msra.mxu0 0
  %1060 = vmatprep.subr.bf16.mxu0 0
  %1061 = vmatpush1.bf16.msra.mxu0 0
  %1062 = vmatprep.subr.bf16.mxu0 0
  %1063 = vmatpush1.bf16.msra.mxu0 0
  %1064 = vmatprep.subr.bf16.mxu0 0
  %1065 = vmatpush1.bf16.msra.mxu0 0
  %1066 = vmatprep.subr.bf16.mxu0 0
  %1067 = vmatpush1.bf16.msra.mxu0 0
  %1068 = vmatprep.subr.bf16.mxu0 0
  %1069 = vmatpush1.bf16.msra.mxu0 0
  %1070 = vmatprep.subr.bf16.mxu0 0
  %1071 = vmatpush1.bf16.msra.mxu0 0
  %1072 = vmatprep.subr.bf16.mxu0 0
  %1073 = vmatpush1.bf16.msra.mxu0 0
  %1074 = vmatprep.subr.bf16.mxu0 0
  %1075 = vmatpush1.bf16.msra.mxu0 0
  %1076 = vmatprep.subr.bf16.mxu0 0
  %1077 = vmatpush1.bf16.msra.mxu0 0
  %1078 = vmatprep.subr.bf16.mxu0 0
  %1079 = vmatpush1.bf16.msra.mxu0 0
  %1080 = vmatprep.mubr.bf16.mxu0 0
  %1081 = vmatmul.mubr.bf16.gmra.mrb[0].mxu0 %v1046
  %v1082 = vpop.f32.mrb[0].mxu0
  %v1083 = vadd.f32 0.0, %v1082
  %v1084 = vpop.f32.mrb[0].mxu0
  %v1085 = vpop.f32.mrb[0].mxu0
  %v1086 = vadd.f32 0.0, %v1085
  %v1087 = vpop.f32.mrb[0].mxu0
  %1088 = vdwg.mxu0
  %v1089 = vadd.f32 %v1083, 1e-05
  %v1090 = vadd.f32 %v1086, 1e-05
  %v1091 = vrsqrt.pop %v1089
  %v1092 = vrsqrt.pop %v1090
  %v1093 = vmul.f32 %v1023, %v1091
  %v1094 = vmul.f32 %v1024, %v1092
  %v1095 = vlaneseq
  %v1096 = vshrl.u32 %v1095, 7
  %v1097 = vsub.s32 0, %v1096
  %v1098 = vrot.slane %v1025, %v1097
  %v1099 = vmul.f32 %v1093, %v1098
  %v1100 = vmul.f32 %v1094, %v1098
  %1102 = vrot.lane.b32.xlu0 %v1098, 96
  %v1103 = vpop.permute.xlu0 %1102
  %v1105 = vadd.f32 %v1099, %v1103
  %v1106 = vadd.f32 %v1100, %v1103
  %v1107 = vmin.f32 %v1105, 20.0
  %v1108 = vmin.f32 %v1106, 20.0
  %v1109 = vmul.f32 %v1107, 1.442695
  %v1110 = vpow.pop %v1109
  %v1111 = vmul.f32 %v1108, 1.442695
  %v1112 = vpow.pop %v1111
  %v1113 = vadd.f32 %v1110, 2.0
  %v1114 = vadd.f32 %v1112, 2.0
  %v1115 = vmul.f32 %v1110, %v1113
  %v1116 = vmul.f32 %v1112, %v1114
  %v1117 = vmul.f32 %v1105, %v1115
  %v1118 = vmul.f32 %v1106, %v1116
  %v1119 = vadd.f32 %v1115, 2.0
  %v1120 = vadd.f32 %v1116, 2.0
  %v1121 = vrcp.pop %v1119
  %v1122 = vrcp.pop %v1120
  %v1123 = vmul.f32 %v1117, %v1121
  %v1124 = vmul.f32 %v1118, %v1122
  %v1125 = vmul.f32 %v952, %v1123
  %v1126 = vmul.f32 %v958, %v1124
  %1129 = vrot.lane.b32.xlu0 %v952, 96
  %v1130 = vpop.permute.xlu0 %1129
  %1131 = vrot.lane.b32.xlu0 %v958, 96
  %v1132 = vpop.permute.xlu0 %1131
  %v1135 = vadd.f32 %v1125, %v1130
  %v1136 = vadd.f32 %v1126, %v1132
  %v1137 = vpack.c.bf16 %v1136, %v1135
  %v1138 = vld [vmem:[%s1 + $0x88] sm:$0xf]
  %v1139 = vld [vmem:[%s1 + $0x8c] sm:$0xf]
  %v1140 = vld [vmem:[%s1 + $0x90] sm:$0xf]
  %v1141 = vld [vmem:[%s1 + $0x94] sm:$0xf]
  %v1146 = vunpack.c.l.b16 %v1138
  %v1147 = vunpack.c.l.b16 %v1139
  %v1148 = vunpack.c.l.b16 %v1140
  %v1149 = vunpack.c.l.b16 %v1141
  %v1150 = vpack.c.b16 %v1147, %v1146
  %v1151 = vpack.c.b16 %v1149, %v1148
  %v1155 = vsel %vm294, %v1137, 0
  %1157 = vmatprep.subr.bf16.mxu0 0
  %1158 = vmatpush1.bf16.msra.mxu0 %v1150
  %1159 = vmatprep.subr.bf16.mxu0 0
  %1160 = vmatpush1.bf16.msra.mxu0 %v1151
  %1161 = vmatprep.subr.bf16.mxu0 0
  %1162 = vmatpush1.bf16.msra.mxu0 0
  %1163 = vmatprep.subr.bf16.mxu0 0
  %1164 = vmatpush1.bf16.msra.mxu0 0
  %1165 = vmatprep.subr.bf16.mxu0 0
  %1166 = vmatpush1.bf16.msra.mxu0 0
  %1167 = vmatprep.subr.bf16.mxu0 0
  %1168 = vmatpush1.bf16.msra.mxu0 0
  %1169 = vmatprep.subr.bf16.mxu0 0
  %1170 = vmatpush1.bf16.msra.mxu0 0
  %1171 = vmatprep.subr.bf16.mxu0 0
  %1172 = vmatpush1.bf16.msra.mxu0 0
  %1173 = vmatprep.subr.bf16.mxu0 0
  %1174 = vmatpush1.bf16.msra.mxu0 0
  %1175 = vmatprep.subr.bf16.mxu0 0
  %1176 = vmatpush1.bf16.msra.mxu0 0
  %1177 = vmatprep.subr.bf16.mxu0 0
  %1178 = vmatpush1.bf16.msra.mxu0 0
  %1179 = vmatprep.subr.bf16.mxu0 0
  %1180 = vmatpush1.bf16.msra.mxu0 0
  %1181 = vmatprep.subr.bf16.mxu0 0
  %1182 = vmatpush1.bf16.msra.mxu0 0
  %1183 = vmatprep.subr.bf16.mxu0 0
  %1184 = vmatpush1.bf16.msra.mxu0 0
  %1185 = vmatprep.subr.bf16.mxu0 0
  %1186 = vmatpush1.bf16.msra.mxu0 0
  %1187 = vmatprep.subr.bf16.mxu0 0
  %1188 = vmatpush1.bf16.msra.mxu0 0
  %1189 = vmatprep.mubr.bf16.mxu0 0
  %1190 = vmatmul.mubr.bf16.gmra.mrb[0].mxu0 %v1155
  %v1191 = vpop.f32.mrb[0].mxu0
  %v1192 = vadd.f32 0.0, %v1191
  %v1193 = vpop.f32.mrb[0].mxu0
  %v1194 = vpop.f32.mrb[0].mxu0
  %v1195 = vadd.f32 0.0, %v1194
  %v1196 = vpop.f32.mrb[0].mxu0
  %1197 = vdwg.mxu0
  %v1198 = vld [vmem:[%s3 + $0x6] sm:$0x1]
  %v1199 = vlaneseq
  %v1200 = vshrl.u32 %v1199, 7
  %v1201 = vsub.s32 0, %v1200
  %v1202 = vrot.slane %v1198, %v1201
  %v1203 = vadd.f32 %v1192, %v1202
  %v1204 = vadd.f32 %v1195, %v1202
  %v1205 = vld [vmem:[%s3 + $0x7] sm:$0x1]
  %v1206 = vmul.f32 %v1203, %v1203
  %v1207 = vmul.f32 %v1204, %v1204
  %v1208 = vpack.c.bf16 %v1207, %v1206
  %v1210 = vsel %vm294, %v1208, 0
  %1212 = vmatprep.subr.bf16.mxu0 0
  %1213 = vmatpush1.bf16.msra.mxu0 %v1041
  %1214 = vmatprep.subr.bf16.mxu0 0
  %1215 = vmatpush1.bf16.msra.mxu0 %v1042
  %1216 = vmatprep.subr.bf16.mxu0 0
  %1217 = vmatpush1.bf16.msra.mxu0 0
  %1218 = vmatprep.subr.bf16.mxu0 0
  %1219 = vmatpush1.bf16.msra.mxu0 0
  %1220 = vmatprep.subr.bf16.mxu0 0
  %1221 = vmatpush1.bf16.msra.mxu0 0
  %1222 = vmatprep.subr.bf16.mxu0 0
  %1223 = vmatpush1.bf16.msra.mxu0 0
  %1224 = vmatprep.subr.bf16.mxu0 0
  %1225 = vmatpush1.bf16.msra.mxu0 0
  %1226 = vmatprep.subr.bf16.mxu0 0
  %1227 = vmatpush1.bf16.msra.mxu0 0
  %1228 = vmatprep.subr.bf16.mxu0 0
  %1229 = vmatpush1.bf16.msra.mxu0 0
  %1230 = vmatprep.subr.bf16.mxu0 0
  %1231 = vmatpush1.bf16.msra.mxu0 0
  %1232 = vmatprep.subr.bf16.mxu0 0
  %1233 = vmatpush1.bf16.msra.mxu0 0
  %1234 = vmatprep.subr.bf16.mxu0 0
  %1235 = vmatpush1.bf16.msra.mxu0 0
  %1236 = vmatprep.subr.bf16.mxu0 0
  %1237 = vmatpush1.bf16.msra.mxu0 0
  %1238 = vmatprep.subr.bf16.mxu0 0
  %1239 = vmatpush1.bf16.msra.mxu0 0
  %1240 = vmatprep.subr.bf16.mxu0 0
  %1241 = vmatpush1.bf16.msra.mxu0 0
  %1242 = vmatprep.subr.bf16.mxu0 0
  %1243 = vmatpush1.bf16.msra.mxu0 0
  %1244 = vmatprep.mubr.bf16.mxu0 0
  %1245 = vmatmul.mubr.bf16.gmra.mrb[0].mxu0 %v1210
  %v1246 = vpop.f32.mrb[0].mxu0
  %v1247 = vadd.f32 0.0, %v1246
  %v1248 = vpop.f32.mrb[0].mxu0
  %v1249 = vpop.f32.mrb[0].mxu0
  %v1250 = vadd.f32 0.0, %v1249
  %v1251 = vpop.f32.mrb[0].mxu0
  %1252 = vdwg.mxu0
  %v1253 = vadd.f32 %v1247, 1e-05
  %v1254 = vadd.f32 %v1250, 1e-05
  %v1255 = vrsqrt.pop %v1253
  %v1256 = vrsqrt.pop %v1254
  %v1257 = vmul.f32 %v1203, %v1255
  %v1258 = vmul.f32 %v1204, %v1256
  %v1259 = vlaneseq
  %v1260 = vshrl.u32 %v1259, 7
  %v1261 = vsub.s32 0, %v1260
  %v1262 = vrot.slane %v1205, %v1261
  %v1263 = vmul.f32 %v1257, %v1262
  %v1264 = vmul.f32 %v1258, %v1262
  %1266 = vrot.lane.b32.xlu0 %v1262, 96
  %v1267 = vpop.permute.xlu0 %1266
  %v1269 = vadd.f32 %v1263, %v1267
  %v1270 = vadd.f32 %v1264, %v1267
  %v1271 = vmin.f32 %v1269, 20.0
  %v1272 = vmin.f32 %v1270, 20.0
  %v1273 = vmul.f32 %v1271, 1.442695
  %v1274 = vpow.pop %v1273
  %v1275 = vmul.f32 %v1272, 1.442695
  %v1276 = vpow.pop %v1275
  %v1277 = vadd.f32 %v1274, 2.0
  %v1278 = vadd.f32 %v1276, 2.0
  %v1279 = vmul.f32 %v1274, %v1277
  %v1280 = vmul.f32 %v1276, %v1278
  %v1281 = vmul.f32 %v1269, %v1279
  %v1282 = vmul.f32 %v1270, %v1280
  %v1283 = vadd.f32 %v1279, 2.0
  %v1284 = vadd.f32 %v1280, 2.0
  %v1285 = vrcp.pop %v1283
  %v1286 = vrcp.pop %v1284
  %v1287 = vmul.f32 %v1281, %v1285
  %v1288 = vmul.f32 %v1282, %v1286
  %1291 = vrot.lane.b32.xlu0 %v1023, 96
  %v1292 = vpop.permute.xlu0 %1291
  %1293 = vrot.lane.b32.xlu0 %v1024, 96
  %v1294 = vpop.permute.xlu0 %1293
  %v1297 = vadd.f32 %v1287, %v1292
  %v1298 = vadd.f32 %v1288, %v1294
  %v1299 = vld [vmem:[%s3 + $0x8] sm:$0x1]
  %v1300 = vpack.c.bf16 %v1298, %v1297
  %v1301 = vld [vmem:[%s1 + $0x98] sm:$0xf]
  %v1302 = vld [vmem:[%s1 + $0x9c] sm:$0xf]
  %v1303 = vld [vmem:[%s1 + $0xa0] sm:$0xf]
  %v1304 = vld [vmem:[%s1 + $0xa4] sm:$0xf]
  %v1309 = vunpack.c.l.b16 %v1301
  %v1310 = vunpack.c.l.b16 %v1302
  %v1311 = vunpack.c.l.b16 %v1303
  %v1312 = vunpack.c.l.b16 %v1304
  %v1313 = vpack.c.b16 %v1310, %v1309
  %v1314 = vpack.c.b16 %v1312, %v1311
  %v1318 = vsel %vm294, %v1300, 0
  %1320 = vmatprep.subr.bf16.mxu0 0
  %1321 = vmatpush1.bf16.msra.mxu0 %v1313
  %1322 = vmatprep.subr.bf16.mxu0 0
  %1323 = vmatpush1.bf16.msra.mxu0 %v1314
  %1324 = vmatprep.subr.bf16.mxu0 0
  %1325 = vmatpush1.bf16.msra.mxu0 0
  %1326 = vmatprep.subr.bf16.mxu0 0
  %1327 = vmatpush1.bf16.msra.mxu0 0
  %1328 = vmatprep.subr.bf16.mxu0 0
  %1329 = vmatpush1.bf16.msra.mxu0 0
  %1330 = vmatprep.subr.bf16.mxu0 0
  %1331 = vmatpush1.bf16.msra.mxu0 0
  %1332 = vmatprep.subr.bf16.mxu0 0
  %1333 = vmatpush1.bf16.msra.mxu0 0
  %1334 = vmatprep.subr.bf16.mxu0 0
  %1335 = vmatpush1.bf16.msra.mxu0 0
  %1336 = vmatprep.subr.bf16.mxu0 0
  %1337 = vmatpush1.bf16.msra.mxu0 0
  %1338 = vmatprep.subr.bf16.mxu0 0
  %1339 = vmatpush1.bf16.msra.mxu0 0
  %1340 = vmatprep.subr.bf16.mxu0 0
  %1341 = vmatpush1.bf16.msra.mxu0 0
  %1342 = vmatprep.subr.bf16.mxu0 0
  %1343 = vmatpush1.bf16.msra.mxu0 0
  %1344 = vmatprep.subr.bf16.mxu0 0
  %1345 = vmatpush1.bf16.msra.mxu0 0
  %1346 = vmatprep.subr.bf16.mxu0 0
  %1347 = vmatpush1.bf16.msra.mxu0 0
  %1348 = vmatprep.subr.bf16.mxu0 0
  %1349 = vmatpush1.bf16.msra.mxu0 0
  %1350 = vmatprep.subr.bf16.mxu0 0
  %1351 = vmatpush1.bf16.msra.mxu0 0
  %1352 = vmatprep.mubr.bf16.mxu0 0
  %1353 = vmatmul.mubr.bf16.gmra.mrb[0].mxu0 %v1318
  %v1354 = vpop.f32.mrb[0].mxu0
  %v1355 = vadd.f32 0.0, %v1354
  %v1356 = vpop.f32.mrb[0].mxu0
  %v1357 = vpop.f32.mrb[0].mxu0
  %v1358 = vadd.f32 0.0, %v1357
  %v1359 = vpop.f32.mrb[0].mxu0
  %1360 = vdwg.mxu0
  %v1361 = vlaneseq
  %v1362 = vshrl.u32 %v1361, 7
  %v1363 = vsub.s32 0, %v1362
  %v1364 = vrot.slane %v1299, %v1363
  %v1365 = vadd.f32 %v1364, %v1355
  %v1366 = vadd.f32 %v1364, %v1358
  %v1367 = vld [vmem:[%s3 + $0x9] sm:$0x1]
  %v1368 = vmul.f32 %v1365, %v1365
  %v1369 = vmul.f32 %v1366, %v1366
  %v1370 = vpack.c.bf16 %v1369, %v1368
  %v1372 = vsel %vm294, %v1370, 0
  %1374 = vmatprep.subr.bf16.mxu0 0
  %1375 = vmatpush1.bf16.msra.mxu0 %v1041
  %1376 = vmatprep.subr.bf16.mxu0 0
  %1377 = vmatpush1.bf16.msra.mxu0 %v1042
  %1378 = vmatprep.subr.bf16.mxu0 0
  %1379 = vmatpush1.bf16.msra.mxu0 0
  %1380 = vmatprep.subr.bf16.mxu0 0
  %1381 = vmatpush1.bf16.msra.mxu0 0
  %1382 = vmatprep.subr.bf16.mxu0 0
  %1383 = vmatpush1.bf16.msra.mxu0 0
  %1384 = vmatprep.subr.bf16.mxu0 0
  %1385 = vmatpush1.bf16.msra.mxu0 0
  %1386 = vmatprep.subr.bf16.mxu0 0
  %1387 = vmatpush1.bf16.msra.mxu0 0
  %1388 = vmatprep.subr.bf16.mxu0 0
  %1389 = vmatpush1.bf16.msra.mxu0 0
  %1390 = vmatprep.subr.bf16.mxu0 0
  %1391 = vmatpush1.bf16.msra.mxu0 0
  %1392 = vmatprep.subr.bf16.mxu0 0
  %1393 = vmatpush1.bf16.msra.mxu0 0
  %1394 = vmatprep.subr.bf16.mxu0 0
  %1395 = vmatpush1.bf16.msra.mxu0 0
  %1396 = vmatprep.subr.bf16.mxu0 0
  %1397 = vmatpush1.bf16.msra.mxu0 0
  %1398 = vmatprep.subr.bf16.mxu0 0
  %1399 = vmatpush1.bf16.msra.mxu0 0
  %1400 = vmatprep.subr.bf16.mxu0 0
  %1401 = vmatpush1.bf16.msra.mxu0 0
  %1402 = vmatprep.subr.bf16.mxu0 0
  %1403 = vmatpush1.bf16.msra.mxu0 0
  %1404 = vmatprep.subr.bf16.mxu0 0
  %1405 = vmatpush1.bf16.msra.mxu0 0
  %1406 = vmatprep.mubr.bf16.mxu0 0
  %1407 = vmatmul.mubr.bf16.gmra.mrb[0].mxu0 %v1372
  %v1408 = vpop.f32.mrb[0].mxu0
  %v1409 = vadd.f32 0.0, %v1408
  %v1410 = vpop.f32.mrb[0].mxu0
  %v1411 = vpop.f32.mrb[0].mxu0
  %v1412 = vadd.f32 0.0, %v1411
  %v1413 = vpop.f32.mrb[0].mxu0
  %1414 = vdwg.mxu0
  %v1415 = vadd.f32 %v1409, 1e-05
  %v1416 = vadd.f32 %v1412, 1e-05
  %v1417 = vrsqrt.pop %v1415
  %v1418 = vrsqrt.pop %v1416
  %v1419 = vmul.f32 %v1365, %v1417
  %v1420 = vmul.f32 %v1366, %v1418
  %v1421 = vlaneseq
  %v1422 = vshrl.u32 %v1421, 7
  %v1423 = vsub.s32 0, %v1422
  %v1424 = vrot.slane %v1367, %v1423
  %v1425 = vmul.f32 %v1419, %v1424
  %v1426 = vmul.f32 %v1420, %v1424
  %1428 = vrot.lane.b32.xlu0 %v1424, 96
  %v1429 = vpop.permute.xlu0 %1428
  %v1431 = vadd.f32 %v1425, %v1429
  %v1432 = vadd.f32 %v1426, %v1429
  %v1433 = vmin.f32 %v1431, 20.0
  %v1434 = vmin.f32 %v1432, 20.0
  %v1435 = vmul.f32 %v1433, 1.442695
  %v1436 = vpow.pop %v1435
  %v1437 = vmul.f32 %v1434, 1.442695
  %v1438 = vpow.pop %v1437
  %v1439 = vadd.f32 %v1436, 2.0
  %v1440 = vadd.f32 %v1438, 2.0
  %v1441 = vmul.f32 %v1436, %v1439
  %v1442 = vmul.f32 %v1438, %v1440
  %v1443 = vmul.f32 %v1431, %v1441
  %v1444 = vmul.f32 %v1432, %v1442
  %v1445 = vadd.f32 %v1441, 2.0
  %v1446 = vadd.f32 %v1442, 2.0
  %v1447 = vrcp.pop %v1445
  %v1448 = vrcp.pop %v1446
  %v1449 = vmul.f32 %v1443, %v1447
  %v1450 = vmul.f32 %v1444, %v1448
  %1453 = vrot.lane.b32.xlu0 %v1449, 64
  %v1454 = vpop.permute.xlu0 %1453
  %1455 = vrot.lane.b32.xlu0 %v1450, 64
  %v1456 = vpop.permute.xlu0 %1455
  %v1459 = vmul.f32 %v952, %v1454
  %v1460 = vmul.f32 %v958, %v1456
  %v1461 = vadd.f32 %v1459, %v1130
  %v1462 = vadd.f32 %v1460, %v1132
  %v1463 = vpack.c.bf16 %v1462, %v1461
  %v1464 = vld [vmem:[%s1 + $0xa8] sm:$0xf]
  %v1465 = vld [vmem:[%s1 + $0xac] sm:$0xf]
  %v1466 = vld [vmem:[%s1 + $0xb0] sm:$0xf]
  %v1467 = vld [vmem:[%s1 + $0xb4] sm:$0xf]
  %1469 = vrot.lane.b32.xlu0 %v1463, 64
  %v1470 = vpop.permute.xlu0 %1469
  %v1475 = vunpack.c.l.b16 %v1464
  %v1476 = vunpack.c.l.b16 %v1465
  %v1477 = vunpack.c.l.b16 %v1466
  %v1478 = vunpack.c.l.b16 %v1467
  %v1479 = vpack.c.b16 %v1476, %v1475
  %v1480 = vpack.c.b16 %v1478, %v1477
  %v1484 = vsel %vm294, %v1470, 0
  %1486 = vmatprep.subr.bf16.mxu0 0
  %1487 = vmatpush1.bf16.msra.mxu0 %v1479
  %1488 = vmatprep.subr.bf16.mxu0 0
  %1489 = vmatpush1.bf16.msra.mxu0 %v1480
  %1490 = vmatprep.subr.bf16.mxu0 0
  %1491 = vmatpush1.bf16.msra.mxu0 0
  %1492 = vmatprep.subr.bf16.mxu0 0
  %1493 = vmatpush1.bf16.msra.mxu0 0
  %1494 = vmatprep.subr.bf16.mxu0 0
  %1495 = vmatpush1.bf16.msra.mxu0 0
  %1496 = vmatprep.subr.bf16.mxu0 0
  %1497 = vmatpush1.bf16.msra.mxu0 0
  %1498 = vmatprep.subr.bf16.mxu0 0
  %1499 = vmatpush1.bf16.msra.mxu0 0
  %1500 = vmatprep.subr.bf16.mxu0 0
  %1501 = vmatpush1.bf16.msra.mxu0 0
  %1502 = vmatprep.subr.bf16.mxu0 0
  %1503 = vmatpush1.bf16.msra.mxu0 0
  %1504 = vmatprep.subr.bf16.mxu0 0
  %1505 = vmatpush1.bf16.msra.mxu0 0
  %1506 = vmatprep.subr.bf16.mxu0 0
  %1507 = vmatpush1.bf16.msra.mxu0 0
  %1508 = vmatprep.subr.bf16.mxu0 0
  %1509 = vmatpush1.bf16.msra.mxu0 0
  %1510 = vmatprep.subr.bf16.mxu0 0
  %1511 = vmatpush1.bf16.msra.mxu0 0
  %1512 = vmatprep.subr.bf16.mxu0 0
  %1513 = vmatpush1.bf16.msra.mxu0 0
  %1514 = vmatprep.subr.bf16.mxu0 0
  %1515 = vmatpush1.bf16.msra.mxu0 0
  %1516 = vmatprep.subr.bf16.mxu0 0
  %1517 = vmatpush1.bf16.msra.mxu0 0
  %1518 = vmatprep.mubr.bf16.mxu0 0
  %1519 = vmatmul.mubr.bf16.gmra.mrb[0].mxu0 %v1484
  %v1520 = vpop.f32.mrb[0].mxu0
  %v1521 = vadd.f32 0.0, %v1520
  %v1522 = vpop.f32.mrb[0].mxu0
  %v1523 = vpop.f32.mrb[0].mxu0
  %v1524 = vadd.f32 0.0, %v1523
  %v1525 = vpop.f32.mrb[0].mxu0
  %1526 = vdwg.mxu0
  %v1527 = vld [vmem:[%s3 + $0xa] sm:$0x1]
  %v1528 = vlaneseq
  %v1529 = vshrl.u32 %v1528, 7
  %v1530 = vsub.s32 0, %v1529
  %v1531 = vrot.slane %v1527, %v1530
  %v1532 = vadd.f32 %v1521, %v1531
  %v1533 = vadd.f32 %v1524, %v1531
  %v1534 = vld [vmem:[%s3 + $0xb] sm:$0x1]
  %v1535 = vmul.f32 %v1532, %v1532
  %v1536 = vmul.f32 %v1533, %v1533
  %v1537 = vpack.c.bf16 %v1536, %v1535
  %v1539 = vsel %vm294, %v1537, 0
  %1541 = vmatprep.subr.bf16.mxu0 0
  %1542 = vmatpush1.bf16.msra.mxu0 %v1041
  %1543 = vmatprep.subr.bf16.mxu0 0
  %1544 = vmatpush1.bf16.msra.mxu0 %v1042
  %1545 = vmatprep.subr.bf16.mxu0 0
  %1546 = vmatpush1.bf16.msra.mxu0 0
  %1547 = vmatprep.subr.bf16.mxu0 0
  %1548 = vmatpush1.bf16.msra.mxu0 0
  %1549 = vmatprep.subr.bf16.mxu0 0
  %1550 = vmatpush1.bf16.msra.mxu0 0
  %1551 = vmatprep.subr.bf16.mxu0 0
  %1552 = vmatpush1.bf16.msra.mxu0 0
  %1553 = vmatprep.subr.bf16.mxu0 0
  %1554 = vmatpush1.bf16.msra.mxu0 0
  %1555 = vmatprep.subr.bf16.mxu0 0
  %1556 = vmatpush1.bf16.msra.mxu0 0
  %1557 = vmatprep.subr.bf16.mxu0 0
  %1558 = vmatpush1.bf16.msra.mxu0 0
  %1559 = vmatprep.subr.bf16.mxu0 0
  %1560 = vmatpush1.bf16.msra.mxu0 0
  %1561 = vmatprep.subr.bf16.mxu0 0
  %1562 = vmatpush1.bf16.msra.mxu0 0
  %1563 = vmatprep.subr.bf16.mxu0 0
  %1564 = vmatpush1.bf16.msra.mxu0 0
  %1565 = vmatprep.subr.bf16.mxu0 0
  %1566 = vmatpush1.bf16.msra.mxu0 0
  %1567 = vmatprep.subr.bf16.mxu0 0
  %1568 = vmatpush1.bf16.msra.mxu0 0
  %1569 = vmatprep.subr.bf16.mxu0 0
  %1570 = vmatpush1.bf16.msra.mxu0 0
  %1571 = vmatprep.subr.bf16.mxu0 0
  %1572 = vmatpush1.bf16.msra.mxu0 0
  %1573 = vmatprep.mubr.bf16.mxu0 0
  %1574 = vmatmul.mubr.bf16.gmra.mrb[0].mxu0 %v1539
  %v1575 = vpop.f32.mrb[0].mxu0
  %v1576 = vadd.f32 0.0, %v1575
  %v1577 = vpop.f32.mrb[0].mxu0
  %v1578 = vpop.f32.mrb[0].mxu0
  %v1579 = vadd.f32 0.0, %v1578
  %v1580 = vpop.f32.mrb[0].mxu0
  %1581 = vdwg.mxu0
  %v1582 = vadd.f32 %v1576, 1e-05
  %v1583 = vadd.f32 %v1579, 1e-05
  %v1584 = vrsqrt.pop %v1582
  %v1585 = vrsqrt.pop %v1583
  %v1586 = vmul.f32 %v1532, %v1584
  %v1587 = vmul.f32 %v1533, %v1585
  %v1588 = vlaneseq
  %v1589 = vshrl.u32 %v1588, 7
  %v1590 = vsub.s32 0, %v1589
  %v1591 = vrot.slane %v1534, %v1590
  %v1592 = vmul.f32 %v1586, %v1591
  %v1593 = vmul.f32 %v1587, %v1591
  %1595 = vrot.lane.b32.xlu0 %v1591, 96
  %v1596 = vpop.permute.xlu0 %1595
  %v1598 = vadd.f32 %v1592, %v1596
  %v1599 = vadd.f32 %v1593, %v1596
  %v1600 = vmin.f32 %v1598, 20.0
  %v1601 = vmin.f32 %v1599, 20.0
  %v1602 = vmul.f32 %v1600, 1.442695
  %v1603 = vpow.pop %v1602
  %v1604 = vmul.f32 %v1601, 1.442695
  %v1605 = vpow.pop %v1604
  %v1606 = vadd.f32 %v1603, 2.0
  %v1607 = vadd.f32 %v1605, 2.0
  %v1608 = vmul.f32 %v1603, %v1606
  %v1609 = vmul.f32 %v1605, %v1607
  %v1610 = vmul.f32 %v1598, %v1608
  %v1611 = vmul.f32 %v1599, %v1609
  %v1612 = vadd.f32 %v1608, 2.0
  %v1613 = vadd.f32 %v1609, 2.0
  %v1614 = vrcp.pop %v1612
  %v1615 = vrcp.pop %v1613
  %v1616 = vmul.f32 %v1610, %v1614
  %v1617 = vmul.f32 %v1611, %v1615
  %v1618 = vadd.f32 %v1616, %v1297
  %v1619 = vadd.f32 %v1617, %v1298
  %v1620 = vpack.c.bf16 %v1619, %v1618
  %v1621 = vld [vmem:[%s1 + $0x218] sm:$0xf]
  %v1622 = vld [vmem:[%s1 + $0x21c] sm:$0xf]
  %v1623 = vld [vmem:[%s1 + $0x220] sm:$0xf]
  %v1624 = vld [vmem:[%s1 + $0x224] sm:$0xf]
  %v1629 = vunpack.c.l.b16 %v1621
  %v1630 = vunpack.c.l.b16 %v1622
  %v1631 = vunpack.c.l.b16 %v1623
  %v1632 = vunpack.c.l.b16 %v1624
  %v1633 = vpack.c.b16 %v1630, %v1629
  %v1634 = vpack.c.b16 %v1632, %v1631
  %v1638 = vsel %vm294, %v1620, 0
  %1640 = vmatprep.subr.bf16.mxu0 0
  %1641 = vmatpush1.bf16.msra.mxu0 %v1633
  %1642 = vmatprep.subr.bf16.mxu0 0
  %1643 = vmatpush1.bf16.msra.mxu0 %v1634
  %1644 = vmatprep.subr.bf16.mxu0 0
  %1645 = vmatpush1.bf16.msra.mxu0 0
  %1646 = vmatprep.subr.bf16.mxu0 0
  %1647 = vmatpush1.bf16.msra.mxu0 0
  %1648 = vmatprep.subr.bf16.mxu0 0
  %1649 = vmatpush1.bf16.msra.mxu0 0
  %1650 = vmatprep.subr.bf16.mxu0 0
  %1651 = vmatpush1.bf16.msra.mxu0 0
  %1652 = vmatprep.subr.bf16.mxu0 0
  %1653 = vmatpush1.bf16.msra.mxu0 0
  %1654 = vmatprep.subr.bf16.mxu0 0
  %1655 = vmatpush1.bf16.msra.mxu0 0
  %1656 = vmatprep.subr.bf16.mxu0 0
  %1657 = vmatpush1.bf16.msra.mxu0 0
  %1658 = vmatprep.subr.bf16.mxu0 0
  %1659 = vmatpush1.bf16.msra.mxu0 0
  %1660 = vmatprep.subr.bf16.mxu0 0
  %1661 = vmatpush1.bf16.msra.mxu0 0
  %1662 = vmatprep.subr.bf16.mxu0 0
  %1663 = vmatpush1.bf16.msra.mxu0 0
  %1664 = vmatprep.subr.bf16.mxu0 0
  %1665 = vmatpush1.bf16.msra.mxu0 0
  %1666 = vmatprep.subr.bf16.mxu0 0
  %1667 = vmatpush1.bf16.msra.mxu0 0
  %1668 = vmatprep.subr.bf16.mxu0 0
  %1669 = vmatpush1.bf16.msra.mxu0 0
  %1670 = vmatprep.subr.bf16.mxu0 0
  %1671 = vmatpush1.bf16.msra.mxu0 0
  %1672 = vmatprep.mubr.bf16.mxu0 0
  %1673 = vmatmul.mubr.bf16.gmra.mrb[0].mxu0 %v1638
  %v1674 = vpop.f32.mrb[0].mxu0
  %v1675 = vadd.f32 0.0, %v1674
  %v1676 = vpop.f32.mrb[0].mxu0
  %v1677 = vpop.f32.mrb[0].mxu0
  %v1678 = vadd.f32 0.0, %v1677
  %v1679 = vpop.f32.mrb[0].mxu0
  %1680 = vdwg.mxu0
  %v1681 = vld [vmem:[%s3 + $0x24] sm:$0x1]
  %v1682 = vlaneseq
  %v1683 = vshrl.u32 %v1682, 7
  %v1684 = vsub.s32 0, %v1683
  %v1685 = vrot.slane %v1681, %v1684
  %v1686 = vadd.f32 %v1675, %v1685
  %v1687 = vadd.f32 %v1678, %v1685
  %v1688 = vld [vmem:[%s3 + $0xc] sm:$0x1]
  %v1689 = vpack.c.bf16 %v1687, %v1686
  %v1690 = vld [vmem:[%s1 + $0xb8] sm:$0xf]
  %v1691 = vld [vmem:[%s1 + $0xbc] sm:$0xf]
  %v1692 = vld [vmem:[%s1 + $0xc0] sm:$0xf]
  %v1693 = vld [vmem:[%s1 + $0xc4] sm:$0xf]
  %v1698 = vunpack.c.l.b16 %v1690
  %v1699 = vunpack.c.l.b16 %v1691
  %v1700 = vunpack.c.l.b16 %v1692
  %v1701 = vunpack.c.l.b16 %v1693
  %v1702 = vpack.c.b16 %v1699, %v1698
  %v1703 = vpack.c.b16 %v1701, %v1700
  %v1707 = vsel %vm294, %v1689, 0
  %1709 = vmatprep.subr.bf16.mxu0 0
  %1710 = vmatpush1.bf16.msra.mxu0 %v1702
  %1711 = vmatprep.subr.bf16.mxu0 0
  %1712 = vmatpush1.bf16.msra.mxu0 %v1703
  %1713 = vmatprep.subr.bf16.mxu0 0
  %1714 = vmatpush1.bf16.msra.mxu0 0
  %1715 = vmatprep.subr.bf16.mxu0 0
  %1716 = vmatpush1.bf16.msra.mxu0 0
  %1717 = vmatprep.subr.bf16.mxu0 0
  %1718 = vmatpush1.bf16.msra.mxu0 0
  %1719 = vmatprep.subr.bf16.mxu0 0
  %1720 = vmatpush1.bf16.msra.mxu0 0
  %1721 = vmatprep.subr.bf16.mxu0 0
  %1722 = vmatpush1.bf16.msra.mxu0 0
  %1723 = vmatprep.subr.bf16.mxu0 0
  %1724 = vmatpush1.bf16.msra.mxu0 0
  %1725 = vmatprep.subr.bf16.mxu0 0
  %1726 = vmatpush1.bf16.msra.mxu0 0
  %1727 = vmatprep.subr.bf16.mxu0 0
  %1728 = vmatpush1.bf16.msra.mxu0 0
  %1729 = vmatprep.subr.bf16.mxu0 0
  %1730 = vmatpush1.bf16.msra.mxu0 0
  %1731 = vmatprep.subr.bf16.mxu0 0
  %1732 = vmatpush1.bf16.msra.mxu0 0
  %1733 = vmatprep.subr.bf16.mxu0 0
  %1734 = vmatpush1.bf16.msra.mxu0 0
  %1735 = vmatprep.subr.bf16.mxu0 0
  %1736 = vmatpush1.bf16.msra.mxu0 0
  %1737 = vmatprep.subr.bf16.mxu0 0
  %1738 = vmatpush1.bf16.msra.mxu0 0
  %1739 = vmatprep.subr.bf16.mxu0 0
  %1740 = vmatpush1.bf16.msra.mxu0 0
  %1741 = vmatprep.mubr.bf16.mxu0 0
  %1742 = vmatmul.mubr.bf16.gmra.mrb[0].mxu0 %v1707
  %v1743 = vpop.f32.mrb[0].mxu0
  %v1744 = vadd.f32 0.0, %v1743
  %v1745 = vpop.f32.mrb[0].mxu0
  %v1746 = vpop.f32.mrb[0].mxu0
  %v1747 = vadd.f32 0.0, %v1746
  %v1748 = vpop.f32.mrb[0].mxu0
  %1749 = vdwg.mxu0
  %v1750 = vlaneseq
  %v1751 = vshrl.u32 %v1750, 7
  %v1752 = vsub.s32 0, %v1751
  %v1753 = vrot.slane %v1688, %v1752
  %v1754 = vadd.f32 %v1753, %v1744
  %v1755 = vadd.f32 %v1753, %v1747
  %v1756 = vld [vmem:[%s3 + $0xd] sm:$0x1]
  %v1757 = vmul.f32 %v1754, %v1754
  %v1758 = vmul.f32 %v1755, %v1755
  %v1759 = vpack.c.bf16 %v1758, %v1757
  %v1760 = vld [vmem:[%s1 + $0x10] sm:$0xf]
  %v1761 = vld [vmem:[%s1 + $0x14] sm:$0xf]
  %v1762 = vld [vmem:[%s1 + $0x18] sm:$0xf]
  %v1763 = vld [vmem:[%s1 + $0x1c] sm:$0xf]
  %v1764 = vld [vmem:[%s1 + $0x20] sm:$0xf]
  %v1765 = vld [vmem:[%s1 + $0x24] sm:$0xf]
  %v1766 = vld [vmem:[%s1 + $0x28] sm:$0xf]
  %v1767 = vld [vmem:[%s1 + $0x2c] sm:$0xf]
  %v1776 = vunpack.c.l.b16 %v1760
  %v1777 = vunpack.c.l.b16 %v1761
  %v1778 = vunpack.c.l.b16 %v1762
  %v1779 = vunpack.c.l.b16 %v1763
  %v1780 = vunpack.c.l.b16 %v1764
  %v1781 = vunpack.c.l.b16 %v1765
  %v1782 = vunpack.c.l.b16 %v1766
  %v1783 = vunpack.c.l.b16 %v1767
  %v1784 = vpack.c.b16 %v1777, %v1776
  %v1785 = vpack.c.b16 %v1779, %v1778
  %v1786 = vpack.c.b16 %v1781, %v1780
  %v1787 = vpack.c.b16 %v1783, %v1782
  %vm1792 = vcmask 523264
  %v1794 = vsel %vm1792, %v1759, 0
  %1796 = vmatprep.subr.bf16.mxu0 0
  %1797 = vmatpush1.bf16.msra.mxu0 %v1784
  %1798 = vmatprep.subr.bf16.mxu0 0
  %1799 = vmatpush1.bf16.msra.mxu0 %v1785
  %1800 = vmatprep.subr.bf16.mxu0 0
  %1801 = vmatpush1.bf16.msra.mxu0 %v1786
  %1802 = vmatprep.subr.bf16.mxu0 0
  %1803 = vmatpush1.bf16.msra.mxu0 %v1787
  %1804 = vmatprep.subr.bf16.mxu0 0
  %1805 = vmatpush1.bf16.msra.mxu0 0
  %1806 = vmatprep.subr.bf16.mxu0 0
  %1807 = vmatpush1.bf16.msra.mxu0 0
  %1808 = vmatprep.subr.bf16.mxu0 0
  %1809 = vmatpush1.bf16.msra.mxu0 0
  %1810 = vmatprep.subr.bf16.mxu0 0
  %1811 = vmatpush1.bf16.msra.mxu0 0
  %1812 = vmatprep.subr.bf16.mxu0 0
  %1813 = vmatpush1.bf16.msra.mxu0 0
  %1814 = vmatprep.subr.bf16.mxu0 0
  %1815 = vmatpush1.bf16.msra.mxu0 0
  %1816 = vmatprep.subr.bf16.mxu0 0
  %1817 = vmatpush1.bf16.msra.mxu0 0
  %1818 = vmatprep.subr.bf16.mxu0 0
  %1819 = vmatpush1.bf16.msra.mxu0 0
  %1820 = vmatprep.subr.bf16.mxu0 0
  %1821 = vmatpush1.bf16.msra.mxu0 0
  %1822 = vmatprep.subr.bf16.mxu0 0
  %1823 = vmatpush1.bf16.msra.mxu0 0
  %1824 = vmatprep.subr.bf16.mxu0 0
  %1825 = vmatpush1.bf16.msra.mxu0 0
  %1826 = vmatprep.subr.bf16.mxu0 0
  %1827 = vmatpush1.bf16.msra.mxu0 0
  %1828 = vmatprep.mubr.bf16.mxu0 0
  %1829 = vmatmul.mubr.bf16.gmra.mrb[0].mxu0 %v1794
  %v1830 = vpop.f32.mrb[0].mxu0
  %v1831 = vadd.f32 0.0, %v1830
  %v1832 = vpop.f32.mrb[0].mxu0
  %v1833 = vpop.f32.mrb[0].mxu0
  %v1834 = vadd.f32 0.0, %v1833
  %v1835 = vpop.f32.mrb[0].mxu0
  %1836 = vdwg.mxu0
  %v1837 = vadd.f32 %v1831, 1e-05
  %v1838 = vadd.f32 %v1834, 1e-05
  %v1839 = vrsqrt.pop %v1837
  %v1840 = vrsqrt.pop %v1838
  %v1841 = vmul.f32 %v1754, %v1839
  %v1842 = vmul.f32 %v1755, %v1840
  %v1843 = vlaneseq
  %v1844 = vshrl.u32 %v1843, 7
  %v1845 = vsub.s32 0, %v1844
  %v1846 = vrot.slane %v1756, %v1845
  %v1847 = vmul.f32 %v1841, %v1846
  %v1848 = vmul.f32 %v1842, %v1846
  %1850 = vrot.lane.b32.xlu0 %v1846, 64
  %v1851 = vpop.permute.xlu0 %1850
  %v1853 = vadd.f32 %v1847, %v1851
  %v1854 = vadd.f32 %v1848, %v1851
  %v1855 = vmin.f32 %v1853, 20.0
  %v1856 = vmin.f32 %v1854, 20.0
  %v1857 = vmul.f32 %v1855, 1.442695
  %v1858 = vpow.pop %v1857
  %v1859 = vmul.f32 %v1856, 1.442695
  %v1860 = vpow.pop %v1859
  %v1861 = vadd.f32 %v1858, 2.0
  %v1862 = vadd.f32 %v1860, 2.0
  %v1863 = vmul.f32 %v1858, %v1861
  %v1864 = vmul.f32 %v1860, %v1862
  %v1865 = vmul.f32 %v1853, %v1863
  %v1866 = vmul.f32 %v1854, %v1864
  %v1867 = vadd.f32 %v1863, 2.0
  %v1868 = vadd.f32 %v1864, 2.0
  %v1869 = vrcp.pop %v1867
  %v1870 = vrcp.pop %v1868
  %v1871 = vmul.f32 %v1865, %v1869
  %v1872 = vmul.f32 %v1866, %v1870
  %v1873 = vmul.f32 %v953, %v1871
  %v1874 = vmul.f32 %v959, %v1872
  %1877 = vrot.lane.b32.xlu0 %v953, 64
  %v1878 = vpop.permute.xlu0 %1877
  %1879 = vrot.lane.b32.xlu0 %v959, 64
  %v1880 = vpop.permute.xlu0 %1879
  %v1883 = vadd.f32 %v1873, %v1878
  %v1884 = vadd.f32 %v1874, %v1880
  %v1885 = vpack.c.bf16 %v1884, %v1883
  %v1886 = vld [vmem:[%s1 + $0xc8] sm:$0xf]
  %v1887 = vld [vmem:[%s1 + $0xcc] sm:$0xf]
  %v1888 = vld [vmem:[%s1 + $0xd0] sm:$0xf]
  %v1889 = vld [vmem:[%s1 + $0xd4] sm:$0xf]
  %v1890 = vld [vmem:[%s1 + $0xd8] sm:$0xf]
  %v1891 = vld [vmem:[%s1 + $0xdc] sm:$0xf]
  %v1892 = vld [vmem:[%s1 + $0xe0] sm:$0xf]
  %v1893 = vld [vmem:[%s1 + $0xe4] sm:$0xf]
  %v1902 = vunpack.c.l.b16 %v1886
  %v1903 = vunpack.c.l.b16 %v1887
  %v1904 = vunpack.c.l.b16 %v1888
  %v1905 = vunpack.c.l.b16 %v1889
  %v1906 = vunpack.c.l.b16 %v1890
  %v1907 = vunpack.c.l.b16 %v1891
  %v1908 = vunpack.c.l.b16 %v1892
  %v1909 = vunpack.c.l.b16 %v1893
  %v1910 = vpack.c.b16 %v1903, %v1902
  %v1911 = vpack.c.b16 %v1905, %v1904
  %v1912 = vpack.c.b16 %v1907, %v1906
  %v1913 = vpack.c.b16 %v1909, %v1908
  %v1919 = vsel %vm1792, %v1885, 0
  %1921 = vmatprep.subr.bf16.mxu0 0
  %1922 = vmatpush1.bf16.msra.mxu0 %v1910
  %1923 = vmatprep.subr.bf16.mxu0 0
  %1924 = vmatpush1.bf16.msra.mxu0 %v1911
  %1925 = vmatprep.subr.bf16.mxu0 0
  %1926 = vmatpush1.bf16.msra.mxu0 %v1912
  %1927 = vmatprep.subr.bf16.mxu0 0
  %1928 = vmatpush1.bf16.msra.mxu0 %v1913
  %1929 = vmatprep.subr.bf16.mxu0 0
  %1930 = vmatpush1.bf16.msra.mxu0 0
  %1931 = vmatprep.subr.bf16.mxu0 0
  %1932 = vmatpush1.bf16.msra.mxu0 0
  %1933 = vmatprep.subr.bf16.mxu0 0
  %1934 = vmatpush1.bf16.msra.mxu0 0
  %1935 = vmatprep.subr.bf16.mxu0 0
  %1936 = vmatpush1.bf16.msra.mxu0 0
  %1937 = vmatprep.subr.bf16.mxu0 0
  %1938 = vmatpush1.bf16.msra.mxu0 0
  %1939 = vmatprep.subr.bf16.mxu0 0
  %1940 = vmatpush1.bf16.msra.mxu0 0
  %1941 = vmatprep.subr.bf16.mxu0 0
  %1942 = vmatpush1.bf16.msra.mxu0 0
  %1943 = vmatprep.subr.bf16.mxu0 0
  %1944 = vmatpush1.bf16.msra.mxu0 0
  %1945 = vmatprep.subr.bf16.mxu0 0
  %1946 = vmatpush1.bf16.msra.mxu0 0
  %1947 = vmatprep.subr.bf16.mxu0 0
  %1948 = vmatpush1.bf16.msra.mxu0 0
  %1949 = vmatprep.subr.bf16.mxu0 0
  %1950 = vmatpush1.bf16.msra.mxu0 0
  %1951 = vmatprep.subr.bf16.mxu0 0
  %1952 = vmatpush1.bf16.msra.mxu0 0
  %1953 = vmatprep.mubr.bf16.mxu0 0
  %1954 = vmatmul.mubr.bf16.gmra.mrb[0].mxu0 %v1919
  %v1955 = vpop.f32.mrb[0].mxu0
  %v1956 = vadd.f32 0.0, %v1955
  %v1957 = vpop.f32.mrb[0].mxu0
  %v1958 = vpop.f32.mrb[0].mxu0
  %v1959 = vadd.f32 0.0, %v1958
  %v1960 = vpop.f32.mrb[0].mxu0
  %1961 = vdwg.mxu0
  %v1962 = vld [vmem:[%s3 + $0xe] sm:$0x1]
  %v1963 = vlaneseq
  %v1964 = vshrl.u32 %v1963, 7
  %v1965 = vsub.s32 0, %v1964
  %v1966 = vrot.slane %v1962, %v1965
  %v1967 = vadd.f32 %v1956, %v1966
  %v1968 = vadd.f32 %v1959, %v1966
  %v1969 = vld [vmem:[%s3 + $0xf] sm:$0x1]
  %v1970 = vmul.f32 %v1967, %v1967
  %v1971 = vmul.f32 %v1968, %v1968
  %v1972 = vpack.c.bf16 %v1971, %v1970
  %v1974 = vsel %vm1792, %v1972, 0
  %1976 = vmatprep.subr.bf16.mxu0 0
  %1977 = vmatpush1.bf16.msra.mxu0 %v1784
  %1978 = vmatprep.subr.bf16.mxu0 0
  %1979 = vmatpush1.bf16.msra.mxu0 %v1785
  %1980 = vmatprep.subr.bf16.mxu0 0
  %1981 = vmatpush1.bf16.msra.mxu0 %v1786
  %1982 = vmatprep.subr.bf16.mxu0 0
  %1983 = vmatpush1.bf16.msra.mxu0 %v1787
  %1984 = vmatprep.subr.bf16.mxu0 0
  %1985 = vmatpush1.bf16.msra.mxu0 0
  %1986 = vmatprep.subr.bf16.mxu0 0
  %1987 = vmatpush1.bf16.msra.mxu0 0
  %1988 = vmatprep.subr.bf16.mxu0 0
  %1989 = vmatpush1.bf16.msra.mxu0 0
  %1990 = vmatprep.subr.bf16.mxu0 0
  %1991 = vmatpush1.bf16.msra.mxu0 0
  %1992 = vmatprep.subr.bf16.mxu0 0
  %1993 = vmatpush1.bf16.msra.mxu0 0
  %1994 = vmatprep.subr.bf16.mxu0 0
  %1995 = vmatpush1.bf16.msra.mxu0 0
  %1996 = vmatprep.subr.bf16.mxu0 0
  %1997 = vmatpush1.bf16.msra.mxu0 0
  %1998 = vmatprep.subr.bf16.mxu0 0
  %1999 = vmatpush1.bf16.msra.mxu0 0
  %2000 = vmatprep.subr.bf16.mxu0 0
  %2001 = vmatpush1.bf16.msra.mxu0 0
  %2002 = vmatprep.subr.bf16.mxu0 0
  %2003 = vmatpush1.bf16.msra.mxu0 0
  %2004 = vmatprep.subr.bf16.mxu0 0
  %2005 = vmatpush1.bf16.msra.mxu0 0
  %2006 = vmatprep.subr.bf16.mxu0 0
  %2007 = vmatpush1.bf16.msra.mxu0 0
  %2008 = vmatprep.mubr.bf16.mxu0 0
  %2009 = vmatmul.mubr.bf16.gmra.mrb[0].mxu0 %v1974
  %v2010 = vpop.f32.mrb[0].mxu0
  %v2011 = vadd.f32 0.0, %v2010
  %v2012 = vpop.f32.mrb[0].mxu0
  %v2013 = vpop.f32.mrb[0].mxu0
  %v2014 = vadd.f32 0.0, %v2013
  %v2015 = vpop.f32.mrb[0].mxu0
  %2016 = vdwg.mxu0
  %v2017 = vadd.f32 %v2011, 1e-05
  %v2018 = vadd.f32 %v2014, 1e-05
  %v2019 = vrsqrt.pop %v2017
  %v2020 = vrsqrt.pop %v2018
  %v2021 = vmul.f32 %v1967, %v2019
  %v2022 = vmul.f32 %v1968, %v2020
  %v2023 = vlaneseq
  %v2024 = vshrl.u32 %v2023, 7
  %v2025 = vsub.s32 0, %v2024
  %v2026 = vrot.slane %v1969, %v2025
  %v2027 = vmul.f32 %v2021, %v2026
  %v2028 = vmul.f32 %v2022, %v2026
  %2030 = vrot.lane.b32.xlu0 %v2026, 64
  %v2031 = vpop.permute.xlu0 %2030
  %v2033 = vadd.f32 %v2027, %v2031
  %v2034 = vadd.f32 %v2028, %v2031
  %v2035 = vmin.f32 %v2033, 20.0
  %v2036 = vmin.f32 %v2034, 20.0
  %v2037 = vmul.f32 %v2035, 1.442695
  %v2038 = vpow.pop %v2037
  %v2039 = vmul.f32 %v2036, 1.442695
  %v2040 = vpow.pop %v2039
  %v2041 = vadd.f32 %v2038, 2.0
  %v2042 = vadd.f32 %v2040, 2.0
  %v2043 = vmul.f32 %v2038, %v2041
  %v2044 = vmul.f32 %v2040, %v2042
  %v2045 = vmul.f32 %v2033, %v2043
  %v2046 = vmul.f32 %v2034, %v2044
  %v2047 = vadd.f32 %v2043, 2.0
  %v2048 = vadd.f32 %v2044, 2.0
  %v2049 = vrcp.pop %v2047
  %v2050 = vrcp.pop %v2048
  %v2051 = vmul.f32 %v2045, %v2049
  %v2052 = vmul.f32 %v2046, %v2050
  %2055 = vrot.lane.b32.xlu0 %v1754, 64
  %v2056 = vpop.permute.xlu0 %2055
  %2057 = vrot.lane.b32.xlu0 %v1755, 64
  %v2058 = vpop.permute.xlu0 %2057
  %v2061 = vadd.f32 %v2051, %v2056
  %v2062 = vadd.f32 %v2052, %v2058
  %v2063 = vld [vmem:[%s3 + $0x10] sm:$0x1]
  %v2064 = vpack.c.bf16 %v2062, %v2061
  %v2065 = vld [vmem:[%s1 + $0xe8] sm:$0xf]
  %v2066 = vld [vmem:[%s1 + $0xec] sm:$0xf]
  %v2067 = vld [vmem:[%s1 + $0xf0] sm:$0xf]
  %v2068 = vld [vmem:[%s1 + $0xf4] sm:$0xf]
  %v2069 = vld [vmem:[%s1 + $0xf8] sm:$0xf]
  %v2070 = vld [vmem:[%s1 + $0xfc] sm:$0xf]
  %v2071 = vld [vmem:[%s1 + $0x100] sm:$0xf]
  %v2072 = vld [vmem:[%s1 + $0x104] sm:$0xf]
  %v2081 = vunpack.c.l.b16 %v2065
  %v2082 = vunpack.c.l.b16 %v2066
  %v2083 = vunpack.c.l.b16 %v2067
  %v2084 = vunpack.c.l.b16 %v2068
  %v2085 = vunpack.c.l.b16 %v2069
  %v2086 = vunpack.c.l.b16 %v2070
  %v2087 = vunpack.c.l.b16 %v2071
  %v2088 = vunpack.c.l.b16 %v2072
  %v2089 = vpack.c.b16 %v2082, %v2081
  %v2090 = vpack.c.b16 %v2084, %v2083
  %v2091 = vpack.c.b16 %v2086, %v2085
  %v2092 = vpack.c.b16 %v2088, %v2087
  %v2098 = vsel %vm1792, %v2064, 0
  %2100 = vmatprep.subr.bf16.mxu0 0
  %2101 = vmatpush1.bf16.msra.mxu0 %v2089
  %2102 = vmatprep.subr.bf16.mxu0 0
  %2103 = vmatpush1.bf16.msra.mxu0 %v2090
  %2104 = vmatprep.subr.bf16.mxu0 0
  %2105 = vmatpush1.bf16.msra.mxu0 %v2091
  %2106 = vmatprep.subr.bf16.mxu0 0
  %2107 = vmatpush1.bf16.msra.mxu0 %v2092
  %2108 = vmatprep.subr.bf16.mxu0 0
  %2109 = vmatpush1.bf16.msra.mxu0 0
  %2110 = vmatprep.subr.bf16.mxu0 0
  %2111 = vmatpush1.bf16.msra.mxu0 0
  %2112 = vmatprep.subr.bf16.mxu0 0
  %2113 = vmatpush1.bf16.msra.mxu0 0
  %2114 = vmatprep.subr.bf16.mxu0 0
  %2115 = vmatpush1.bf16.msra.mxu0 0
  %2116 = vmatprep.subr.bf16.mxu0 0
  %2117 = vmatpush1.bf16.msra.mxu0 0
  %2118 = vmatprep.subr.bf16.mxu0 0
  %2119 = vmatpush1.bf16.msra.mxu0 0
  %2120 = vmatprep.subr.bf16.mxu0 0
  %2121 = vmatpush1.bf16.msra.mxu0 0
  %2122 = vmatprep.subr.bf16.mxu0 0
  %2123 = vmatpush1.bf16.msra.mxu0 0
  %2124 = vmatprep.subr.bf16.mxu0 0
  %2125 = vmatpush1.bf16.msra.mxu0 0
  %2126 = vmatprep.subr.bf16.mxu0 0
  %2127 = vmatpush1.bf16.msra.mxu0 0
  %2128 = vmatprep.subr.bf16.mxu0 0
  %2129 = vmatpush1.bf16.msra.mxu0 0
  %2130 = vmatprep.subr.bf16.mxu0 0
  %2131 = vmatpush1.bf16.msra.mxu0 0
  %2132 = vmatprep.mubr.bf16.mxu0 0
  %2133 = vmatmul.mubr.bf16.gmra.mrb[0].mxu0 %v2098
  %v2134 = vpop.f32.mrb[0].mxu0
  %v2135 = vadd.f32 0.0, %v2134
  %v2136 = vpop.f32.mrb[0].mxu0
  %v2137 = vpop.f32.mrb[0].mxu0
  %v2138 = vadd.f32 0.0, %v2137
  %v2139 = vpop.f32.mrb[0].mxu0
  %2140 = vdwg.mxu0
  %v2141 = vlaneseq
  %v2142 = vshrl.u32 %v2141, 7
  %v2143 = vsub.s32 0, %v2142
  %v2144 = vrot.slane %v2063, %v2143
  %v2145 = vadd.f32 %v2144, %v2135
  %v2146 = vadd.f32 %v2144, %v2138
  %v2147 = vld [vmem:[%s3 + $0x11] sm:$0x1]
  %v2148 = vmul.f32 %v2145, %v2145
  %v2149 = vmul.f32 %v2146, %v2146
  %v2150 = vpack.c.bf16 %v2149, %v2148
  %v2152 = vsel %vm1792, %v2150, 0
  %2154 = vmatprep.subr.bf16.mxu0 0
  %2155 = vmatpush1.bf16.msra.mxu0 %v1784
  %2156 = vmatprep.subr.bf16.mxu0 0
  %2157 = vmatpush1.bf16.msra.mxu0 %v1785
  %2158 = vmatprep.subr.bf16.mxu0 0
  %2159 = vmatpush1.bf16.msra.mxu0 %v1786
  %2160 = vmatprep.subr.bf16.mxu0 0
  %2161 = vmatpush1.bf16.msra.mxu0 %v1787
  %2162 = vmatprep.subr.bf16.mxu0 0
  %2163 = vmatpush1.bf16.msra.mxu0 0
  %2164 = vmatprep.subr.bf16.mxu0 0
  %2165 = vmatpush1.bf16.msra.mxu0 0
  %2166 = vmatprep.subr.bf16.mxu0 0
  %2167 = vmatpush1.bf16.msra.mxu0 0
  %2168 = vmatprep.subr.bf16.mxu0 0
  %2169 = vmatpush1.bf16.msra.mxu0 0
  %2170 = vmatprep.subr.bf16.mxu0 0
  %2171 = vmatpush1.bf16.msra.mxu0 0
  %2172 = vmatprep.subr.bf16.mxu0 0
  %2173 = vmatpush1.bf16.msra.mxu0 0
  %2174 = vmatprep.subr.bf16.mxu0 0
  %2175 = vmatpush1.bf16.msra.mxu0 0
  %2176 = vmatprep.subr.bf16.mxu0 0
  %2177 = vmatpush1.bf16.msra.mxu0 0
  %2178 = vmatprep.subr.bf16.mxu0 0
  %2179 = vmatpush1.bf16.msra.mxu0 0
  %2180 = vmatprep.subr.bf16.mxu0 0
  %2181 = vmatpush1.bf16.msra.mxu0 0
  %2182 = vmatprep.subr.bf16.mxu0 0
  %2183 = vmatpush1.bf16.msra.mxu0 0
  %2184 = vmatprep.subr.bf16.mxu0 0
  %2185 = vmatpush1.bf16.msra.mxu0 0
  %2186 = vmatprep.mubr.bf16.mxu0 0
  %2187 = vmatmul.mubr.bf16.gmra.mrb[0].mxu0 %v2152
  %v2188 = vpop.f32.mrb[0].mxu0
  %v2189 = vadd.f32 0.0, %v2188
  %v2190 = vpop.f32.mrb[0].mxu0
  %v2191 = vpop.f32.mrb[0].mxu0
  %v2192 = vadd.f32 0.0, %v2191
  %v2193 = vpop.f32.mrb[0].mxu0
  %2194 = vdwg.mxu0
  %v2195 = vadd.f32 %v2189, 1e-05
  %v2196 = vadd.f32 %v2192, 1e-05
  %v2197 = vrsqrt.pop %v2195
  %v2198 = vrsqrt.pop %v2196
  %v2199 = vmul.f32 %v2145, %v2197
  %v2200 = vmul.f32 %v2146, %v2198
  %v2201 = vlaneseq
  %v2202 = vshrl.u32 %v2201, 7
  %v2203 = vsub.s32 0, %v2202
  %v2204 = vrot.slane %v2147, %v2203
  %v2205 = vmul.f32 %v2199, %v2204
  %v2206 = vmul.f32 %v2200, %v2204
  %2208 = vrot.lane.b32.xlu0 %v2204, 64
  %v2209 = vpop.permute.xlu0 %2208
  %v2211 = vadd.f32 %v2205, %v2209
  %v2212 = vadd.f32 %v2206, %v2209
  %v2213 = vmin.f32 %v2211, 20.0
  %v2214 = vmin.f32 %v2212, 20.0
  %v2215 = vmul.f32 %v2213, 1.442695
  %v2216 = vpow.pop %v2215
  %v2217 = vmul.f32 %v2214, 1.442695
  %v2218 = vpow.pop %v2217
  %v2219 = vadd.f32 %v2216, 2.0
  %v2220 = vadd.f32 %v2218, 2.0
  %v2221 = vmul.f32 %v2216, %v2219
  %v2222 = vmul.f32 %v2218, %v2220
  %v2223 = vmul.f32 %v2211, %v2221
  %v2224 = vmul.f32 %v2212, %v2222
  %v2225 = vadd.f32 %v2221, 2.0
  %v2226 = vadd.f32 %v2222, 2.0
  %v2227 = vrcp.pop %v2225
  %v2228 = vrcp.pop %v2226
  %v2229 = vmul.f32 %v2223, %v2227
  %v2230 = vmul.f32 %v2224, %v2228
  %v2231 = vmul.f32 %v954, %v2229
  %v2232 = vmul.f32 %v960, %v2230
  %2235 = vrot.lane.b32.xlu0 %v954, 64
  %v2236 = vpop.permute.xlu0 %2235
  %2237 = vrot.lane.b32.xlu0 %v960, 64
  %v2238 = vpop.permute.xlu0 %2237
  %v2241 = vadd.f32 %v2231, %v2236
  %v2242 = vadd.f32 %v2232, %v2238
  %v2243 = vpack.c.bf16 %v2242, %v2241
  %v2244 = vld [vmem:[%s1 + $0x108] sm:$0xf]
  %v2245 = vld [vmem:[%s1 + $0x10c] sm:$0xf]
  %v2246 = vld [vmem:[%s1 + $0x110] sm:$0xf]
  %v2247 = vld [vmem:[%s1 + $0x114] sm:$0xf]
  %v2248 = vld [vmem:[%s1 + $0x118] sm:$0xf]
  %v2249 = vld [vmem:[%s1 + $0x11c] sm:$0xf]
  %v2250 = vld [vmem:[%s1 + $0x120] sm:$0xf]
  %v2251 = vld [vmem:[%s1 + $0x124] sm:$0xf]
  %v2260 = vunpack.c.l.b16 %v2244
  %v2261 = vunpack.c.l.b16 %v2245
  %v2262 = vunpack.c.l.b16 %v2246
  %v2263 = vunpack.c.l.b16 %v2247
  %v2264 = vunpack.c.l.b16 %v2248
  %v2265 = vunpack.c.l.b16 %v2249
  %v2266 = vunpack.c.l.b16 %v2250
  %v2267 = vunpack.c.l.b16 %v2251
  %v2268 = vpack.c.b16 %v2261, %v2260
  %v2269 = vpack.c.b16 %v2263, %v2262
  %v2270 = vpack.c.b16 %v2265, %v2264
  %v2271 = vpack.c.b16 %v2267, %v2266
  %v2277 = vsel %vm1792, %v2243, 0
  %2279 = vmatprep.subr.bf16.mxu0 0
  %2280 = vmatpush1.bf16.msra.mxu0 %v2268
  %2281 = vmatprep.subr.bf16.mxu0 0
  %2282 = vmatpush1.bf16.msra.mxu0 %v2269
  %2283 = vmatprep.subr.bf16.mxu0 0
  %2284 = vmatpush1.bf16.msra.mxu0 %v2270
  %2285 = vmatprep.subr.bf16.mxu0 0
  %2286 = vmatpush1.bf16.msra.mxu0 %v2271
  %2287 = vmatprep.subr.bf16.mxu0 0
  %2288 = vmatpush1.bf16.msra.mxu0 0
  %2289 = vmatprep.subr.bf16.mxu0 0
  %2290 = vmatpush1.bf16.msra.mxu0 0
  %2291 = vmatprep.subr.bf16.mxu0 0
  %2292 = vmatpush1.bf16.msra.mxu0 0
  %2293 = vmatprep.subr.bf16.mxu0 0
  %2294 = vmatpush1.bf16.msra.mxu0 0
  %2295 = vmatprep.subr.bf16.mxu0 0
  %2296 = vmatpush1.bf16.msra.mxu0 0
  %2297 = vmatprep.subr.bf16.mxu0 0
  %2298 = vmatpush1.bf16.msra.mxu0 0
  %2299 = vmatprep.subr.bf16.mxu0 0
  %2300 = vmatpush1.bf16.msra.mxu0 0
  %2301 = vmatprep.subr.bf16.mxu0 0
  %2302 = vmatpush1.bf16.msra.mxu0 0
  %2303 = vmatprep.subr.bf16.mxu0 0
  %2304 = vmatpush1.bf16.msra.mxu0 0
  %2305 = vmatprep.subr.bf16.mxu0 0
  %2306 = vmatpush1.bf16.msra.mxu0 0
  %2307 = vmatprep.subr.bf16.mxu0 0
  %2308 = vmatpush1.bf16.msra.mxu0 0
  %2309 = vmatprep.subr.bf16.mxu0 0
  %2310 = vmatpush1.bf16.msra.mxu0 0
  %2311 = vmatprep.mubr.bf16.mxu0 0
  %2312 = vmatmul.mubr.bf16.gmra.mrb[0].mxu0 %v2277
  %v2313 = vpop.f32.mrb[0].mxu0
  %v2314 = vadd.f32 0.0, %v2313
  %v2315 = vpop.f32.mrb[0].mxu0
  %v2316 = vpop.f32.mrb[0].mxu0
  %v2317 = vadd.f32 0.0, %v2316
  %v2318 = vpop.f32.mrb[0].mxu0
  %2319 = vdwg.mxu0
  %v2320 = vld [vmem:[%s3 + $0x12] sm:$0x1]
  %v2321 = vlaneseq
  %v2322 = vshrl.u32 %v2321, 7
  %v2323 = vsub.s32 0, %v2322
  %v2324 = vrot.slane %v2320, %v2323
  %v2325 = vadd.f32 %v2314, %v2324
  %v2326 = vadd.f32 %v2317, %v2324
  %v2327 = vld [vmem:[%s3 + $0x13] sm:$0x1]
  %v2328 = vmul.f32 %v2325, %v2325
  %v2329 = vmul.f32 %v2326, %v2326
  %v2330 = vpack.c.bf16 %v2329, %v2328
  %v2332 = vsel %vm1792, %v2330, 0
  %2334 = vmatprep.subr.bf16.mxu0 0
  %2335 = vmatpush1.bf16.msra.mxu0 %v1784
  %2336 = vmatprep.subr.bf16.mxu0 0
  %2337 = vmatpush1.bf16.msra.mxu0 %v1785
  %2338 = vmatprep.subr.bf16.mxu0 0
  %2339 = vmatpush1.bf16.msra.mxu0 %v1786
  %2340 = vmatprep.subr.bf16.mxu0 0
  %2341 = vmatpush1.bf16.msra.mxu0 %v1787
  %2342 = vmatprep.subr.bf16.mxu0 0
  %2343 = vmatpush1.bf16.msra.mxu0 0
  %2344 = vmatprep.subr.bf16.mxu0 0
  %2345 = vmatpush1.bf16.msra.mxu0 0
  %2346 = vmatprep.subr.bf16.mxu0 0
  %2347 = vmatpush1.bf16.msra.mxu0 0
  %2348 = vmatprep.subr.bf16.mxu0 0
  %2349 = vmatpush1.bf16.msra.mxu0 0
  %2350 = vmatprep.subr.bf16.mxu0 0
  %2351 = vmatpush1.bf16.msra.mxu0 0
  %2352 = vmatprep.subr.bf16.mxu0 0
  %2353 = vmatpush1.bf16.msra.mxu0 0
  %2354 = vmatprep.subr.bf16.mxu0 0
  %2355 = vmatpush1.bf16.msra.mxu0 0
  %2356 = vmatprep.subr.bf16.mxu0 0
  %2357 = vmatpush1.bf16.msra.mxu0 0
  %2358 = vmatprep.subr.bf16.mxu0 0
  %2359 = vmatpush1.bf16.msra.mxu0 0
  %2360 = vmatprep.subr.bf16.mxu0 0
  %2361 = vmatpush1.bf16.msra.mxu0 0
  %2362 = vmatprep.subr.bf16.mxu0 0
  %2363 = vmatpush1.bf16.msra.mxu0 0
  %2364 = vmatprep.subr.bf16.mxu0 0
  %2365 = vmatpush1.bf16.msra.mxu0 0
  %2366 = vmatprep.mubr.bf16.mxu0 0
  %2367 = vmatmul.mubr.bf16.gmra.mrb[0].mxu0 %v2332
  %v2368 = vpop.f32.mrb[0].mxu0
  %v2369 = vadd.f32 0.0, %v2368
  %v2370 = vpop.f32.mrb[0].mxu0
  %v2371 = vpop.f32.mrb[0].mxu0
  %v2372 = vadd.f32 0.0, %v2371
  %v2373 = vpop.f32.mrb[0].mxu0
  %2374 = vdwg.mxu0
  %v2375 = vadd.f32 %v2369, 1e-05
  %v2376 = vadd.f32 %v2372, 1e-05
  %v2377 = vrsqrt.pop %v2375
  %v2378 = vrsqrt.pop %v2376
  %v2379 = vmul.f32 %v2325, %v2377
  %v2380 = vmul.f32 %v2326, %v2378
  %v2381 = vlaneseq
  %v2382 = vshrl.u32 %v2381, 7
  %v2383 = vsub.s32 0, %v2382
  %v2384 = vrot.slane %v2327, %v2383
  %v2385 = vmul.f32 %v2379, %v2384
  %v2386 = vmul.f32 %v2380, %v2384
  %2388 = vrot.lane.b32.xlu0 %v2384, 64
  %v2389 = vpop.permute.xlu0 %2388
  %v2391 = vadd.f32 %v2385, %v2389
  %v2392 = vadd.f32 %v2386, %v2389
  %v2393 = vmin.f32 %v2391, 20.0
  %v2394 = vmin.f32 %v2392, 20.0
  %v2395 = vmul.f32 %v2393, 1.442695
  %v2396 = vpow.pop %v2395
  %v2397 = vmul.f32 %v2394, 1.442695
  %v2398 = vpow.pop %v2397
  %v2399 = vadd.f32 %v2396, 2.0
  %v2400 = vadd.f32 %v2398, 2.0
  %v2401 = vmul.f32 %v2396, %v2399
  %v2402 = vmul.f32 %v2398, %v2400
  %v2403 = vmul.f32 %v2391, %v2401
  %v2404 = vmul.f32 %v2392, %v2402
  %v2405 = vadd.f32 %v2401, 2.0
  %v2406 = vadd.f32 %v2402, 2.0
  %v2407 = vrcp.pop %v2405
  %v2408 = vrcp.pop %v2406
  %v2409 = vmul.f32 %v2403, %v2407
  %v2410 = vmul.f32 %v2404, %v2408
  %v2411 = vadd.f32 %v2409, %v2061
  %v2412 = vadd.f32 %v2410, %v2062
  %v2413 = vld [vmem:[%s3 + $0x14] sm:$0x1]
  %v2414 = vpack.c.bf16 %v2412, %v2411
  %v2415 = vld [vmem:[%s1 + $0x128] sm:$0xf]
  %v2416 = vld [vmem:[%s1 + $0x12c] sm:$0xf]
  %v2417 = vld [vmem:[%s1 + $0x130] sm:$0xf]
  %v2418 = vld [vmem:[%s1 + $0x134] sm:$0xf]
  %v2419 = vld [vmem:[%s1 + $0x138] sm:$0xf]
  %v2420 = vld [vmem:[%s1 + $0x13c] sm:$0xf]
  %v2421 = vld [vmem:[%s1 + $0x140] sm:$0xf]
  %v2422 = vld [vmem:[%s1 + $0x144] sm:$0xf]
  %v2431 = vunpack.c.l.b16 %v2415
  %v2432 = vunpack.c.l.b16 %v2416
  %v2433 = vunpack.c.l.b16 %v2417
  %v2434 = vunpack.c.l.b16 %v2418
  %v2435 = vunpack.c.l.b16 %v2419
  %v2436 = vunpack.c.l.b16 %v2420
  %v2437 = vunpack.c.l.b16 %v2421
  %v2438 = vunpack.c.l.b16 %v2422
  %v2439 = vpack.c.b16 %v2432, %v2431
  %v2440 = vpack.c.b16 %v2434, %v2433
  %v2441 = vpack.c.b16 %v2436, %v2435
  %v2442 = vpack.c.b16 %v2438, %v2437
  %v2448 = vsel %vm1792, %v2414, 0
  %2450 = vmatprep.subr.bf16.mxu0 0
  %2451 = vmatpush1.bf16.msra.mxu0 %v2439
  %2452 = vmatprep.subr.bf16.mxu0 0
  %2453 = vmatpush1.bf16.msra.mxu0 %v2440
  %2454 = vmatprep.subr.bf16.mxu0 0
  %2455 = vmatpush1.bf16.msra.mxu0 %v2441
  %2456 = vmatprep.subr.bf16.mxu0 0
  %2457 = vmatpush1.bf16.msra.mxu0 %v2442
  %2458 = vmatprep.subr.bf16.mxu0 0
  %2459 = vmatpush1.bf16.msra.mxu0 0
  %2460 = vmatprep.subr.bf16.mxu0 0
  %2461 = vmatpush1.bf16.msra.mxu0 0
  %2462 = vmatprep.subr.bf16.mxu0 0
  %2463 = vmatpush1.bf16.msra.mxu0 0
  %2464 = vmatprep.subr.bf16.mxu0 0
  %2465 = vmatpush1.bf16.msra.mxu0 0
  %2466 = vmatprep.subr.bf16.mxu0 0
  %2467 = vmatpush1.bf16.msra.mxu0 0
  %2468 = vmatprep.subr.bf16.mxu0 0
  %2469 = vmatpush1.bf16.msra.mxu0 0
  %2470 = vmatprep.subr.bf16.mxu0 0
  %2471 = vmatpush1.bf16.msra.mxu0 0
  %2472 = vmatprep.subr.bf16.mxu0 0
  %2473 = vmatpush1.bf16.msra.mxu0 0
  %2474 = vmatprep.subr.bf16.mxu0 0
  %2475 = vmatpush1.bf16.msra.mxu0 0
  %2476 = vmatprep.subr.bf16.mxu0 0
  %2477 = vmatpush1.bf16.msra.mxu0 0
  %2478 = vmatprep.subr.bf16.mxu0 0
  %2479 = vmatpush1.bf16.msra.mxu0 0
  %2480 = vmatprep.subr.bf16.mxu0 0
  %2481 = vmatpush1.bf16.msra.mxu0 0
  %2482 = vmatprep.mubr.bf16.mxu0 0
  %2483 = vmatmul.mubr.bf16.gmra.mrb[0].mxu0 %v2448
  %v2484 = vpop.f32.mrb[0].mxu0
  %v2485 = vadd.f32 0.0, %v2484
  %v2486 = vpop.f32.mrb[0].mxu0
  %v2487 = vpop.f32.mrb[0].mxu0
  %v2488 = vadd.f32 0.0, %v2487
  %v2489 = vpop.f32.mrb[0].mxu0
  %2490 = vdwg.mxu0
  %v2491 = vlaneseq
  %v2492 = vshrl.u32 %v2491, 7
  %v2493 = vsub.s32 0, %v2492
  %v2494 = vrot.slane %v2413, %v2493
  %v2495 = vadd.f32 %v2494, %v2485
  %v2496 = vadd.f32 %v2494, %v2488
  %v2497 = vld [vmem:[%s3 + $0x15] sm:$0x1]
  %v2498 = vmul.f32 %v2495, %v2495
  %v2499 = vmul.f32 %v2496, %v2496
  %v2500 = vpack.c.bf16 %v2499, %v2498
  %v2502 = vsel %vm1792, %v2500, 0
  %2504 = vmatprep.subr.bf16.mxu0 0
  %2505 = vmatpush1.bf16.msra.mxu0 %v1784
  %2506 = vmatprep.subr.bf16.mxu0 0
  %2507 = vmatpush1.bf16.msra.mxu0 %v1785
  %2508 = vmatprep.subr.bf16.mxu0 0
  %2509 = vmatpush1.bf16.msra.mxu0 %v1786
  %2510 = vmatprep.subr.bf16.mxu0 0
  %2511 = vmatpush1.bf16.msra.mxu0 %v1787
  %2512 = vmatprep.subr.bf16.mxu0 0
  %2513 = vmatpush1.bf16.msra.mxu0 0
  %2514 = vmatprep.subr.bf16.mxu0 0
  %2515 = vmatpush1.bf16.msra.mxu0 0
  %2516 = vmatprep.subr.bf16.mxu0 0
  %2517 = vmatpush1.bf16.msra.mxu0 0
  %2518 = vmatprep.subr.bf16.mxu0 0
  %2519 = vmatpush1.bf16.msra.mxu0 0
  %2520 = vmatprep.subr.bf16.mxu0 0
  %2521 = vmatpush1.bf16.msra.mxu0 0
  %2522 = vmatprep.subr.bf16.mxu0 0
  %2523 = vmatpush1.bf16.msra.mxu0 0
  %2524 = vmatprep.subr.bf16.mxu0 0
  %2525 = vmatpush1.bf16.msra.mxu0 0
  %2526 = vmatprep.subr.bf16.mxu0 0
  %2527 = vmatpush1.bf16.msra.mxu0 0
  %2528 = vmatprep.subr.bf16.mxu0 0
  %2529 = vmatpush1.bf16.msra.mxu0 0
  %2530 = vmatprep.subr.bf16.mxu0 0
  %2531 = vmatpush1.bf16.msra.mxu0 0
  %2532 = vmatprep.subr.bf16.mxu0 0
  %2533 = vmatpush1.bf16.msra.mxu0 0
  %2534 = vmatprep.subr.bf16.mxu0 0
  %2535 = vmatpush1.bf16.msra.mxu0 0
  %2536 = vmatprep.mubr.bf16.mxu0 0
  %2537 = vmatmul.mubr.bf16.gmra.mrb[0].mxu0 %v2502
  %v2538 = vpop.f32.mrb[0].mxu0
  %v2539 = vadd.f32 0.0, %v2538
  %v2540 = vpop.f32.mrb[0].mxu0
  %v2541 = vpop.f32.mrb[0].mxu0
  %v2542 = vadd.f32 0.0, %v2541
  %v2543 = vpop.f32.mrb[0].mxu0
  %2544 = vdwg.mxu0
  %v2545 = vadd.f32 %v2539, 1e-05
  %v2546 = vadd.f32 %v2542, 1e-05
  %v2547 = vrsqrt.pop %v2545
  %v2548 = vrsqrt.pop %v2546
  %v2549 = vmul.f32 %v2495, %v2547
  %v2550 = vmul.f32 %v2496, %v2548
  %v2551 = vlaneseq
  %v2552 = vshrl.u32 %v2551, 7
  %v2553 = vsub.s32 0, %v2552
  %v2554 = vrot.slane %v2497, %v2553
  %v2555 = vmul.f32 %v2549, %v2554
  %v2556 = vmul.f32 %v2550, %v2554
  %2558 = vrot.lane.b32.xlu0 %v2554, 64
  %v2559 = vpop.permute.xlu0 %2558
  %v2561 = vadd.f32 %v2555, %v2559
  %v2562 = vadd.f32 %v2556, %v2559
  %v2563 = vmin.f32 %v2561, 20.0
  %v2564 = vmin.f32 %v2562, 20.0
  %v2565 = vmul.f32 %v2563, 1.442695
  %v2566 = vpow.pop %v2565
  %v2567 = vmul.f32 %v2564, 1.442695
  %v2568 = vpow.pop %v2567
  %v2569 = vadd.f32 %v2566, 2.0
  %v2570 = vadd.f32 %v2568, 2.0
  %v2571 = vmul.f32 %v2566, %v2569
  %v2572 = vmul.f32 %v2568, %v2570
  %v2573 = vmul.f32 %v2561, %v2571
  %v2574 = vmul.f32 %v2562, %v2572
  %v2575 = vadd.f32 %v2571, 2.0
  %v2576 = vadd.f32 %v2572, 2.0
  %v2577 = vrcp.pop %v2575
  %v2578 = vrcp.pop %v2576
  %v2579 = vmul.f32 %v2573, %v2577
  %v2580 = vmul.f32 %v2574, %v2578
  %v2581 = vmul.f32 %v955, %v2579
  %v2582 = vmul.f32 %v961, %v2580
  %2585 = vrot.lane.b32.xlu0 %v955, 64
  %v2586 = vpop.permute.xlu0 %2585
  %2587 = vrot.lane.b32.xlu0 %v961, 64
  %v2588 = vpop.permute.xlu0 %2587
  %v2591 = vadd.f32 %v2581, %v2586
  %v2592 = vadd.f32 %v2582, %v2588
  %v2593 = vpack.c.bf16 %v2592, %v2591
  %v2594 = vld [vmem:[%s1 + $0x148] sm:$0xf]
  %v2595 = vld [vmem:[%s1 + $0x14c] sm:$0xf]
  %v2596 = vld [vmem:[%s1 + $0x150] sm:$0xf]
  %v2597 = vld [vmem:[%s1 + $0x154] sm:$0xf]
  %v2598 = vld [vmem:[%s1 + $0x158] sm:$0xf]
  %v2599 = vld [vmem:[%s1 + $0x15c] sm:$0xf]
  %v2600 = vld [vmem:[%s1 + $0x160] sm:$0xf]
  %v2601 = vld [vmem:[%s1 + $0x164] sm:$0xf]
  %v2610 = vunpack.c.l.b16 %v2594
  %v2611 = vunpack.c.l.b16 %v2595
  %v2612 = vunpack.c.l.b16 %v2596
  %v2613 = vunpack.c.l.b16 %v2597
  %v2614 = vunpack.c.l.b16 %v2598
  %v2615 = vunpack.c.l.b16 %v2599
  %v2616 = vunpack.c.l.b16 %v2600
  %v2617 = vunpack.c.l.b16 %v2601
  %v2618 = vpack.c.b16 %v2611, %v2610
  %v2619 = vpack.c.b16 %v2613, %v2612
  %v2620 = vpack.c.b16 %v2615, %v2614
  %v2621 = vpack.c.b16 %v2617, %v2616
  %v2627 = vsel %vm1792, %v2593, 0
  %2629 = vmatprep.subr.bf16.mxu0 0
  %2630 = vmatpush1.bf16.msra.mxu0 %v2618
  %2631 = vmatprep.subr.bf16.mxu0 0
  %2632 = vmatpush1.bf16.msra.mxu0 %v2619
  %2633 = vmatprep.subr.bf16.mxu0 0
  %2634 = vmatpush1.bf16.msra.mxu0 %v2620
  %2635 = vmatprep.subr.bf16.mxu0 0
  %2636 = vmatpush1.bf16.msra.mxu0 %v2621
  %2637 = vmatprep.subr.bf16.mxu0 0
  %2638 = vmatpush1.bf16.msra.mxu0 0
  %2639 = vmatprep.subr.bf16.mxu0 0
  %2640 = vmatpush1.bf16.msra.mxu0 0
  %2641 = vmatprep.subr.bf16.mxu0 0
  %2642 = vmatpush1.bf16.msra.mxu0 0
  %2643 = vmatprep.subr.bf16.mxu0 0
  %2644 = vmatpush1.bf16.msra.mxu0 0
  %2645 = vmatprep.subr.bf16.mxu0 0
  %2646 = vmatpush1.bf16.msra.mxu0 0
  %2647 = vmatprep.subr.bf16.mxu0 0
  %2648 = vmatpush1.bf16.msra.mxu0 0
  %2649 = vmatprep.subr.bf16.mxu0 0
  %2650 = vmatpush1.bf16.msra.mxu0 0
  %2651 = vmatprep.subr.bf16.mxu0 0
  %2652 = vmatpush1.bf16.msra.mxu0 0
  %2653 = vmatprep.subr.bf16.mxu0 0
  %2654 = vmatpush1.bf16.msra.mxu0 0
  %2655 = vmatprep.subr.bf16.mxu0 0
  %2656 = vmatpush1.bf16.msra.mxu0 0
  %2657 = vmatprep.subr.bf16.mxu0 0
  %2658 = vmatpush1.bf16.msra.mxu0 0
  %2659 = vmatprep.subr.bf16.mxu0 0
  %2660 = vmatpush1.bf16.msra.mxu0 0
  %2661 = vmatprep.mubr.bf16.mxu0 0
  %2662 = vmatmul.mubr.bf16.gmra.mrb[0].mxu0 %v2627
  %v2663 = vpop.f32.mrb[0].mxu0
  %v2664 = vadd.f32 0.0, %v2663
  %v2665 = vpop.f32.mrb[0].mxu0
  %v2666 = vpop.f32.mrb[0].mxu0
  %v2667 = vadd.f32 0.0, %v2666
  %v2668 = vpop.f32.mrb[0].mxu0
  %2669 = vdwg.mxu0
  %v2670 = vld [vmem:[%s3 + $0x16] sm:$0x1]
  %v2671 = vlaneseq
  %v2672 = vshrl.u32 %v2671, 7
  %v2673 = vsub.s32 0, %v2672
  %v2674 = vrot.slane %v2670, %v2673
  %v2675 = vadd.f32 %v2664, %v2674
  %v2676 = vadd.f32 %v2667, %v2674
  %v2677 = vld [vmem:[%s3 + $0x17] sm:$0x1]
  %v2678 = vmul.f32 %v2675, %v2675
  %v2679 = vmul.f32 %v2676, %v2676
  %v2680 = vpack.c.bf16 %v2679, %v2678
  %v2682 = vsel %vm1792, %v2680, 0
  %2684 = vmatprep.subr.bf16.mxu0 0
  %2685 = vmatpush1.bf16.msra.mxu0 %v1784
  %2686 = vmatprep.subr.bf16.mxu0 0
  %2687 = vmatpush1.bf16.msra.mxu0 %v1785
  %2688 = vmatprep.subr.bf16.mxu0 0
  %2689 = vmatpush1.bf16.msra.mxu0 %v1786
  %2690 = vmatprep.subr.bf16.mxu0 0
  %2691 = vmatpush1.bf16.msra.mxu0 %v1787
  %2692 = vmatprep.subr.bf16.mxu0 0
  %2693 = vmatpush1.bf16.msra.mxu0 0
  %2694 = vmatprep.subr.bf16.mxu0 0
  %2695 = vmatpush1.bf16.msra.mxu0 0
  %2696 = vmatprep.subr.bf16.mxu0 0
  %2697 = vmatpush1.bf16.msra.mxu0 0
  %2698 = vmatprep.subr.bf16.mxu0 0
  %2699 = vmatpush1.bf16.msra.mxu0 0
  %2700 = vmatprep.subr.bf16.mxu0 0
  %2701 = vmatpush1.bf16.msra.mxu0 0
  %2702 = vmatprep.subr.bf16.mxu0 0
  %2703 = vmatpush1.bf16.msra.mxu0 0
  %2704 = vmatprep.subr.bf16.mxu0 0
  %2705 = vmatpush1.bf16.msra.mxu0 0
  %2706 = vmatprep.subr.bf16.mxu0 0
  %2707 = vmatpush1.bf16.msra.mxu0 0
  %2708 = vmatprep.subr.bf16.mxu0 0
  %2709 = vmatpush1.bf16.msra.mxu0 0
  %2710 = vmatprep.subr.bf16.mxu0 0
  %2711 = vmatpush1.bf16.msra.mxu0 0
  %2712 = vmatprep.subr.bf16.mxu0 0
  %2713 = vmatpush1.bf16.msra.mxu0 0
  %2714 = vmatprep.subr.bf16.mxu0 0
  %2715 = vmatpush1.bf16.msra.mxu0 0
  %2716 = vmatprep.mubr.bf16.mxu0 0
  %2717 = vmatmul.mubr.bf16.gmra.mrb[0].mxu0 %v2682
  %v2718 = vpop.f32.mrb[0].mxu0
  %v2719 = vadd.f32 0.0, %v2718
  %v2720 = vpop.f32.mrb[0].mxu0
  %v2721 = vpop.f32.mrb[0].mxu0
  %v2722 = vadd.f32 0.0, %v2721
  %v2723 = vpop.f32.mrb[0].mxu0
  %2724 = vdwg.mxu0
  %v2725 = vadd.f32 %v2719, 1e-05
  %v2726 = vadd.f32 %v2722, 1e-05
  %v2727 = vrsqrt.pop %v2725
  %v2728 = vrsqrt.pop %v2726
  %v2729 = vmul.f32 %v2675, %v2727
  %v2730 = vmul.f32 %v2676, %v2728
  %v2731 = vlaneseq
  %v2732 = vshrl.u32 %v2731, 7
  %v2733 = vsub.s32 0, %v2732
  %v2734 = vrot.slane %v2677, %v2733
  %v2735 = vmul.f32 %v2729, %v2734
  %v2736 = vmul.f32 %v2730, %v2734
  %2738 = vrot.lane.b32.xlu0 %v2734, 64
  %v2739 = vpop.permute.xlu0 %2738
  %v2741 = vadd.f32 %v2735, %v2739
  %v2742 = vadd.f32 %v2736, %v2739
  %v2743 = vmin.f32 %v2741, 20.0
  %v2744 = vmin.f32 %v2742, 20.0
  %v2745 = vmul.f32 %v2743, 1.442695
  %v2746 = vpow.pop %v2745
  %v2747 = vmul.f32 %v2744, 1.442695
  %v2748 = vpow.pop %v2747
  %v2749 = vadd.f32 %v2746, 2.0
  %v2750 = vadd.f32 %v2748, 2.0
  %v2751 = vmul.f32 %v2746, %v2749
  %v2752 = vmul.f32 %v2748, %v2750
  %v2753 = vmul.f32 %v2741, %v2751
  %v2754 = vmul.f32 %v2742, %v2752
  %v2755 = vadd.f32 %v2751, 2.0
  %v2756 = vadd.f32 %v2752, 2.0
  %v2757 = vrcp.pop %v2755
  %v2758 = vrcp.pop %v2756
  %v2759 = vmul.f32 %v2753, %v2757
  %v2760 = vmul.f32 %v2754, %v2758
  %v2761 = vadd.f32 %v2759, %v2411
  %v2762 = vadd.f32 %v2760, %v2412
  %v2763 = vld [vmem:[%s3 + $0x18] sm:$0x1]
  %v2764 = vpack.c.bf16 %v2762, %v2761
  %v2765 = vld [vmem:[%s1 + $0x168] sm:$0xf]
  %v2766 = vld [vmem:[%s1 + $0x16c] sm:$0xf]
  %v2767 = vld [vmem:[%s1 + $0x170] sm:$0xf]
  %v2768 = vld [vmem:[%s1 + $0x174] sm:$0xf]
  %v2769 = vld [vmem:[%s1 + $0x178] sm:$0xf]
  %v2770 = vld [vmem:[%s1 + $0x17c] sm:$0xf]
  %v2771 = vld [vmem:[%s1 + $0x180] sm:$0xf]
  %v2772 = vld [vmem:[%s1 + $0x184] sm:$0xf]
  %v2781 = vunpack.c.l.b16 %v2765
  %v2782 = vunpack.c.l.b16 %v2766
  %v2783 = vunpack.c.l.b16 %v2767
  %v2784 = vunpack.c.l.b16 %v2768
  %v2785 = vunpack.c.l.b16 %v2769
  %v2786 = vunpack.c.l.b16 %v2770
  %v2787 = vunpack.c.l.b16 %v2771
  %v2788 = vunpack.c.l.b16 %v2772
  %v2789 = vpack.c.b16 %v2782, %v2781
  %v2790 = vpack.c.b16 %v2784, %v2783
  %v2791 = vpack.c.b16 %v2786, %v2785
  %v2792 = vpack.c.b16 %v2788, %v2787
  %v2798 = vsel %vm1792, %v2764, 0
  %2800 = vmatprep.subr.bf16.mxu0 0
  %2801 = vmatpush1.bf16.msra.mxu0 %v2789
  %2802 = vmatprep.subr.bf16.mxu0 0
  %2803 = vmatpush1.bf16.msra.mxu0 %v2790
  %2804 = vmatprep.subr.bf16.mxu0 0
  %2805 = vmatpush1.bf16.msra.mxu0 %v2791
  %2806 = vmatprep.subr.bf16.mxu0 0
  %2807 = vmatpush1.bf16.msra.mxu0 %v2792
  %2808 = vmatprep.subr.bf16.mxu0 0
  %2809 = vmatpush1.bf16.msra.mxu0 0
  %2810 = vmatprep.subr.bf16.mxu0 0
  %2811 = vmatpush1.bf16.msra.mxu0 0
  %2812 = vmatprep.subr.bf16.mxu0 0
  %2813 = vmatpush1.bf16.msra.mxu0 0
  %2814 = vmatprep.subr.bf16.mxu0 0
  %2815 = vmatpush1.bf16.msra.mxu0 0
  %2816 = vmatprep.subr.bf16.mxu0 0
  %2817 = vmatpush1.bf16.msra.mxu0 0
  %2818 = vmatprep.subr.bf16.mxu0 0
  %2819 = vmatpush1.bf16.msra.mxu0 0
  %2820 = vmatprep.subr.bf16.mxu0 0
  %2821 = vmatpush1.bf16.msra.mxu0 0
  %2822 = vmatprep.subr.bf16.mxu0 0
  %2823 = vmatpush1.bf16.msra.mxu0 0
  %2824 = vmatprep.subr.bf16.mxu0 0
  %2825 = vmatpush1.bf16.msra.mxu0 0
  %2826 = vmatprep.subr.bf16.mxu0 0
  %2827 = vmatpush1.bf16.msra.mxu0 0
  %2828 = vmatprep.subr.bf16.mxu0 0
  %2829 = vmatpush1.bf16.msra.mxu0 0
  %2830 = vmatprep.subr.bf16.mxu0 0
  %2831 = vmatpush1.bf16.msra.mxu0 0
  %2832 = vmatprep.mubr.bf16.mxu0 0
  %2833 = vmatmul.mubr.bf16.gmra.mrb[0].mxu0 %v2798
  %v2834 = vpop.f32.mrb[0].mxu0
  %v2835 = vadd.f32 0.0, %v2834
  %v2836 = vpop.f32.mrb[0].mxu0
  %v2837 = vpop.f32.mrb[0].mxu0
  %v2838 = vadd.f32 0.0, %v2837
  %v2839 = vpop.f32.mrb[0].mxu0
  %2840 = vdwg.mxu0
  %v2841 = vlaneseq
  %v2842 = vshrl.u32 %v2841, 7
  %v2843 = vsub.s32 0, %v2842
  %v2844 = vrot.slane %v2763, %v2843
  %v2845 = vadd.f32 %v2844, %v2835
  %v2846 = vadd.f32 %v2844, %v2838
  %v2847 = vld [vmem:[%s3 + $0x19] sm:$0x1]
  %v2848 = vmul.f32 %v2845, %v2845
  %v2849 = vmul.f32 %v2846, %v2846
  %v2850 = vpack.c.bf16 %v2849, %v2848
  %v2852 = vsel %vm1792, %v2850, 0
  %2854 = vmatprep.subr.bf16.mxu0 0
  %2855 = vmatpush1.bf16.msra.mxu0 %v1784
  %2856 = vmatprep.subr.bf16.mxu0 0
  %2857 = vmatpush1.bf16.msra.mxu0 %v1785
  %2858 = vmatprep.subr.bf16.mxu0 0
  %2859 = vmatpush1.bf16.msra.mxu0 %v1786
  %2860 = vmatprep.subr.bf16.mxu0 0
  %2861 = vmatpush1.bf16.msra.mxu0 %v1787
  %2862 = vmatprep.subr.bf16.mxu0 0
  %2863 = vmatpush1.bf16.msra.mxu0 0
  %2864 = vmatprep.subr.bf16.mxu0 0
  %2865 = vmatpush1.bf16.msra.mxu0 0
  %2866 = vmatprep.subr.bf16.mxu0 0
  %2867 = vmatpush1.bf16.msra.mxu0 0
  %2868 = vmatprep.subr.bf16.mxu0 0
  %2869 = vmatpush1.bf16.msra.mxu0 0
  %2870 = vmatprep.subr.bf16.mxu0 0
  %2871 = vmatpush1.bf16.msra.mxu0 0
  %2872 = vmatprep.subr.bf16.mxu0 0
  %2873 = vmatpush1.bf16.msra.mxu0 0
  %2874 = vmatprep.subr.bf16.mxu0 0
  %2875 = vmatpush1.bf16.msra.mxu0 0
  %2876 = vmatprep.subr.bf16.mxu0 0
  %2877 = vmatpush1.bf16.msra.mxu0 0
  %2878 = vmatprep.subr.bf16.mxu0 0
  %2879 = vmatpush1.bf16.msra.mxu0 0
  %2880 = vmatprep.subr.bf16.mxu0 0
  %2881 = vmatpush1.bf16.msra.mxu0 0
  %2882 = vmatprep.subr.bf16.mxu0 0
  %2883 = vmatpush1.bf16.msra.mxu0 0
  %2884 = vmatprep.subr.bf16.mxu0 0
  %2885 = vmatpush1.bf16.msra.mxu0 0
  %2886 = vmatprep.mubr.bf16.mxu0 0
  %2887 = vmatmul.mubr.bf16.gmra.mrb[0].mxu0 %v2852
  %v2888 = vpop.f32.mrb[0].mxu0
  %v2889 = vadd.f32 0.0, %v2888
  %v2890 = vpop.f32.mrb[0].mxu0
  %v2891 = vpop.f32.mrb[0].mxu0
  %v2892 = vadd.f32 0.0, %v2891
  %v2893 = vpop.f32.mrb[0].mxu0
  %2894 = vdwg.mxu0
  %v2895 = vadd.f32 %v2889, 1e-05
  %v2896 = vadd.f32 %v2892, 1e-05
  %v2897 = vrsqrt.pop %v2895
  %v2898 = vrsqrt.pop %v2896
  %v2899 = vmul.f32 %v2845, %v2897
  %v2900 = vmul.f32 %v2846, %v2898
  %v2901 = vlaneseq
  %v2902 = vshrl.u32 %v2901, 7
  %v2903 = vsub.s32 0, %v2902
  %v2904 = vrot.slane %v2847, %v2903
  %v2905 = vmul.f32 %v2899, %v2904
  %v2906 = vmul.f32 %v2900, %v2904
  %2908 = vrot.lane.b32.xlu0 %v2904, 64
  %v2909 = vpop.permute.xlu0 %2908
  %v2911 = vadd.f32 %v2905, %v2909
  %v2912 = vadd.f32 %v2906, %v2909
  %v2913 = vmin.f32 %v2911, 20.0
  %v2914 = vmin.f32 %v2912, 20.0
  %v2915 = vmul.f32 %v2913, 1.442695
  %v2916 = vpow.pop %v2915
  %v2917 = vmul.f32 %v2914, 1.442695
  %v2918 = vpow.pop %v2917
  %v2919 = vadd.f32 %v2916, 2.0
  %v2920 = vadd.f32 %v2918, 2.0
  %v2921 = vmul.f32 %v2916, %v2919
  %v2922 = vmul.f32 %v2918, %v2920
  %v2923 = vmul.f32 %v2911, %v2921
  %v2924 = vmul.f32 %v2912, %v2922
  %v2925 = vadd.f32 %v2921, 2.0
  %v2926 = vadd.f32 %v2922, 2.0
  %v2927 = vrcp.pop %v2925
  %v2928 = vrcp.pop %v2926
  %v2929 = vmul.f32 %v2923, %v2927
  %v2930 = vmul.f32 %v2924, %v2928
  %v2931 = vmul.f32 %v956, %v2929
  %v2932 = vmul.f32 %v962, %v2930
  %2935 = vrot.lane.b32.xlu0 %v956, 64
  %v2936 = vpop.permute.xlu0 %2935
  %2937 = vrot.lane.b32.xlu0 %v962, 64
  %v2938 = vpop.permute.xlu0 %2937
  %v2941 = vadd.f32 %v2931, %v2936
  %v2942 = vadd.f32 %v2932, %v2938
  %v2943 = vpack.c.bf16 %v2942, %v2941
  %v2944 = vld [vmem:[%s1 + $0x188] sm:$0xf]
  %v2945 = vld [vmem:[%s1 + $0x18c] sm:$0xf]
  %v2946 = vld [vmem:[%s1 + $0x190] sm:$0xf]
  %v2947 = vld [vmem:[%s1 + $0x194] sm:$0xf]
  %v2948 = vld [vmem:[%s1 + $0x198] sm:$0xf]
  %v2949 = vld [vmem:[%s1 + $0x19c] sm:$0xf]
  %v2950 = vld [vmem:[%s1 + $0x1a0] sm:$0xf]
  %v2951 = vld [vmem:[%s1 + $0x1a4] sm:$0xf]
  %v2960 = vunpack.c.l.b16 %v2944
  %v2961 = vunpack.c.l.b16 %v2945
  %v2962 = vunpack.c.l.b16 %v2946
  %v2963 = vunpack.c.l.b16 %v2947
  %v2964 = vunpack.c.l.b16 %v2948
  %v2965 = vunpack.c.l.b16 %v2949
  %v2966 = vunpack.c.l.b16 %v2950
  %v2967 = vunpack.c.l.b16 %v2951
  %v2968 = vpack.c.b16 %v2961, %v2960
  %v2969 = vpack.c.b16 %v2963, %v2962
  %v2970 = vpack.c.b16 %v2965, %v2964
  %v2971 = vpack.c.b16 %v2967, %v2966
  %v2977 = vsel %vm1792, %v2943, 0
  %2979 = vmatprep.subr.bf16.mxu0 0
  %2980 = vmatpush1.bf16.msra.mxu0 %v2968
  %2981 = vmatprep.subr.bf16.mxu0 0
  %2982 = vmatpush1.bf16.msra.mxu0 %v2969
  %2983 = vmatprep.subr.bf16.mxu0 0
  %2984 = vmatpush1.bf16.msra.mxu0 %v2970
  %2985 = vmatprep.subr.bf16.mxu0 0
  %2986 = vmatpush1.bf16.msra.mxu0 %v2971
  %2987 = vmatprep.subr.bf16.mxu0 0
  %2988 = vmatpush1.bf16.msra.mxu0 0
  %2989 = vmatprep.subr.bf16.mxu0 0
  %2990 = vmatpush1.bf16.msra.mxu0 0
  %2991 = vmatprep.subr.bf16.mxu0 0
  %2992 = vmatpush1.bf16.msra.mxu0 0
  %2993 = vmatprep.subr.bf16.mxu0 0
  %2994 = vmatpush1.bf16.msra.mxu0 0
  %2995 = vmatprep.subr.bf16.mxu0 0
  %2996 = vmatpush1.bf16.msra.mxu0 0
  %2997 = vmatprep.subr.bf16.mxu0 0
  %2998 = vmatpush1.bf16.msra.mxu0 0
  %2999 = vmatprep.subr.bf16.mxu0 0
  %3000 = vmatpush1.bf16.msra.mxu0 0
  %3001 = vmatprep.subr.bf16.mxu0 0
  %3002 = vmatpush1.bf16.msra.mxu0 0
  %3003 = vmatprep.subr.bf16.mxu0 0
  %3004 = vmatpush1.bf16.msra.mxu0 0
  %3005 = vmatprep.subr.bf16.mxu0 0
  %3006 = vmatpush1.bf16.msra.mxu0 0
  %3007 = vmatprep.subr.bf16.mxu0 0
  %3008 = vmatpush1.bf16.msra.mxu0 0
  %3009 = vmatprep.subr.bf16.mxu0 0
  %3010 = vmatpush1.bf16.msra.mxu0 0
  %3011 = vmatprep.mubr.bf16.mxu0 0
  %3012 = vmatmul.mubr.bf16.gmra.mrb[0].mxu0 %v2977
  %v3013 = vpop.f32.mrb[0].mxu0
  %v3014 = vadd.f32 0.0, %v3013
  %v3015 = vpop.f32.mrb[0].mxu0
  %v3016 = vpop.f32.mrb[0].mxu0
  %v3017 = vadd.f32 0.0, %v3016
  %v3018 = vpop.f32.mrb[0].mxu0
  %3019 = vdwg.mxu0
  %v3020 = vld [vmem:[%s3 + $0x1a] sm:$0x1]
  %v3021 = vlaneseq
  %v3022 = vshrl.u32 %v3021, 7
  %v3023 = vsub.s32 0, %v3022
  %v3024 = vrot.slane %v3020, %v3023
  %v3025 = vadd.f32 %v3014, %v3024
  %v3026 = vadd.f32 %v3017, %v3024
  %v3027 = vld [vmem:[%s3 + $0x1b] sm:$0x1]
  %v3028 = vmul.f32 %v3025, %v3025
  %v3029 = vmul.f32 %v3026, %v3026
  %v3030 = vpack.c.bf16 %v3029, %v3028
  %v3032 = vsel %vm1792, %v3030, 0
  %3034 = vmatprep.subr.bf16.mxu0 0
  %3035 = vmatpush1.bf16.msra.mxu0 %v1784
  %3036 = vmatprep.subr.bf16.mxu0 0
  %3037 = vmatpush1.bf16.msra.mxu0 %v1785
  %3038 = vmatprep.subr.bf16.mxu0 0
  %3039 = vmatpush1.bf16.msra.mxu0 %v1786
  %3040 = vmatprep.subr.bf16.mxu0 0
  %3041 = vmatpush1.bf16.msra.mxu0 %v1787
  %3042 = vmatprep.subr.bf16.mxu0 0
  %3043 = vmatpush1.bf16.msra.mxu0 0
  %3044 = vmatprep.subr.bf16.mxu0 0
  %3045 = vmatpush1.bf16.msra.mxu0 0
  %3046 = vmatprep.subr.bf16.mxu0 0
  %3047 = vmatpush1.bf16.msra.mxu0 0
  %3048 = vmatprep.subr.bf16.mxu0 0
  %3049 = vmatpush1.bf16.msra.mxu0 0
  %3050 = vmatprep.subr.bf16.mxu0 0
  %3051 = vmatpush1.bf16.msra.mxu0 0
  %3052 = vmatprep.subr.bf16.mxu0 0
  %3053 = vmatpush1.bf16.msra.mxu0 0
  %3054 = vmatprep.subr.bf16.mxu0 0
  %3055 = vmatpush1.bf16.msra.mxu0 0
  %3056 = vmatprep.subr.bf16.mxu0 0
  %3057 = vmatpush1.bf16.msra.mxu0 0
  %3058 = vmatprep.subr.bf16.mxu0 0
  %3059 = vmatpush1.bf16.msra.mxu0 0
  %3060 = vmatprep.subr.bf16.mxu0 0
  %3061 = vmatpush1.bf16.msra.mxu0 0
  %3062 = vmatprep.subr.bf16.mxu0 0
  %3063 = vmatpush1.bf16.msra.mxu0 0
  %3064 = vmatprep.subr.bf16.mxu0 0
  %3065 = vmatpush1.bf16.msra.mxu0 0
  %3066 = vmatprep.mubr.bf16.mxu0 0
  %3067 = vmatmul.mubr.bf16.gmra.mrb[0].mxu0 %v3032
  %v3068 = vpop.f32.mrb[0].mxu0
  %v3069 = vadd.f32 0.0, %v3068
  %v3070 = vpop.f32.mrb[0].mxu0
  %v3071 = vpop.f32.mrb[0].mxu0
  %v3072 = vadd.f32 0.0, %v3071
  %v3073 = vpop.f32.mrb[0].mxu0
  %3074 = vdwg.mxu0
  %v3075 = vadd.f32 %v3069, 1e-05
  %v3076 = vadd.f32 %v3072, 1e-05
  %v3077 = vrsqrt.pop %v3075
  %v3078 = vrsqrt.pop %v3076
  %v3079 = vmul.f32 %v3025, %v3077
  %v3080 = vmul.f32 %v3026, %v3078
  %v3081 = vlaneseq
  %v3082 = vshrl.u32 %v3081, 7
  %v3083 = vsub.s32 0, %v3082
  %v3084 = vrot.slane %v3027, %v3083
  %v3085 = vmul.f32 %v3079, %v3084
  %v3086 = vmul.f32 %v3080, %v3084
  %3088 = vrot.lane.b32.xlu0 %v3084, 64
  %v3089 = vpop.permute.xlu0 %3088
  %v3091 = vadd.f32 %v3085, %v3089
  %v3092 = vadd.f32 %v3086, %v3089
  %v3093 = vmin.f32 %v3091, 20.0
  %v3094 = vmin.f32 %v3092, 20.0
  %v3095 = vmul.f32 %v3093, 1.442695
  %v3096 = vpow.pop %v3095
  %v3097 = vmul.f32 %v3094, 1.442695
  %v3098 = vpow.pop %v3097
  %v3099 = vadd.f32 %v3096, 2.0
  %v3100 = vadd.f32 %v3098, 2.0
  %v3101 = vmul.f32 %v3096, %v3099
  %v3102 = vmul.f32 %v3098, %v3100
  %v3103 = vmul.f32 %v3091, %v3101
  %v3104 = vmul.f32 %v3092, %v3102
  %v3105 = vadd.f32 %v3101, 2.0
  %v3106 = vadd.f32 %v3102, 2.0
  %v3107 = vrcp.pop %v3105
  %v3108 = vrcp.pop %v3106
  %v3109 = vmul.f32 %v3103, %v3107
  %v3110 = vmul.f32 %v3104, %v3108
  %v3111 = vadd.f32 %v3109, %v2761
  %v3112 = vadd.f32 %v3110, %v2762
  %v3113 = vld [vmem:[%s3 + $0x1c] sm:$0x1]
  %v3114 = vpack.c.bf16 %v3112, %v3111
  %v3115 = vld [vmem:[%s1 + $0x1a8] sm:$0xf]
  %v3116 = vld [vmem:[%s1 + $0x1ac] sm:$0xf]
  %v3117 = vld [vmem:[%s1 + $0x1b0] sm:$0xf]
  %v3118 = vld [vmem:[%s1 + $0x1b4] sm:$0xf]
  %v3119 = vld [vmem:[%s1 + $0x1b8] sm:$0xf]
  %v3120 = vld [vmem:[%s1 + $0x1bc] sm:$0xf]
  %v3121 = vld [vmem:[%s1 + $0x1c0] sm:$0xf]
  %v3122 = vld [vmem:[%s1 + $0x1c4] sm:$0xf]
  %v3131 = vunpack.c.l.b16 %v3115
  %v3132 = vunpack.c.l.b16 %v3116
  %v3133 = vunpack.c.l.b16 %v3117
  %v3134 = vunpack.c.l.b16 %v3118
  %v3135 = vunpack.c.l.b16 %v3119
  %v3136 = vunpack.c.l.b16 %v3120
  %v3137 = vunpack.c.l.b16 %v3121
  %v3138 = vunpack.c.l.b16 %v3122
  %v3139 = vpack.c.b16 %v3132, %v3131
  %v3140 = vpack.c.b16 %v3134, %v3133
  %v3141 = vpack.c.b16 %v3136, %v3135
  %v3142 = vpack.c.b16 %v3138, %v3137
  %v3148 = vsel %vm1792, %v3114, 0
  %3150 = vmatprep.subr.bf16.mxu0 0
  %3151 = vmatpush1.bf16.msra.mxu0 %v3139
  %3152 = vmatprep.subr.bf16.mxu0 0
  %3153 = vmatpush1.bf16.msra.mxu0 %v3140
  %3154 = vmatprep.subr.bf16.mxu0 0
  %3155 = vmatpush1.bf16.msra.mxu0 %v3141
  %3156 = vmatprep.subr.bf16.mxu0 0
  %3157 = vmatpush1.bf16.msra.mxu0 %v3142
  %3158 = vmatprep.subr.bf16.mxu0 0
  %3159 = vmatpush1.bf16.msra.mxu0 0
  %3160 = vmatprep.subr.bf16.mxu0 0
  %3161 = vmatpush1.bf16.msra.mxu0 0
  %3162 = vmatprep.subr.bf16.mxu0 0
  %3163 = vmatpush1.bf16.msra.mxu0 0
  %3164 = vmatprep.subr.bf16.mxu0 0
  %3165 = vmatpush1.bf16.msra.mxu0 0
  %3166 = vmatprep.subr.bf16.mxu0 0
  %3167 = vmatpush1.bf16.msra.mxu0 0
  %3168 = vmatprep.subr.bf16.mxu0 0
  %3169 = vmatpush1.bf16.msra.mxu0 0
  %3170 = vmatprep.subr.bf16.mxu0 0
  %3171 = vmatpush1.bf16.msra.mxu0 0
  %3172 = vmatprep.subr.bf16.mxu0 0
  %3173 = vmatpush1.bf16.msra.mxu0 0
  %3174 = vmatprep.subr.bf16.mxu0 0
  %3175 = vmatpush1.bf16.msra.mxu0 0
  %3176 = vmatprep.subr.bf16.mxu0 0
  %3177 = vmatpush1.bf16.msra.mxu0 0
  %3178 = vmatprep.subr.bf16.mxu0 0
  %3179 = vmatpush1.bf16.msra.mxu0 0
  %3180 = vmatprep.subr.bf16.mxu0 0
  %3181 = vmatpush1.bf16.msra.mxu0 0
  %3182 = vmatprep.mubr.bf16.mxu0 0
  %3183 = vmatmul.mubr.bf16.gmra.mrb[0].mxu0 %v3148
  %v3184 = vpop.f32.mrb[0].mxu0
  %v3185 = vadd.f32 0.0, %v3184
  %v3186 = vpop.f32.mrb[0].mxu0
  %v3187 = vpop.f32.mrb[0].mxu0
  %v3188 = vadd.f32 0.0, %v3187
  %v3189 = vpop.f32.mrb[0].mxu0
  %3190 = vdwg.mxu0
  %v3191 = vlaneseq
  %v3192 = vshrl.u32 %v3191, 7
  %v3193 = vsub.s32 0, %v3192
  %v3194 = vrot.slane %v3113, %v3193
  %v3195 = vadd.f32 %v3194, %v3185
  %v3196 = vadd.f32 %v3194, %v3188
  %v3197 = vld [vmem:[%s1 + $0x1c8] sm:$0xf]
  %v3198 = vld [vmem:[%s1 + $0x1cc] sm:$0xf]
  %v3199 = vld [vmem:[%s1 + $0x1d0] sm:$0xf]
  %v3200 = vld [vmem:[%s1 + $0x1d4] sm:$0xf]
  %v3201 = vld [vmem:[%s1 + $0x1d8] sm:$0xf]
  %v3202 = vld [vmem:[%s1 + $0x1dc] sm:$0xf]
  %v3203 = vld [vmem:[%s1 + $0x1e0] sm:$0xf]
  %v3204 = vld [vmem:[%s1 + $0x1e4] sm:$0xf]
  %v3213 = vunpack.c.l.b16 %v3197
  %v3214 = vunpack.c.l.b16 %v3198
  %v3215 = vunpack.c.l.b16 %v3199
  %v3216 = vunpack.c.l.b16 %v3200
  %v3217 = vunpack.c.l.b16 %v3201
  %v3218 = vunpack.c.l.b16 %v3202
  %v3219 = vunpack.c.l.b16 %v3203
  %v3220 = vunpack.c.l.b16 %v3204
  %v3221 = vpack.c.b16 %v3214, %v3213
  %v3222 = vpack.c.b16 %v3216, %v3215
  %v3223 = vpack.c.b16 %v3218, %v3217
  %v3224 = vpack.c.b16 %v3220, %v3219
  %3229 = vmatprep.subr.bf16.mxu0 0
  %3230 = vmatpush1.bf16.msra.mxu0 %v3221
  %3231 = vmatprep.subr.bf16.mxu0 0
  %3232 = vmatpush1.bf16.msra.mxu0 %v3222
  %3233 = vmatprep.subr.bf16.mxu0 0
  %3234 = vmatpush1.bf16.msra.mxu0 %v3223
  %3235 = vmatprep.subr.bf16.mxu0 0
  %3236 = vmatpush1.bf16.msra.mxu0 %v3224
  %3237 = vmatprep.subr.bf16.mxu0 0
  %3238 = vmatpush1.bf16.msra.mxu0 0
  %3239 = vmatprep.subr.bf16.mxu0 0
  %3240 = vmatpush1.bf16.msra.mxu0 0
  %3241 = vmatprep.subr.bf16.mxu0 0
  %3242 = vmatpush1.bf16.msra.mxu0 0
  %3243 = vmatprep.subr.bf16.mxu0 0
  %3244 = vmatpush1.bf16.msra.mxu0 0
  %3245 = vmatprep.subr.bf16.mxu0 0
  %3246 = vmatpush1.bf16.msra.mxu0 0
  %3247 = vmatprep.subr.bf16.mxu0 0
  %3248 = vmatpush1.bf16.msra.mxu0 0
  %3249 = vmatprep.subr.bf16.mxu0 0
  %3250 = vmatpush1.bf16.msra.mxu0 0
  %3251 = vmatprep.subr.bf16.mxu0 0
  %3252 = vmatpush1.bf16.msra.mxu0 0
  %3253 = vmatprep.subr.bf16.mxu0 0
  %3254 = vmatpush1.bf16.msra.mxu0 0
  %3255 = vmatprep.subr.bf16.mxu0 0
  %3256 = vmatpush1.bf16.msra.mxu0 0
  %3257 = vmatprep.subr.bf16.mxu0 0
  %3258 = vmatpush1.bf16.msra.mxu0 0
  %3259 = vmatprep.subr.bf16.mxu0 0
  %3260 = vmatpush1.bf16.msra.mxu0 0
  %3261 = vmatprep.mubr.bf16.mxu0 0
  %3262 = vmatmul.mubr.bf16.gmra.mrb[0].mxu0 %v2448
  %v3263 = vpop.f32.mrb[0].mxu0
  %v3264 = vadd.f32 0.0, %v3263
  %v3265 = vpop.f32.mrb[0].mxu0
  %v3266 = vpop.f32.mrb[0].mxu0
  %v3267 = vadd.f32 0.0, %v3266
  %v3268 = vpop.f32.mrb[0].mxu0
  %3269 = vdwg.mxu0
  %v3270 = vadd.f32 %v3195, %v3264
  %v3271 = vadd.f32 %v3196, %v3267
  %v3272 = vld [vmem:[%s3 + $0x1d] sm:$0x1]
  %v3273 = vmul.f32 %v3270, %v3270
  %v3274 = vmul.f32 %v3271, %v3271
  %v3275 = vpack.c.bf16 %v3274, %v3273
  %v3277 = vsel %vm294, %v3275, 0
  %3279 = vmatprep.subr.bf16.mxu0 0
  %3280 = vmatpush1.bf16.msra.mxu0 %v1041
  %3281 = vmatprep.subr.bf16.mxu0 0
  %3282 = vmatpush1.bf16.msra.mxu0 %v1042
  %3283 = vmatprep.subr.bf16.mxu0 0
  %3284 = vmatpush1.bf16.msra.mxu0 0
  %3285 = vmatprep.subr.bf16.mxu0 0
  %3286 = vmatpush1.bf16.msra.mxu0 0
  %3287 = vmatprep.subr.bf16.mxu0 0
  %3288 = vmatpush1.bf16.msra.mxu0 0
  %3289 = vmatprep.subr.bf16.mxu0 0
  %3290 = vmatpush1.bf16.msra.mxu0 0
  %3291 = vmatprep.subr.bf16.mxu0 0
  %3292 = vmatpush1.bf16.msra.mxu0 0
  %3293 = vmatprep.subr.bf16.mxu0 0
  %3294 = vmatpush1.bf16.msra.mxu0 0
  %3295 = vmatprep.subr.bf16.mxu0 0
  %3296 = vmatpush1.bf16.msra.mxu0 0
  %3297 = vmatprep.subr.bf16.mxu0 0
  %3298 = vmatpush1.bf16.msra.mxu0 0
  %3299 = vmatprep.subr.bf16.mxu0 0
  %3300 = vmatpush1.bf16.msra.mxu0 0
  %3301 = vmatprep.subr.bf16.mxu0 0
  %3302 = vmatpush1.bf16.msra.mxu0 0
  %3303 = vmatprep.subr.bf16.mxu0 0
  %3304 = vmatpush1.bf16.msra.mxu0 0
  %3305 = vmatprep.subr.bf16.mxu0 0
  %3306 = vmatpush1.bf16.msra.mxu0 0
  %3307 = vmatprep.subr.bf16.mxu0 0
  %3308 = vmatpush1.bf16.msra.mxu0 0
  %3309 = vmatprep.subr.bf16.mxu0 0
  %3310 = vmatpush1.bf16.msra.mxu0 0
  %3311 = vmatprep.mubr.bf16.mxu0 0
  %3312 = vmatmul.mubr.bf16.gmra.mrb[0].mxu0 %v3277
  %v3313 = vpop.f32.mrb[0].mxu0
  %v3314 = vadd.f32 0.0, %v3313
  %v3315 = vpop.f32.mrb[0].mxu0
  %v3316 = vpop.f32.mrb[0].mxu0
  %v3317 = vadd.f32 0.0, %v3316
  %v3318 = vpop.f32.mrb[0].mxu0
  %3319 = vdwg.mxu0
  %v3320 = vadd.f32 %v3314, 1e-05
  %v3321 = vadd.f32 %v3317, 1e-05
  %v3322 = vrsqrt.pop %v3320
  %v3323 = vrsqrt.pop %v3321
  %v3324 = vmul.f32 %v3270, %v3322
  %v3325 = vmul.f32 %v3271, %v3323
  %v3326 = vlaneseq
  %v3327 = vshrl.u32 %v3326, 7
  %v3328 = vsub.s32 0, %v3327
  %v3329 = vrot.slane %v3272, %v3328
  %v3330 = vmul.f32 %v3324, %v3329
  %v3331 = vmul.f32 %v3325, %v3329
  %3333 = vrot.lane.b32.xlu0 %v3329, 96
  %v3334 = vpop.permute.xlu0 %3333
  %v3336 = vadd.f32 %v3330, %v3334
  %v3337 = vadd.f32 %v3331, %v3334
  %v3338 = vmin.f32 %v3336, 20.0
  %v3339 = vmin.f32 %v3337, 20.0
  %v3340 = vmul.f32 %v3338, 1.442695
  %v3341 = vpow.pop %v3340
  %v3342 = vmul.f32 %v3339, 1.442695
  %v3343 = vpow.pop %v3342
  %v3344 = vadd.f32 %v3341, 2.0
  %v3345 = vadd.f32 %v3343, 2.0
  %v3346 = vmul.f32 %v3341, %v3344
  %v3347 = vmul.f32 %v3343, %v3345
  %v3348 = vmul.f32 %v3336, %v3346
  %v3349 = vmul.f32 %v3337, %v3347
  %v3350 = vadd.f32 %v3346, 2.0
  %v3351 = vadd.f32 %v3347, 2.0
  %v3352 = vrcp.pop %v3350
  %v3353 = vrcp.pop %v3351
  %v3354 = vmul.f32 %v3348, %v3352
  %v3355 = vmul.f32 %v3349, %v3353
  %v3356 = vmul.f32 %v957, %v3354
  %v3357 = vmul.f32 %v963, %v3355
  %3360 = vrot.lane.b32.xlu0 %v957, 96
  %v3361 = vpop.permute.xlu0 %3360
  %3362 = vrot.lane.b32.xlu0 %v963, 96
  %v3363 = vpop.permute.xlu0 %3362
  %v3366 = vadd.f32 %v3356, %v3361
  %v3367 = vadd.f32 %v3357, %v3363
  %v3368 = vpack.c.bf16 %v3367, %v3366
  %v3369 = vld [vmem:[%s1 + $0x1e8] sm:$0xf]
  %v3370 = vld [vmem:[%s1 + $0x1ec] sm:$0xf]
  %v3371 = vld [vmem:[%s1 + $0x1f0] sm:$0xf]
  %v3372 = vld [vmem:[%s1 + $0x1f4] sm:$0xf]
  %v3377 = vunpack.c.l.b16 %v3369
  %v3378 = vunpack.c.l.b16 %v3370
  %v3379 = vunpack.c.l.b16 %v3371
  %v3380 = vunpack.c.l.b16 %v3372
  %v3381 = vpack.c.b16 %v3378, %v3377
  %v3382 = vpack.c.b16 %v3380, %v3379
  %v3386 = vsel %vm294, %v3368, 0
  %3388 = vmatprep.subr.bf16.mxu0 0
  %3389 = vmatpush1.bf16.msra.mxu0 %v3381
  %3390 = vmatprep.subr.bf16.mxu0 0
  %3391 = vmatpush1.bf16.msra.mxu0 %v3382
  %3392 = vmatprep.subr.bf16.mxu0 0
  %3393 = vmatpush1.bf16.msra.mxu0 0
  %3394 = vmatprep.subr.bf16.mxu0 0
  %3395 = vmatpush1.bf16.msra.mxu0 0
  %3396 = vmatprep.subr.bf16.mxu0 0
  %3397 = vmatpush1.bf16.msra.mxu0 0
  %3398 = vmatprep.subr.bf16.mxu0 0
  %3399 = vmatpush1.bf16.msra.mxu0 0
  %3400 = vmatprep.subr.bf16.mxu0 0
  %3401 = vmatpush1.bf16.msra.mxu0 0
  %3402 = vmatprep.subr.bf16.mxu0 0
  %3403 = vmatpush1.bf16.msra.mxu0 0
  %3404 = vmatprep.subr.bf16.mxu0 0
  %3405 = vmatpush1.bf16.msra.mxu0 0
  %3406 = vmatprep.subr.bf16.mxu0 0
  %3407 = vmatpush1.bf16.msra.mxu0 0
  %3408 = vmatprep.subr.bf16.mxu0 0
  %3409 = vmatpush1.bf16.msra.mxu0 0
  %3410 = vmatprep.subr.bf16.mxu0 0
  %3411 = vmatpush1.bf16.msra.mxu0 0
  %3412 = vmatprep.subr.bf16.mxu0 0
  %3413 = vmatpush1.bf16.msra.mxu0 0
  %3414 = vmatprep.subr.bf16.mxu0 0
  %3415 = vmatpush1.bf16.msra.mxu0 0
  %3416 = vmatprep.subr.bf16.mxu0 0
  %3417 = vmatpush1.bf16.msra.mxu0 0
  %3418 = vmatprep.subr.bf16.mxu0 0
  %3419 = vmatpush1.bf16.msra.mxu0 0
  %3420 = vmatprep.mubr.bf16.mxu0 0
  %3421 = vmatmul.mubr.bf16.gmra.mrb[0].mxu0 %v3386
  %v3422 = vpop.f32.mrb[0].mxu0
  %v3423 = vadd.f32 0.0, %v3422
  %v3424 = vpop.f32.mrb[0].mxu0
  %v3425 = vpop.f32.mrb[0].mxu0
  %v3426 = vadd.f32 0.0, %v3425
  %v3427 = vpop.f32.mrb[0].mxu0
  %3428 = vdwg.mxu0
  %v3429 = vld [vmem:[%s3 + $0x1e] sm:$0x1]
  %v3430 = vlaneseq
  %v3431 = vshrl.u32 %v3430, 7
  %v3432 = vsub.s32 0, %v3431
  %v3433 = vrot.slane %v3429, %v3432
  %v3434 = vadd.f32 %v3423, %v3433
  %v3435 = vadd.f32 %v3426, %v3433
  %v3436 = vld [vmem:[%s3 + $0x1f] sm:$0x1]
  %v3437 = vmul.f32 %v3434, %v3434
  %v3438 = vmul.f32 %v3435, %v3435
  %v3439 = vpack.c.bf16 %v3438, %v3437
  %v3441 = vsel %vm294, %v3439, 0
  %3443 = vmatprep.subr.bf16.mxu0 0
  %3444 = vmatpush1.bf16.msra.mxu0 %v1041
  %3445 = vmatprep.subr.bf16.mxu0 0
  %3446 = vmatpush1.bf16.msra.mxu0 %v1042
  %3447 = vmatprep.subr.bf16.mxu0 0
  %3448 = vmatpush1.bf16.msra.mxu0 0
  %3449 = vmatprep.subr.bf16.mxu0 0
  %3450 = vmatpush1.bf16.msra.mxu0 0
  %3451 = vmatprep.subr.bf16.mxu0 0
  %3452 = vmatpush1.bf16.msra.mxu0 0
  %3453 = vmatprep.subr.bf16.mxu0 0
  %3454 = vmatpush1.bf16.msra.mxu0 0
  %3455 = vmatprep.subr.bf16.mxu0 0
  %3456 = vmatpush1.bf16.msra.mxu0 0
  %3457 = vmatprep.subr.bf16.mxu0 0
  %3458 = vmatpush1.bf16.msra.mxu0 0
  %3459 = vmatprep.subr.bf16.mxu0 0
  %3460 = vmatpush1.bf16.msra.mxu0 0
  %3461 = vmatprep.subr.bf16.mxu0 0
  %3462 = vmatpush1.bf16.msra.mxu0 0
  %3463 = vmatprep.subr.bf16.mxu0 0
  %3464 = vmatpush1.bf16.msra.mxu0 0
  %3465 = vmatprep.subr.bf16.mxu0 0
  %3466 = vmatpush1.bf16.msra.mxu0 0
  %3467 = vmatprep.subr.bf16.mxu0 0
  %3468 = vmatpush1.bf16.msra.mxu0 0
  %3469 = vmatprep.subr.bf16.mxu0 0
  %3470 = vmatpush1.bf16.msra.mxu0 0
  %3471 = vmatprep.subr.bf16.mxu0 0
  %3472 = vmatpush1.bf16.msra.mxu0 0
  %3473 = vmatprep.subr.bf16.mxu0 0
  %3474 = vmatpush1.bf16.msra.mxu0 0
  %3475 = vmatprep.mubr.bf16.mxu0 0
  %3476 = vmatmul.mubr.bf16.gmra.mrb[0].mxu0 %v3441
  %v3477 = vpop.f32.mrb[0].mxu0
  %v3478 = vadd.f32 0.0, %v3477
  %v3479 = vpop.f32.mrb[0].mxu0
  %v3480 = vpop.f32.mrb[0].mxu0
  %v3481 = vadd.f32 0.0, %v3480
  %v3482 = vpop.f32.mrb[0].mxu0
  %3483 = vdwg.mxu0
  %v3484 = vadd.f32 %v3478, 1e-05
  %v3485 = vadd.f32 %v3481, 1e-05
  %v3486 = vrsqrt.pop %v3484
  %v3487 = vrsqrt.pop %v3485
  %v3488 = vmul.f32 %v3434, %v3486
  %v3489 = vmul.f32 %v3435, %v3487
  %v3490 = vlaneseq
  %v3491 = vshrl.u32 %v3490, 7
  %v3492 = vsub.s32 0, %v3491
  %v3493 = vrot.slane %v3436, %v3492
  %v3494 = vmul.f32 %v3488, %v3493
  %v3495 = vmul.f32 %v3489, %v3493
  %3497 = vrot.lane.b32.xlu0 %v3493, 96
  %v3498 = vpop.permute.xlu0 %3497
  %v3500 = vadd.f32 %v3494, %v3498
  %v3501 = vadd.f32 %v3495, %v3498
  %v3502 = vmin.f32 %v3500, 20.0
  %v3503 = vmin.f32 %v3501, 20.0
  %v3504 = vmul.f32 %v3502, 1.442695
  %v3505 = vpow.pop %v3504
  %v3506 = vmul.f32 %v3503, 1.442695
  %v3507 = vpow.pop %v3506
  %v3508 = vadd.f32 %v3505, 2.0
  %v3509 = vadd.f32 %v3507, 2.0
  %v3510 = vmul.f32 %v3505, %v3508
  %v3511 = vmul.f32 %v3507, %v3509
  %v3512 = vmul.f32 %v3500, %v3510
  %v3513 = vmul.f32 %v3501, %v3511
  %v3514 = vadd.f32 %v3510, 2.0
  %v3515 = vadd.f32 %v3511, 2.0
  %v3516 = vrcp.pop %v3514
  %v3517 = vrcp.pop %v3515
  %v3518 = vmul.f32 %v3512, %v3516
  %v3519 = vmul.f32 %v3513, %v3517
  %3522 = vrot.lane.b32.xlu0 %v3270, 96
  %v3523 = vpop.permute.xlu0 %3522
  %3524 = vrot.lane.b32.xlu0 %v3271, 96
  %v3525 = vpop.permute.xlu0 %3524
  %v3528 = vadd.f32 %v3518, %v3523
  %v3529 = vadd.f32 %v3519, %v3525
  %v3530 = vld [vmem:[%s3 + $0x20] sm:$0x1]
  %v3531 = vpack.c.bf16 %v3529, %v3528
  %v3532 = vld [vmem:[%s1 + $0x1f8] sm:$0xf]
  %v3533 = vld [vmem:[%s1 + $0x1fc] sm:$0xf]
  %v3534 = vld [vmem:[%s1 + $0x200] sm:$0xf]
  %v3535 = vld [vmem:[%s1 + $0x204] sm:$0xf]
  %v3540 = vunpack.c.l.b16 %v3532
  %v3541 = vunpack.c.l.b16 %v3533
  %v3542 = vunpack.c.l.b16 %v3534
  %v3543 = vunpack.c.l.b16 %v3535
  %v3544 = vpack.c.b16 %v3541, %v3540
  %v3545 = vpack.c.b16 %v3543, %v3542
  %v3549 = vsel %vm294, %v3531, 0
  %3551 = vmatprep.subr.bf16.mxu0 0
  %3552 = vmatpush1.bf16.msra.mxu0 %v3544
  %3553 = vmatprep.subr.bf16.mxu0 0
  %3554 = vmatpush1.bf16.msra.mxu0 %v3545
  %3555 = vmatprep.subr.bf16.mxu0 0
  %3556 = vmatpush1.bf16.msra.mxu0 0
  %3557 = vmatprep.subr.bf16.mxu0 0
  %3558 = vmatpush1.bf16.msra.mxu0 0
  %3559 = vmatprep.subr.bf16.mxu0 0
  %3560 = vmatpush1.bf16.msra.mxu0 0
  %3561 = vmatprep.subr.bf16.mxu0 0
  %3562 = vmatpush1.bf16.msra.mxu0 0
  %3563 = vmatprep.subr.bf16.mxu0 0
  %3564 = vmatpush1.bf16.msra.mxu0 0
  %3565 = vmatprep.subr.bf16.mxu0 0
  %3566 = vmatpush1.bf16.msra.mxu0 0
  %3567 = vmatprep.subr.bf16.mxu0 0
  %3568 = vmatpush1.bf16.msra.mxu0 0
  %3569 = vmatprep.subr.bf16.mxu0 0
  %3570 = vmatpush1.bf16.msra.mxu0 0
  %3571 = vmatprep.subr.bf16.mxu0 0
  %3572 = vmatpush1.bf16.msra.mxu0 0
  %3573 = vmatprep.subr.bf16.mxu0 0
  %3574 = vmatpush1.bf16.msra.mxu0 0
  %3575 = vmatprep.subr.bf16.mxu0 0
  %3576 = vmatpush1.bf16.msra.mxu0 0
  %3577 = vmatprep.subr.bf16.mxu0 0
  %3578 = vmatpush1.bf16.msra.mxu0 0
  %3579 = vmatprep.subr.bf16.mxu0 0
  %3580 = vmatpush1.bf16.msra.mxu0 0
  %3581 = vmatprep.subr.bf16.mxu0 0
  %3582 = vmatpush1.bf16.msra.mxu0 0
  %3583 = vmatprep.mubr.bf16.mxu0 0
  %3584 = vmatmul.mubr.bf16.gmra.mrb[0].mxu0 %v3549
  %v3585 = vpop.f32.mrb[0].mxu0
  %v3586 = vadd.f32 0.0, %v3585
  %v3587 = vpop.f32.mrb[0].mxu0
  %v3588 = vpop.f32.mrb[0].mxu0
  %v3589 = vadd.f32 0.0, %v3588
  %v3590 = vpop.f32.mrb[0].mxu0
  %3591 = vdwg.mxu0
  %v3592 = vlaneseq
  %v3593 = vshrl.u32 %v3592, 7
  %v3594 = vsub.s32 0, %v3593
  %v3595 = vrot.slane %v3530, %v3594
  %v3596 = vadd.f32 %v3595, %v3586
  %v3597 = vadd.f32 %v3595, %v3589
  %v3598 = vld [vmem:[%s3 + $0x21] sm:$0x1]
  %v3599 = vmul.f32 %v3596, %v3596
  %v3600 = vmul.f32 %v3597, %v3597
  %v3601 = vpack.c.bf16 %v3600, %v3599
  %v3603 = vsel %vm294, %v3601, 0
  %3605 = vmatprep.subr.bf16.mxu0 0
  %3606 = vmatpush1.bf16.msra.mxu0 %v1041
  %3607 = vmatprep.subr.bf16.mxu0 0
  %3608 = vmatpush1.bf16.msra.mxu0 %v1042
  %3609 = vmatprep.subr.bf16.mxu0 0
  %3610 = vmatpush1.bf16.msra.mxu0 0
  %3611 = vmatprep.subr.bf16.mxu0 0
  %3612 = vmatpush1.bf16.msra.mxu0 0
  %3613 = vmatprep.subr.bf16.mxu0 0
  %3614 = vmatpush1.bf16.msra.mxu0 0
  %3615 = vmatprep.subr.bf16.mxu0 0
  %3616 = vmatpush1.bf16.msra.mxu0 0
  %3617 = vmatprep.subr.bf16.mxu0 0
  %3618 = vmatpush1.bf16.msra.mxu0 0
  %3619 = vmatprep.subr.bf16.mxu0 0
  %3620 = vmatpush1.bf16.msra.mxu0 0
  %3621 = vmatprep.subr.bf16.mxu0 0
  %3622 = vmatpush1.bf16.msra.mxu0 0
  %3623 = vmatprep.subr.bf16.mxu0 0
  %3624 = vmatpush1.bf16.msra.mxu0 0
  %3625 = vmatprep.subr.bf16.mxu0 0
  %3626 = vmatpush1.bf16.msra.mxu0 0
  %3627 = vmatprep.subr.bf16.mxu0 0
  %3628 = vmatpush1.bf16.msra.mxu0 0
  %3629 = vmatprep.subr.bf16.mxu0 0
  %3630 = vmatpush1.bf16.msra.mxu0 0
  %3631 = vmatprep.subr.bf16.mxu0 0
  %3632 = vmatpush1.bf16.msra.mxu0 0
  %3633 = vmatprep.subr.bf16.mxu0 0
  %3634 = vmatpush1.bf16.msra.mxu0 0
  %3635 = vmatprep.subr.bf16.mxu0 0
  %3636 = vmatpush1.bf16.msra.mxu0 0
  %3637 = vmatprep.mubr.bf16.mxu0 0
  %3638 = vmatmul.mubr.bf16.gmra.mrb[0].mxu0 %v3603
  %v3639 = vpop.f32.mrb[0].mxu0
  %v3640 = vadd.f32 0.0, %v3639
  %v3641 = vpop.f32.mrb[0].mxu0
  %v3642 = vpop.f32.mrb[0].mxu0
  %v3643 = vadd.f32 0.0, %v3642
  %v3644 = vpop.f32.mrb[0].mxu0
  %3645 = vdwg.mxu0
  %v3646 = vadd.f32 %v3640, 1e-05
  %v3647 = vadd.f32 %v3643, 1e-05
  %v3648 = vrsqrt.pop %v3646
  %v3649 = vrsqrt.pop %v3647
  %v3650 = vmul.f32 %v3596, %v3648
  %v3651 = vmul.f32 %v3597, %v3649
  %v3652 = vlaneseq
  %v3653 = vshrl.u32 %v3652, 7
  %v3654 = vsub.s32 0, %v3653
  %v3655 = vrot.slane %v3598, %v3654
  %v3656 = vmul.f32 %v3650, %v3655
  %v3657 = vmul.f32 %v3651, %v3655
  %3659 = vrot.lane.b32.xlu0 %v3655, 96
  %v3660 = vpop.permute.xlu0 %3659
  %v3662 = vadd.f32 %v3656, %v3660
  %v3663 = vadd.f32 %v3657, %v3660
  %v3664 = vmin.f32 %v3662, 20.0
  %v3665 = vmin.f32 %v3663, 20.0
  %v3666 = vmul.f32 %v3664, 1.442695
  %v3667 = vpow.pop %v3666
  %v3668 = vmul.f32 %v3665, 1.442695
  %v3669 = vpow.pop %v3668
  %v3670 = vadd.f32 %v3667, 2.0
  %v3671 = vadd.f32 %v3669, 2.0
  %v3672 = vmul.f32 %v3667, %v3670
  %v3673 = vmul.f32 %v3669, %v3671
  %v3674 = vmul.f32 %v3662, %v3672
  %v3675 = vmul.f32 %v3663, %v3673
  %v3676 = vadd.f32 %v3672, 2.0
  %v3677 = vadd.f32 %v3673, 2.0
  %v3678 = vrcp.pop %v3676
  %v3679 = vrcp.pop %v3677
  %v3680 = vmul.f32 %v3674, %v3678
  %v3681 = vmul.f32 %v3675, %v3679
  %3684 = vrot.lane.b32.xlu0 %v3680, 64
  %v3685 = vpop.permute.xlu0 %3684
  %3686 = vrot.lane.b32.xlu0 %v3681, 64
  %v3687 = vpop.permute.xlu0 %3686
  %v3690 = vmul.f32 %v957, %v3685
  %v3691 = vmul.f32 %v963, %v3687
  %v3692 = vadd.f32 %v3690, %v3361
  %v3693 = vadd.f32 %v3691, %v3363
  %v3694 = vpack.c.bf16 %v3693, %v3692
  %v3695 = vld [vmem:[%s1 + $0x208] sm:$0xf]
  %v3696 = vld [vmem:[%s1 + $0x20c] sm:$0xf]
  %v3697 = vld [vmem:[%s1 + $0x210] sm:$0xf]
  %v3698 = vld [vmem:[%s1 + $0x214] sm:$0xf]
  %3700 = vrot.lane.b32.xlu0 %v3694, 64
  %v3701 = vpop.permute.xlu0 %3700
  %v3706 = vunpack.c.l.b16 %v3695
  %v3707 = vunpack.c.l.b16 %v3696
  %v3708 = vunpack.c.l.b16 %v3697
  %v3709 = vunpack.c.l.b16 %v3698
  %v3710 = vpack.c.b16 %v3707, %v3706
  %v3711 = vpack.c.b16 %v3709, %v3708
  %v3715 = vsel %vm294, %v3701, 0
  %3717 = vmatprep.subr.bf16.mxu0 0
  %3718 = vmatpush1.bf16.msra.mxu0 %v3710
  %3719 = vmatprep.subr.bf16.mxu0 0
  %3720 = vmatpush1.bf16.msra.mxu0 %v3711
  %3721 = vmatprep.subr.bf16.mxu0 0
  %3722 = vmatpush1.bf16.msra.mxu0 0
  %3723 = vmatprep.subr.bf16.mxu0 0
  %3724 = vmatpush1.bf16.msra.mxu0 0
  %3725 = vmatprep.subr.bf16.mxu0 0
  %3726 = vmatpush1.bf16.msra.mxu0 0
  %3727 = vmatprep.subr.bf16.mxu0 0
  %3728 = vmatpush1.bf16.msra.mxu0 0
  %3729 = vmatprep.subr.bf16.mxu0 0
  %3730 = vmatpush1.bf16.msra.mxu0 0
  %3731 = vmatprep.subr.bf16.mxu0 0
  %3732 = vmatpush1.bf16.msra.mxu0 0
  %3733 = vmatprep.subr.bf16.mxu0 0
  %3734 = vmatpush1.bf16.msra.mxu0 0
  %3735 = vmatprep.subr.bf16.mxu0 0
  %3736 = vmatpush1.bf16.msra.mxu0 0
  %3737 = vmatprep.subr.bf16.mxu0 0
  %3738 = vmatpush1.bf16.msra.mxu0 0
  %3739 = vmatprep.subr.bf16.mxu0 0
  %3740 = vmatpush1.bf16.msra.mxu0 0
  %3741 = vmatprep.subr.bf16.mxu0 0
  %3742 = vmatpush1.bf16.msra.mxu0 0
  %3743 = vmatprep.subr.bf16.mxu0 0
  %3744 = vmatpush1.bf16.msra.mxu0 0
  %3745 = vmatprep.subr.bf16.mxu0 0
  %3746 = vmatpush1.bf16.msra.mxu0 0
  %3747 = vmatprep.subr.bf16.mxu0 0
  %3748 = vmatpush1.bf16.msra.mxu0 0
  %3749 = vmatprep.mubr.bf16.mxu0 0
  %3750 = vmatmul.mubr.bf16.gmra.mrb[0].mxu0 %v3715
  %v3751 = vpop.f32.mrb[0].mxu0
  %v3752 = vadd.f32 0.0, %v3751
  %v3753 = vpop.f32.mrb[0].mxu0
  %v3754 = vpop.f32.mrb[0].mxu0
  %v3755 = vadd.f32 0.0, %v3754
  %v3756 = vpop.f32.mrb[0].mxu0
  %3757 = vdwg.mxu0
  %v3758 = vld [vmem:[%s3 + $0x22] sm:$0x1]
  %v3759 = vlaneseq
  %v3760 = vshrl.u32 %v3759, 7
  %v3761 = vsub.s32 0, %v3760
  %v3762 = vrot.slane %v3758, %v3761
  %v3763 = vadd.f32 %v3752, %v3762
  %v3764 = vadd.f32 %v3755, %v3762
  %v3765 = vld [vmem:[%s3 + $0x23] sm:$0x1]
  %v3766 = vmul.f32 %v3763, %v3763
  %v3767 = vmul.f32 %v3764, %v3764
  %v3768 = vpack.c.bf16 %v3767, %v3766
  %v3770 = vsel %vm294, %v3768, 0
  %3772 = vmatprep.subr.bf16.mxu0 0
  %3773 = vmatpush1.bf16.msra.mxu0 %v1041
  %3774 = vmatprep.subr.bf16.mxu0 0
  %3775 = vmatpush1.bf16.msra.mxu0 %v1042
  %3776 = vmatprep.subr.bf16.mxu0 0
  %3777 = vmatpush1.bf16.msra.mxu0 0
  %3778 = vmatprep.subr.bf16.mxu0 0
  %3779 = vmatpush1.bf16.msra.mxu0 0
  %3780 = vmatprep.subr.bf16.mxu0 0
  %3781 = vmatpush1.bf16.msra.mxu0 0
  %3782 = vmatprep.subr.bf16.mxu0 0
  %3783 = vmatpush1.bf16.msra.mxu0 0
  %3784 = vmatprep.subr.bf16.mxu0 0
  %3785 = vmatpush1.bf16.msra.mxu0 0
  %3786 = vmatprep.subr.bf16.mxu0 0
  %3787 = vmatpush1.bf16.msra.mxu0 0
  %3788 = vmatprep.subr.bf16.mxu0 0
  %3789 = vmatpush1.bf16.msra.mxu0 0
  %3790 = vmatprep.subr.bf16.mxu0 0
  %3791 = vmatpush1.bf16.msra.mxu0 0
  %3792 = vmatprep.subr.bf16.mxu0 0
  %3793 = vmatpush1.bf16.msra.mxu0 0
  %3794 = vmatprep.subr.bf16.mxu0 0
  %3795 = vmatpush1.bf16.msra.mxu0 0
  %3796 = vmatprep.subr.bf16.mxu0 0
  %3797 = vmatpush1.bf16.msra.mxu0 0
  %3798 = vmatprep.subr.bf16.mxu0 0
  %3799 = vmatpush1.bf16.msra.mxu0 0
  %3800 = vmatprep.subr.bf16.mxu0 0
  %3801 = vmatpush1.bf16.msra.mxu0 0
  %3802 = vmatprep.subr.bf16.mxu0 0
  %3803 = vmatpush1.bf16.msra.mxu0 0
  %3804 = vmatprep.mubr.bf16.mxu0 0
  %3805 = vmatmul.mubr.bf16.gmra.mrb[0].mxu0 %v3770
  %v3806 = vpop.f32.mrb[0].mxu0
  %v3807 = vadd.f32 0.0, %v3806
  %v3808 = vpop.f32.mrb[0].mxu0
  %v3809 = vpop.f32.mrb[0].mxu0
  %v3810 = vadd.f32 0.0, %v3809
  %v3811 = vpop.f32.mrb[0].mxu0
  %3812 = vdwg.mxu0
  %v3813 = vadd.f32 %v3807, 1e-05
  %v3814 = vadd.f32 %v3810, 1e-05
  %v3815 = vrsqrt.pop %v3813
  %v3816 = vrsqrt.pop %v3814
  %v3817 = vmul.f32 %v3763, %v3815
  %v3818 = vmul.f32 %v3764, %v3816
  %v3819 = vlaneseq
  %v3820 = vshrl.u32 %v3819, 7
  %v3821 = vsub.s32 0, %v3820
  %v3822 = vrot.slane %v3765, %v3821
  %v3823 = vmul.f32 %v3817, %v3822
  %v3824 = vmul.f32 %v3818, %v3822
  %3826 = vrot.lane.b32.xlu0 %v3822, 96
  %v3827 = vpop.permute.xlu0 %3826
  %v3829 = vadd.f32 %v3823, %v3827
  %v3830 = vadd.f32 %v3824, %v3827
  %v3831 = vmin.f32 %v3829, 20.0
  %v3832 = vmin.f32 %v3830, 20.0
  %v3833 = vmul.f32 %v3831, 1.442695
  %v3834 = vpow.pop %v3833
  %v3835 = vmul.f32 %v3832, 1.442695
  %v3836 = vpow.pop %v3835
  %v3837 = vadd.f32 %v3834, 2.0
  %v3838 = vadd.f32 %v3836, 2.0
  %v3839 = vmul.f32 %v3834, %v3837
  %v3840 = vmul.f32 %v3836, %v3838
  %v3841 = vmul.f32 %v3829, %v3839
  %v3842 = vmul.f32 %v3830, %v3840
  %v3843 = vadd.f32 %v3839, 2.0
  %v3844 = vadd.f32 %v3840, 2.0
  %v3845 = vrcp.pop %v3843
  %v3846 = vrcp.pop %v3844
  %v3847 = vmul.f32 %v3841, %v3845
  %v3848 = vmul.f32 %v3842, %v3846
  %v3849 = vadd.f32 %v3847, %v3528
  %v3850 = vadd.f32 %v3848, %v3529
  %v3851 = vld [vmem:[%s3 + $0x25] sm:$0x1]
  %v3852 = vpack.c.bf16 %v3850, %v3849
  %v3853 = vld [vmem:[%s1 + $0x228] sm:$0xf]
  %v3854 = vld [vmem:[%s1 + $0x22c] sm:$0xf]
  %v3855 = vld [vmem:[%s1 + $0x230] sm:$0xf]
  %v3856 = vld [vmem:[%s1 + $0x234] sm:$0xf]
  %v3861 = vunpack.c.l.b16 %v3853
  %v3862 = vunpack.c.l.b16 %v3854
  %v3863 = vunpack.c.l.b16 %v3855
  %v3864 = vunpack.c.l.b16 %v3856
  %v3865 = vpack.c.b16 %v3862, %v3861
  %v3866 = vpack.c.b16 %v3864, %v3863
  %v3870 = vsel %vm294, %v3852, 0
  %3872 = vmatprep.subr.bf16.mxu0 0
  %3873 = vmatpush1.bf16.msra.mxu0 %v3865
  %3874 = vmatprep.subr.bf16.mxu0 0
  %3875 = vmatpush1.bf16.msra.mxu0 %v3866
  %3876 = vmatprep.subr.bf16.mxu0 0
  %3877 = vmatpush1.bf16.msra.mxu0 0
  %3878 = vmatprep.subr.bf16.mxu0 0
  %3879 = vmatpush1.bf16.msra.mxu0 0
  %3880 = vmatprep.subr.bf16.mxu0 0
  %3881 = vmatpush1.bf16.msra.mxu0 0
  %3882 = vmatprep.subr.bf16.mxu0 0
  %3883 = vmatpush1.bf16.msra.mxu0 0
  %3884 = vmatprep.subr.bf16.mxu0 0
  %3885 = vmatpush1.bf16.msra.mxu0 0
  %3886 = vmatprep.subr.bf16.mxu0 0
  %3887 = vmatpush1.bf16.msra.mxu0 0
  %3888 = vmatprep.subr.bf16.mxu0 0
  %3889 = vmatpush1.bf16.msra.mxu0 0
  %3890 = vmatprep.subr.bf16.mxu0 0
  %3891 = vmatpush1.bf16.msra.mxu0 0
  %3892 = vmatprep.subr.bf16.mxu0 0
  %3893 = vmatpush1.bf16.msra.mxu0 0
  %3894 = vmatprep.subr.bf16.mxu0 0
  %3895 = vmatpush1.bf16.msra.mxu0 0
  %3896 = vmatprep.subr.bf16.mxu0 0
  %3897 = vmatpush1.bf16.msra.mxu0 0
  %3898 = vmatprep.subr.bf16.mxu0 0
  %3899 = vmatpush1.bf16.msra.mxu0 0
  %3900 = vmatprep.subr.bf16.mxu0 0
  %3901 = vmatpush1.bf16.msra.mxu0 0
  %3902 = vmatprep.subr.bf16.mxu0 0
  %3903 = vmatpush1.bf16.msra.mxu0 0
  %3904 = vmatprep.mubr.bf16.mxu0 0
  %3905 = vmatmul.mubr.bf16.gmra.mrb[0].mxu0 %v3870
  %v3906 = vpop.f32.mrb[0].mxu0
  %v3907 = vadd.f32 0.0, %v3906
  %v3908 = vpop.f32.mrb[0].mxu0
  %v3909 = vpop.f32.mrb[0].mxu0
  %v3910 = vadd.f32 0.0, %v3909
  %v3911 = vpop.f32.mrb[0].mxu0
  %3912 = vdwg.mxu0
  %v3913 = vlaneseq
  %v3914 = vshrl.u32 %v3913, 7
  %v3915 = vsub.s32 0, %v3914
  %v3916 = vrot.slane %v3851, %v3915
  %v3917 = vadd.f32 %v3907, %v3916
  %v3918 = vadd.f32 %v3910, %v3916
  %v3919 = vmul.f32 %v3917, %v3917
  %v3920 = vmul.f32 %v3918, %v3918
  %v3921 = vpack.c.bf16 %v3920, %v3919
  %v3923 = vsel %vm294, %v3921, 0
  %3925 = vmatprep.subr.bf16.mxu0 0
  %3926 = vmatpush1.bf16.msra.mxu0 %v1041
  %3927 = vmatprep.subr.bf16.mxu0 0
  %3928 = vmatpush1.bf16.msra.mxu0 %v1042
  %3929 = vmatprep.subr.bf16.mxu0 0
  %3930 = vmatpush1.bf16.msra.mxu0 0
  %3931 = vmatprep.subr.bf16.mxu0 0
  %3932 = vmatpush1.bf16.msra.mxu0 0
  %3933 = vmatprep.subr.bf16.mxu0 0
  %3934 = vmatpush1.bf16.msra.mxu0 0
  %3935 = vmatprep.subr.bf16.mxu0 0
  %3936 = vmatpush1.bf16.msra.mxu0 0
  %3937 = vmatprep.subr.bf16.mxu0 0
  %3938 = vmatpush1.bf16.msra.mxu0 0
  %3939 = vmatprep.subr.bf16.mxu0 0
  %3940 = vmatpush1.bf16.msra.mxu0 0
  %3941 = vmatprep.subr.bf16.mxu0 0
  %3942 = vmatpush1.bf16.msra.mxu0 0
  %3943 = vmatprep.subr.bf16.mxu0 0
  %3944 = vmatpush1.bf16.msra.mxu0 0
  %3945 = vmatprep.subr.bf16.mxu0 0
  %3946 = vmatpush1.bf16.msra.mxu0 0
  %3947 = vmatprep.subr.bf16.mxu0 0
  %3948 = vmatpush1.bf16.msra.mxu0 0
  %3949 = vmatprep.subr.bf16.mxu0 0
  %3950 = vmatpush1.bf16.msra.mxu0 0
  %3951 = vmatprep.subr.bf16.mxu0 0
  %3952 = vmatpush1.bf16.msra.mxu0 0
  %3953 = vmatprep.subr.bf16.mxu0 0
  %3954 = vmatpush1.bf16.msra.mxu0 0
  %3955 = vmatprep.subr.bf16.mxu0 0
  %3956 = vmatpush1.bf16.msra.mxu0 0
  %3957 = vmatprep.mubr.bf16.mxu0 0
  %3958 = vmatmul.mubr.bf16.gmra.mrb[0].mxu0 %v3923
  %v3959 = vpop.f32.mrb[0].mxu0
  %v3960 = vadd.f32 0.0, %v3959
  %v3961 = vpop.f32.mrb[0].mxu0
  %v3962 = vpop.f32.mrb[0].mxu0
  %v3963 = vadd.f32 0.0, %v3962
  %v3964 = vpop.f32.mrb[0].mxu0
  %3965 = vdwg.mxu0
  %v3966 = vadd.f32 %v3960, 1e-05
  %v3967 = vadd.f32 %v3963, 1e-05
  %v3968 = vrsqrt.pop %v3966
  %v3969 = vrsqrt.pop %v3967
  %v3970 = vmul.f32 %v3917, %v3968
  %v3971 = vmul.f32 %v3918, %v3969
  %3973 = vrot.lane.b32.xlu0 %v3916, 96
  %v3974 = vpop.permute.xlu0 %3973
  %v3976 = vmul.f32 %v3970, %v3974
  %v3977 = vmul.f32 %v3971, %v3974
  %3978 = vrot.lane.b32.xlu0 %v3916, 64
  %v3979 = vpop.permute.xlu0 %3978
  %v3981 = vadd.f32 %v3976, %v3979
  %v3982 = vadd.f32 %v3977, %v3979
  %v3983 = vmin.f32 %v3981, 20.0
  %v3984 = vmin.f32 %v3982, 20.0
  %v3985 = vmul.f32 %v3983, 1.442695
  %v3986 = vpow.pop %v3985
  %v3987 = vmul.f32 %v3984, 1.442695
  %v3988 = vpow.pop %v3987
  %v3989 = vadd.f32 %v3986, 2.0
  %v3990 = vadd.f32 %v3988, 2.0
  %v3991 = vmul.f32 %v3986, %v3989
  %v3992 = vmul.f32 %v3988, %v3990
  %v3993 = vmul.f32 %v3981, %v3991
  %v3994 = vmul.f32 %v3982, %v3992
  %v3995 = vadd.f32 %v3991, 2.0
  %v3996 = vadd.f32 %v3992, 2.0
  %v3997 = vrcp.pop %v3995
  %v3998 = vrcp.pop %v3996
  %v3999 = vmul.f32 %v3993, %v3997
  %v4000 = vmul.f32 %v3994, %v3998
  %v4001 = vpack.c.bf16 %v4000, %v3999
  %v4002 = vld [vmem:[%s1 + $0x238] sm:$0xf]
  %v4003 = vld [vmem:[%s1 + $0x23c] sm:$0xf]
  %v4004 = vld [vmem:[%s1 + $0x240] sm:$0xf]
  %v4005 = vld [vmem:[%s1 + $0x244] sm:$0xf]
  %v4006 = vld [vmem:[%s3 + $0x26] sm:$0x1]
  %v4007 = vlaneseq
  %v4008 = vshrl.u32 %v4007, 7
  %v4009 = vsub.s32 0, %v4008
  %v4010 = vrot.slane %v4006, %v4009
  %v4015 = vunpack.c.l.b16 %v4002
  %v4016 = vunpack.c.l.b16 %v4003
  %v4017 = vunpack.c.l.b16 %v4004
  %v4018 = vunpack.c.l.b16 %v4005
  %v4019 = vpack.c.b16 %v4016, %v4015
  %v4020 = vpack.c.b16 %v4018, %v4017
  %v4024 = vsel %vm294, %v4001, 0
  %4026 = vmatprep.subr.bf16.mxu0 0
  %4027 = vmatpush1.bf16.msra.mxu0 %v4019
  %4028 = vmatprep.subr.bf16.mxu0 0
  %4029 = vmatpush1.bf16.msra.mxu0 %v4020
  %4030 = vmatprep.subr.bf16.mxu0 0
  %4031 = vmatpush1.bf16.msra.mxu0 0
  %4032 = vmatprep.subr.bf16.mxu0 0
  %4033 = vmatpush1.bf16.msra.mxu0 0
  %4034 = vmatprep.subr.bf16.mxu0 0
  %4035 = vmatpush1.bf16.msra.mxu0 0
  %4036 = vmatprep.subr.bf16.mxu0 0
  %4037 = vmatpush1.bf16.msra.mxu0 0
  %4038 = vmatprep.subr.bf16.mxu0 0
  %4039 = vmatpush1.bf16.msra.mxu0 0
  %4040 = vmatprep.subr.bf16.mxu0 0
  %4041 = vmatpush1.bf16.msra.mxu0 0
  %4042 = vmatprep.subr.bf16.mxu0 0
  %4043 = vmatpush1.bf16.msra.mxu0 0
  %4044 = vmatprep.subr.bf16.mxu0 0
  %4045 = vmatpush1.bf16.msra.mxu0 0
  %4046 = vmatprep.subr.bf16.mxu0 0
  %4047 = vmatpush1.bf16.msra.mxu0 0
  %4048 = vmatprep.subr.bf16.mxu0 0
  %4049 = vmatpush1.bf16.msra.mxu0 0
  %4050 = vmatprep.subr.bf16.mxu0 0
  %4051 = vmatpush1.bf16.msra.mxu0 0
  %4052 = vmatprep.subr.bf16.mxu0 0
  %4053 = vmatpush1.bf16.msra.mxu0 0
  %4054 = vmatprep.subr.bf16.mxu0 0
  %4055 = vmatpush1.bf16.msra.mxu0 0
  %4056 = vmatprep.subr.bf16.mxu0 0
  %4057 = vmatpush1.bf16.msra.mxu0 0
  %4058 = vmatprep.mubr.bf16.mxu0 0
  %4059 = vmatmul.mubr.bf16.gmra.mrb[0].mxu0 %v4024
  %v4060 = vpop.f32.mrb[0].mxu0
  %v4061 = vadd.f32 %v4010, %v4060
  %v4062 = vpop.f32.mrb[0].mxu0
  %v4063 = vpop.f32.mrb[0].mxu0
  %v4064 = vadd.f32 %v4010, %v4063
  %v4065 = vpop.f32.mrb[0].mxu0
  %4066 = vdwg.mxu0
  %4067 = vst [vmem:[%s4] sm:$0xff] %v4061
  %4068 = vst [vmem:[%s4 + $0x8] sm:$0xff] %v4064
  // Predicated region
  $region18: #{forward.1} parent=0 // pred_check
    _
  $region19: #{forward.1} parent=0 // pred_check_branch
    %4070 = sbr.rel (0) target = $region21
  $region20: #{forward.1} parent=0 // pred_region
    _
  $region21: #{forward.1} parent=0 // pred_fallthru
    _
  // Predicated region
  $region22: #{forward.1} parent=0 // pred_check
    _
  $region23: #{forward.1} parent=0 // pred_check_branch
    %4072 = sbr.rel (0) target = $region25
  $region24: #{forward.1} parent=0 // pred_region
    _
  $region25: #{forward.1} parent=0 // pred_fallthru
    _

</llo_original>
